<compile_context>
chip_gen: v6e
topology: v6e:2x2x1
jax: 0.10.0
libtpu: 0.0.40
codegen_flags: <defaults>
</compile_context>

<pallas_src>
import numpy as np
import jax
import jax.numpy as jnp
from jax.experimental import pallas as pl
from jax.experimental.pallas import tpu as pltpu

# ----------------------- model configuration (small, synthetic) -----------------------
VOCAB_SIZES = [10, 10, 10, 3]          # last feature is the domain feature (vocab = domain_num)
EMBED_DIMS  = [8, 8, 8, 8]             # input_dim = 32
F           = len(VOCAB_SIZES)
DOMAIN_NUM  = 3
TASK_NUM    = 2
EXPERT_NUM  = 3
FCN_DIMS    = [64, 32, 32, 32, 16]     # full = [32, 64, 32 | 32, 32, 16]
INPUT_DIM   = sum(EMBED_DIMS)
FULL_DIMS   = [INPUT_DIM] + FCN_DIMS
STAR_DIM    = FULL_DIMS[:3]            # [32, 64, 32]
EXP_FCN     = FULL_DIMS[3:]            # [32, 32, 16]
D_HID       = EXP_FCN[1]               # 32
D_LAST      = EXP_FCN[2]               # 16
NE_ALL      = EXPERT_NUM + DOMAIN_NUM + TASK_NUM   # 8 experts total (shared, domain, task)
NT          = TASK_NUM * DOMAIN_NUM                # 6 towers
BATCH       = 8
LN_EPS      = 1e-5
BN_EPS      = 1e-5

# combined-vocab layout for the fused embedding lookup
OFFSETS = [0]
for _v in VOCAB_SIZES[:-1]:
    OFFSETS.append(OFFSETS[-1] + _v)
VTOT = sum(VOCAB_SIZES)                 # 33
VPAD = ((VTOT + 7) // 8) * 8            # 40 (sublane-aligned table)

_WEIGHT_KEYS = (
    'emb_T',
    'sk_W', 'sk_b', 'sk_g', 'sk_bt',
    'st_W', 'st_b', 'st_E',
    'st2sm_W', 'sm_b', 'sm_g', 'sm_bt',
    'e1_W', 'e1_b', 'e1_g', 'e1_bt', 'seg1',
    'e2_W', 'e2_b', 'e2_g', 'e2_bt', 'seg2',
    'g_W', 'g_b', 'g_E',
    'gct1s_W', 't1dt_W', 't1_b', 't2_W', 't2_b',
    'sel_E', 'sel_C',
)


# ===================================== fused Pallas kernel =====================================

def _fused_forward_kernel(
    x_ref, embT_ref,
    # skip_conn (Linear + LN + ReLU)
    skW_ref, skb_ref, skg_ref, skbt_ref,
    # STAR layer (pre-folded slot*shared weights, one-hot routing)
    stW_ref, stb_ref, stE_ref,
    # star_mlp with the domain-collapse selector pre-folded into its weight
    st2smW_ref, smb_ref, smg_ref, smbt_ref,
    # 8 batched experts, layer 1 (Linear + segmented LN + ReLU)
    e1W_ref, e1b_ref, e1g_ref, e1bt_ref, seg1_ref,
    # 8 batched experts, layer 2 (block-diag Linear + segmented LN + ReLU)
    e2W_ref, e2b_ref, e2g_ref, e2bt_ref, seg2_ref,
    # gate (only gate[TASK_NUM-1] feeds the bmm, matching the reference's leaked loop var)
    gW_ref, gb_ref, gE_ref,
    # 6 batched towers (eval-BN folded into layer 1; gate-collapse folded into shared branch)
    gct1sW_ref, t1dtW_ref, t1b_ref, t2W_ref, t2b_ref,
    # final per-task domain selection
    selE_ref, selC_ref,
    # output
    out_ref,
):
    f32 = jnp.float32

    def mm(a, w_ref):
        # weights may be stored bf16; upcast once, accumulate in f32
        return jnp.dot(a, w_ref[...].astype(f32), preferred_element_type=f32)

    def ln_relu_full(h, g_ref, bt_ref):
        # LayerNorm over the full (single-segment) last dim, then ReLU.
        mu = jnp.mean(h, axis=-1, keepdims=True)
        c = h - mu
        var = jnp.mean(c * c, axis=-1, keepdims=True)
        return jnp.maximum(c * jax.lax.rsqrt(var + LN_EPS) * g_ref[...] + bt_ref[...], 0.0)

    def ln_relu_seg(h, seg_ref, g_ref, bt_ref):
        # Per-expert LayerNorm via ONE block-diagonal segment-mean matmul on the
        # stacked [h ; h*h] batch (mean and mean-of-squares in a single MXU pass).
        n = h.shape[0]
        stats = mm(jnp.concatenate([h, h * h], axis=0), seg_ref)   # (2n, lanes)
        mu = stats[:n]
        var = jnp.maximum(stats[n:] - mu * mu, 0.0)
        return jnp.maximum((h - mu) * jax.lax.rsqrt(var + LN_EPS) * g_ref[...] + bt_ref[...], 0.0)

    xi = x_ref[...]                                    # (Bt, F) int32, last col = domain id
    n_rows = xi.shape[0]

    # ---- fused embedding lookup: multi-hot over the combined vocab, one matmul ----
    col = jax.lax.broadcasted_iota(jnp.int32, (n_rows, VPAD), 1)
    mh = jnp.zeros((n_rows, VPAD), f32)
    for f in range(F):
        mh = mh + (col == (xi[:, f:f + 1] + OFFSETS[f])).astype(f32)
    x = mm(mh, embT_ref)                               # (Bt, 32) == concat of feature embeddings

    # ---- domain one-hot ----
    oh = (jax.lax.broadcasted_iota(jnp.int32, (n_rows, DOMAIN_NUM), 1)
          == xi[:, F - 1:F]).astype(f32)               # (Bt, 3)

    # ---- skip connection: ReLU(LN(x @ W + b)) ----
    skip = ln_relu_full(mm(x, skW_ref) + skb_ref[...], skg_ref, skbt_ref)          # (Bt, 32)

    # ---- STAR (all domains in one matmul, routed by one-hot mask) + star_mlp (folded) ----
    star = (mm(x, stW_ref) + stb_ref[...]) * mm(oh, stE_ref)                        # (Bt, 192)
    emb = ln_relu_full(mm(star, st2smW_ref) + smb_ref[...], smg_ref, smbt_ref) + skip   # (Bt, 32)

    # ---- 8 MI experts batched (eval mode => mean branch only) ----
    h1 = ln_relu_seg(mm(emb, e1W_ref) + e1b_ref[...], seg1_ref, e1g_ref, e1bt_ref)  # (Bt, 256)
    fea = ln_relu_seg(mm(h1, e2W_ref) + e2b_ref[...], seg2_ref, e2g_ref, e2bt_ref)  # (Bt, 128)

    # ---- gate (softmax over the 3 shared experts) ----
    logits = mm(emb, gW_ref) + gb_ref[...]                                          # (Bt, 3)
    m = jnp.max(logits, axis=-1, keepdims=True)
    e = jnp.exp(logits - m)
    gate = e / jnp.sum(e, axis=-1, keepdims=True)
    gm = mm(gate, gE_ref)                                                            # (Bt, 128)

    # ---- 6 towers batched; gate-collapse + eval-BN pre-folded into layer-1 weights ----
    ht = jnp.maximum(mm(gm * fea, gct1sW_ref) + mm(fea, t1dtW_ref) + t1b_ref[...], 0.0)  # (Bt, 96)
    out6 = jax.nn.sigmoid(mm(ht, t2W_ref) + t2b_ref[...])                                # (Bt, 6)

    # ---- final per-task domain selection (result[:, t] <- tower t*DOMAIN_NUM + domain) ----
    out_ref[...] = mm(out6 * mm(oh, selE_ref), selC_ref)                                 # (Bt, 2)


def _resident_spec(arr):
    nd = arr.ndim
    return pl.BlockSpec(arr.shape, lambda i, _nd=nd: (0,) * _nd)


def fused_forward(x_bf, pk):
    """x_bf: (B, F) int32, last column = domain id."""
    B = x_bf.shape[0]
    b_tile = min(256, ((B + 7) // 8) * 8)
    n_blk = (B + b_tile - 1) // b_tile
    Bp = n_blk * b_tile
    if Bp != B:
        x_bf = jnp.concatenate([x_bf, jnp.zeros((Bp - B, F), jnp.int32)], axis=0)

    weights = [pk[k] for k in _WEIGHT_KEYS]
    grid_spec = pltpu.PrefetchScalarGridSpec(
        num_scalar_prefetch=0,
        grid=(n_blk,),
        in_specs=[pl.BlockSpec((b_tile, F), lambda i: (i, 0))]
                 + [_resident_spec(w) for w in weights],
        out_specs=pl.BlockSpec((b_tile, TASK_NUM), lambda i: (i, 0)),
    )
    out = pl.pallas_call(
        _fused_forward_kernel,
        out_shape=jax.ShapeDtypeStruct((Bp, TASK_NUM), jnp.float32),
        grid_spec=grid_spec,
        compiler_params=pltpu.CompilerParams(dimension_semantics=("parallel",)),
    )(x_bf, *weights)
    return out[:B]


# ===================================== parameter init =====================================

def _linear_init(key, din, dout):
    kw, kb = jax.random.split(key)
    bound = 1.0 / (din ** 0.5)
    W = jax.random.uniform(kw, (din, dout), jnp.float32, -bound, bound)
    b = jax.random.uniform(kb, (dout,), jnp.float32, -bound, bound)
    return W, b


def _xavier_uniform(key, din, dout):
    a = (6.0 / (din + dout)) ** 0.5
    return jax.random.uniform(key, (din, dout), jnp.float32, -a, a)


def _dense_block_init(key, din, dout):
    W, b = _linear_init(key, din, dout)
    return (W, b, jnp.ones((dout,), jnp.float32), jnp.zeros((dout,), jnp.float32))


def _mi_expert_init(key, dims):
    keys = jax.random.split(key, len(dims) - 1)
    return [_dense_block_init(keys[i], dims[i], dims[i + 1]) for i in range(len(dims) - 1)]


def build_params(key):
    keys = iter(jax.random.split(key, 64))
    p = {}
    p['emb_tables'] = [jax.random.normal(next(keys), (v, e), jnp.float32) * 0.1
                       for v, e in zip(VOCAB_SIZES, EMBED_DIMS)]
    p['skip'] = _dense_block_init(next(keys), STAR_DIM[0], STAR_DIM[2])
    p['shared_w'] = _xavier_uniform(next(keys), STAR_DIM[0], STAR_DIM[1])
    p['shared_b'] = jnp.zeros((STAR_DIM[1],), jnp.float32)
    p['slot_w'] = jnp.stack([_xavier_uniform(next(keys), STAR_DIM[0], STAR_DIM[1])
                             for _ in range(DOMAIN_NUM)], axis=0)
    p['slot_b'] = jnp.zeros((DOMAIN_NUM, STAR_DIM[1]), jnp.float32)
    p['star_mlp'] = _dense_block_init(next(keys), STAR_DIM[1], STAR_DIM[2])
    p['gate'] = [_linear_init(next(keys), EXP_FCN[0], EXPERT_NUM)
                 for _ in range(DOMAIN_NUM * TASK_NUM)]
    p['expert'] = [_mi_expert_init(next(keys), EXP_FCN) for _ in range(EXPERT_NUM)]
    p['domain_expert'] = [_mi_expert_init(next(keys), EXP_FCN) for _ in range(DOMAIN_NUM)]
    p['task_expert'] = [_mi_expert_init(next(keys), EXP_FCN) for _ in range(TASK_NUM)]
    towers = []
    for _ in range(NT):
        W1, b1 = _linear_init(next(keys), D_LAST * 3, D_LAST)
        W2, b2 = _linear_init(next(keys), D_LAST, 1)
        towers.append((W1, b1,
                       jnp.ones((D_LAST,), jnp.float32), jnp.zeros((D_LAST,), jnp.float32),
                       jnp.zeros((D_LAST,), jnp.float32), jnp.ones((D_LAST,), jnp.float32),
                       W2, b2))
    p['tower'] = towers
    return p


# ===================================== parameter packing (once, outside the kernel) =====================================

def pack_params(p):
    """Fold/stack all constant parameter math so the kernel is a handful of wide matmuls."""
    f32 = np.float32

    def row(v):
        return jnp.asarray(np.asarray(v, f32).reshape(1, -1))

    def bf(a):
        # large constants stored bf16 to halve the per-call weight DMA
        return jnp.asarray(np.asarray(a, f32)).astype(jnp.bfloat16)

    pk = {}

    # ---- combined embedding table: multi_hot(x) @ emb_T == concat of feature embeddings ----
    T = np.zeros((VPAD, INPUT_DIM), f32)
    c = 0
    for f in range(F):
        v, e = VOCAB_SIZES[f], EMBED_DIMS[f]
        T[OFFSETS[f]:OFFSETS[f] + v, c:c + e] = np.asarray(p['emb_tables'][f], f32)
        c += e
    pk['emb_T'] = jnp.asarray(T)

    # ---- skip connection ----
    W, b, g, bt = p['skip']
    pk['sk_W'] = jnp.asarray(np.asarray(W, f32))
    pk['sk_b'], pk['sk_g'], pk['sk_bt'] = row(b), row(g), row(bt)

    # ---- STAR: fold slot_w*shared_w / slot_b+shared_b, flatten along lanes ----
    slot_w, shared_w = np.asarray(p['slot_w'], f32), np.asarray(p['shared_w'], f32)
    slot_b, shared_b = np.asarray(p['slot_b'], f32), np.asarray(p['shared_b'], f32)
    D1 = STAR_DIM[1]
    pk['st_W'] = bf(np.concatenate([slot_w[d] * shared_w for d in range(DOMAIN_NUM)], axis=1))
    pk['st_b'] = jnp.asarray(np.concatenate([slot_b[d] + shared_b for d in range(DOMAIN_NUM)])[None, :])
    stE = np.zeros((DOMAIN_NUM, DOMAIN_NUM * D1), f32)
    stC = np.zeros((DOMAIN_NUM * D1, D1), f32)
    for d in range(DOMAIN_NUM):
        stE[d, d * D1:(d + 1) * D1] = 1.0
        stC[d * D1:(d + 1) * D1, :] = np.eye(D1, dtype=f32)
    pk['st_E'] = jnp.asarray(stE)

    # ---- star_mlp: pre-fold domain-collapse selector into the weight (stC @ sm_W) ----
    Wm, bm, gm, btm = p['star_mlp']
    pk['st2sm_W'] = bf(stC @ np.asarray(Wm, f32))
    pk['sm_b'], pk['sm_g'], pk['sm_bt'] = row(bm), row(gm), row(btm)

    # ---- experts batched: order = 3 shared, 3 domain, 2 task ----
    experts = p['expert'] + p['domain_expert'] + p['task_expert']
    pk['e1_W'] = bf(np.concatenate([np.asarray(e[0][0], f32) for e in experts], axis=1))
    pk['e1_b'] = jnp.asarray(np.concatenate([np.asarray(e[0][1], f32) for e in experts])[None, :])
    pk['e1_g'] = jnp.asarray(np.concatenate([np.asarray(e[0][2], f32) for e in experts])[None, :])
    pk['e1_bt'] = jnp.asarray(np.concatenate([np.asarray(e[0][3], f32) for e in experts])[None, :])
    pk['seg1'] = bf(np.kron(np.eye(NE_ALL), np.ones((D_HID, D_HID)) / D_HID))
    e2W = np.zeros((NE_ALL * D_HID, NE_ALL * D_LAST), f32)
    for idx, e in enumerate(experts):
        e2W[idx * D_HID:(idx + 1) * D_HID, idx * D_LAST:(idx + 1) * D_LAST] = np.asarray(e[1][0], f32)
    pk['e2_W'] = bf(e2W)
    pk['e2_b'] = jnp.asarray(np.concatenate([np.asarray(e[1][1], f32) for e in experts])[None, :])
    pk['e2_g'] = jnp.asarray(np.concatenate([np.asarray(e[1][2], f32) for e in experts])[None, :])
    pk['e2_bt'] = jnp.asarray(np.concatenate([np.asarray(e[1][3], f32) for e in experts])[None, :])
    pk['seg2'] = bf(np.kron(np.eye(NE_ALL), np.ones((D_LAST, D_LAST)) / D_LAST))

    # ---- gate: reference reuses leaked loop variable => only gate[TASK_NUM - 1] feeds the bmm ----
    Wg, bg = p['gate'][TASK_NUM - 1]
    pk['g_W'] = jnp.asarray(np.asarray(Wg, f32))
    pk['g_b'] = row(bg)
    gE = np.zeros((EXPERT_NUM, NE_ALL * D_LAST), f32)      # expand gate over shared-expert lanes
    gC = np.zeros((NE_ALL * D_LAST, D_LAST), f32)          # collapse 3 shared blocks
    for k in range(EXPERT_NUM):
        gE[k, k * D_LAST:(k + 1) * D_LAST] = 1.0
        gC[k * D_LAST:(k + 1) * D_LAST, :] = np.eye(D_LAST, dtype=f32)
    pk['g_E'] = jnp.asarray(gE)

    # ---- towers: fold eval-BN into layer 1, stack all 6 towers along the lane dim ----
    t1s = np.zeros((D_LAST, NT * D_LAST), f32)             # acts on shared_fea (pre-gate-collapse)
    t1dt = np.zeros((NE_ALL * D_LAST, NT * D_LAST), f32)   # acts on fea (domain + task blocks)
    t1b = np.zeros((1, NT * D_LAST), f32)
    t2W = np.zeros((NT * D_LAST, NT), f32)
    t2b = np.zeros((1, NT), f32)
    for i in range(NT):
        W1, b1, g, btw, rm, rv, W2, b2 = [np.asarray(a, f32) for a in p['tower'][i]]
        scale = g / np.sqrt(rv + BN_EPS)                   # eval BatchNorm folded into the linear
        shift = btw - rm * scale
        W1f = W1 * scale[None, :]
        b1f = b1 * scale + shift
        d_idx = EXPERT_NUM + (i % DOMAIN_NUM)
        t_idx = EXPERT_NUM + DOMAIN_NUM + (i % TASK_NUM)
        colr = slice(i * D_LAST, (i + 1) * D_LAST)
        t1s[:, colr] = W1f[:D_LAST]
        t1dt[d_idx * D_LAST:(d_idx + 1) * D_LAST, colr] = W1f[D_LAST:2 * D_LAST]
        t1dt[t_idx * D_LAST:(t_idx + 1) * D_LAST, colr] = W1f[2 * D_LAST:3 * D_LAST]
        t1b[0, colr] = b1f
        t2W[colr, i] = W2[:, 0]
        t2b[0, i] = b2[0]
    # pre-fold the gate-collapse selector into the shared-fea branch of tower layer 1
    pk['gct1s_W'] = bf(gC @ t1s)                           # (128, 96)
    pk['t1dt_W'] = bf(t1dt)                                # (128, 96)
    pk['t1_b'] = jnp.asarray(t1b)
    pk['t2_W'] = jnp.asarray(t2W)
    pk['t2_b'] = jnp.asarray(t2b)

    # ---- final selection: result[:, t] <- tower (t*DOMAIN_NUM + domain_id) ----
    selE = np.zeros((DOMAIN_NUM, NT), f32)
    selC = np.zeros((NT, TASK_NUM), f32)
    for t in range(TASK_NUM):
        for d in range(DOMAIN_NUM):
            selE[d, t * DOMAIN_NUM + d] = 1.0
            selC[t * DOMAIN_NUM + d, t] = 1.0
    pk['sel_E'], pk['sel_C'] = jnp.asarray(selE), jnp.asarray(selC)
    return pk


# ===================================== forward pass =====================================

@jax.jit
def forward(packed, x):
    # x: (F, B) int32, last row = domain id; embedding + one-hot are fused in the kernel
    return fused_forward(jnp.transpose(x).astype(jnp.int32), packed)


# ===================================== pure-JAX reference (for correctness check) =====================================

def reference_forward(params, x):
    domain_id = x[-1, :]
    B = x.shape[1]
    embs = [params['emb_tables'][f][x[f]] for f in range(F)]
    input_emb = jnp.concatenate(embs, axis=-1)

    def dlr(h, W, b, g, bt):
        h = h @ W + b
        mu = jnp.mean(h, -1, keepdims=True)
        var = jnp.mean((h - mu) ** 2, -1, keepdims=True)
        return jnp.maximum((h - mu) * jax.lax.rsqrt(var + LN_EPS) * g + bt, 0.0)

    skip = dlr(input_emb, *params['skip'])
    emb = jnp.zeros((B, STAR_DIM[1]), jnp.float32)
    for d in range(DOMAIN_NUM):
        outd = input_emb @ (params['slot_w'][d] * params['shared_w']) \
               + params['slot_b'][d] + params['shared_b']
        emb = jnp.where((domain_id == d)[:, None], outd, emb)
    emb = dlr(emb, *params['star_mlp']) + skip

    def run_exp(ep, h):
        for (W, b, g, bt) in ep:
            h = dlr(h, W, b, g, bt)
        return h

    out = [run_exp(e, emb) for e in params['expert']]
    dom = [run_exp(e, emb) for e in params['domain_expert']]
    tsk = [run_exp(e, emb) for e in params['task_expert']]

    Wg, bg = params['gate'][TASK_NUM - 1]
    gp = jax.nn.softmax(emb @ Wg + bg, axis=-1)
    shared = sum(gp[:, k:k + 1] * out[k] for k in range(EXPERT_NUM))

    outputs = []
    for i in range(NT):
        W1, b1, g, bt, rm, rv, W2, b2 = params['tower'][i]
        h = jnp.concatenate([shared, dom[i % DOMAIN_NUM], tsk[i % TASK_NUM]], axis=-1) @ W1 + b1
        h = (h - rm) * jax.lax.rsqrt(rv + BN_EPS) * g + bt
        h = jnp.maximum(h, 0.0)
        outputs.append(jax.nn.sigmoid(h @ W2 + b2)[:, 0])
    output = jnp.stack(outputs, axis=1)

    result = jnp.zeros((B, TASK_NUM), jnp.float32)
    for t in range(TASK_NUM):
        col = jnp.zeros((B,), jnp.float32)
        for d in range(DOMAIN_NUM):
            col = jnp.where(domain_id == d, output[:, t * DOMAIN_NUM + d], col)
        result = result.at[:, t].set(col)
    return result


# ===================================== main =====================================

if __name__ == "__main__":
    key = jax.random.PRNGKey(0)
    kp, kf, kd = jax.random.split(key, 3)

    params = build_params(kp)
    packed = pack_params(params)

    x_feat = jax.random.randint(kf, (F - 1, BATCH), 0, min(VOCAB_SIZES[:-1]))
    x_dom = jax.random.randint(kd, (1, BATCH), 0, DOMAIN_NUM)
    x = jnp.concatenate([x_feat, x_dom], axis=0).astype(jnp.int32)    # (F, B)

    result = forward(packed, x)
    result = jax.block_until_ready(result)

    assert result.shape == (BATCH, TASK_NUM), result.shape
    assert result.dtype == jnp.float32
    assert bool(jnp.all(jnp.isfinite(result)))

    ref = reference_forward(params, x)
    max_err = float(jnp.max(jnp.abs(result - ref)))
    assert max_err < 2e-2, f"mismatch vs pure-JAX reference: {max_err}"

    print("KERNEL_OK")
</pallas_src>

<mosaic_0001>
module attributes {stable_mosaic.version = 11 : i64} {
  func.func @_fused_forward_kernel(%arg0: i32, %arg1: memref<8x4xi32, #tpu.memory_space<vmem>>, %arg2: memref<40x32xf32, #tpu.memory_space<vmem>>, %arg3: memref<32x32xf32, #tpu.memory_space<vmem>>, %arg4: memref<1x32xf32, #tpu.memory_space<vmem>>, %arg5: memref<1x32xf32, #tpu.memory_space<vmem>>, %arg6: memref<1x32xf32, #tpu.memory_space<vmem>>, %arg7: memref<32x192xbf16, #tpu.memory_space<vmem>>, %arg8: memref<1x192xf32, #tpu.memory_space<vmem>>, %arg9: memref<3x192xf32, #tpu.memory_space<vmem>>, %arg10: memref<192x32xbf16, #tpu.memory_space<vmem>>, %arg11: memref<1x32xf32, #tpu.memory_space<vmem>>, %arg12: memref<1x32xf32, #tpu.memory_space<vmem>>, %arg13: memref<1x32xf32, #tpu.memory_space<vmem>>, %arg14: memref<32x256xbf16, #tpu.memory_space<vmem>>, %arg15: memref<1x256xf32, #tpu.memory_space<vmem>>, %arg16: memref<1x256xf32, #tpu.memory_space<vmem>>, %arg17: memref<1x256xf32, #tpu.memory_space<vmem>>, %arg18: memref<256x256xbf16, #tpu.memory_space<vmem>>, %arg19: memref<256x128xbf16, #tpu.memory_space<vmem>>, %arg20: memref<1x128xf32, #tpu.memory_space<vmem>>, %arg21: memref<1x128xf32, #tpu.memory_space<vmem>>, %arg22: memref<1x128xf32, #tpu.memory_space<vmem>>, %arg23: memref<128x128xbf16, #tpu.memory_space<vmem>>, %arg24: memref<32x3xf32, #tpu.memory_space<vmem>>, %arg25: memref<1x3xf32, #tpu.memory_space<vmem>>, %arg26: memref<3x128xf32, #tpu.memory_space<vmem>>, %arg27: memref<128x96xbf16, #tpu.memory_space<vmem>>, %arg28: memref<128x96xbf16, #tpu.memory_space<vmem>>, %arg29: memref<1x96xf32, #tpu.memory_space<vmem>>, %arg30: memref<96x6xf32, #tpu.memory_space<vmem>>, %arg31: memref<1x6xf32, #tpu.memory_space<vmem>>, %arg32: memref<3x6xf32, #tpu.memory_space<vmem>>, %arg33: memref<6x2xf32, #tpu.memory_space<vmem>>, %arg34: memref<8x2xf32, #tpu.memory_space<vmem>>) attributes {dimension_semantics = [#tpu.dimension_semantics<parallel>], iteration_bounds = array<i64: 1>, scalar_prefetch = 0 : i64, scratch_operands = 0 : i64, tpu.core_type = #tpu.core_type<tc>, window_params = [{transform_indices = @transform_0, window_bounds = array<i64: 8, 4>}, {pipeline_mode = #tpu.pipeline_mode<synchronous>, transform_indices = @transform_1, window_bounds = array<i64: 40, 32>}, {pipeline_mode = #tpu.pipeline_mode<synchronous>, transform_indices = @transform_2, window_bounds = array<i64: 32, 32>}, {pipeline_mode = #tpu.pipeline_mode<synchronous>, transform_indices = @transform_3, window_bounds = array<i64: 1, 32>}, {pipeline_mode = #tpu.pipeline_mode<synchronous>, transform_indices = @transform_4, window_bounds = array<i64: 1, 32>}, {pipeline_mode = #tpu.pipeline_mode<synchronous>, transform_indices = @transform_5, window_bounds = array<i64: 1, 32>}, {pipeline_mode = #tpu.pipeline_mode<synchronous>, transform_indices = @transform_6, window_bounds = array<i64: 32, 192>}, {pipeline_mode = #tpu.pipeline_mode<synchronous>, transform_indices = @transform_7, window_bounds = array<i64: 1, 192>}, {pipeline_mode = #tpu.pipeline_mode<synchronous>, transform_indices = @transform_8, window_bounds = array<i64: 3, 192>}, {pipeline_mode = #tpu.pipeline_mode<synchronous>, transform_indices = @transform_9, window_bounds = array<i64: 192, 32>}, {pipeline_mode = #tpu.pipeline_mode<synchronous>, transform_indices = @transform_10, window_bounds = array<i64: 1, 32>}, {pipeline_mode = #tpu.pipeline_mode<synchronous>, transform_indices = @transform_11, window_bounds = array<i64: 1, 32>}, {pipeline_mode = #tpu.pipeline_mode<synchronous>, transform_indices = @transform_12, window_bounds = array<i64: 1, 32>}, {pipeline_mode = #tpu.pipeline_mode<synchronous>, transform_indices = @transform_13, window_bounds = array<i64: 32, 256>}, {pipeline_mode = #tpu.pipeline_mode<synchronous>, transform_indices = @transform_14, window_bounds = array<i64: 1, 256>}, {pipeline_mode = #tpu.pipeline_mode<synchronous>, transform_indices = @transform_15, window_bounds = array<i64: 1, 256>}, {pipeline_mode = #tpu.pipeline_mode<synchronous>, transform_indices = @transform_16, window_bounds = array<i64: 1, 256>}, {pipeline_mode = #tpu.pipeline_mode<synchronous>, transform_indices = @transform_17, window_bounds = array<i64: 256, 256>}, {pipeline_mode = #tpu.pipeline_mode<synchronous>, transform_indices = @transform_18, window_bounds = array<i64: 256, 128>}, {pipeline_mode = #tpu.pipeline_mode<synchronous>, transform_indices = @transform_19, window_bounds = array<i64: 1, 128>}, {pipeline_mode = #tpu.pipeline_mode<synchronous>, transform_indices = @transform_20, window_bounds = array<i64: 1, 128>}, {pipeline_mode = #tpu.pipeline_mode<synchronous>, transform_indices = @transform_21, window_bounds = array<i64: 1, 128>}, {pipeline_mode = #tpu.pipeline_mode<synchronous>, transform_indices = @transform_22, window_bounds = array<i64: 128, 128>}, {pipeline_mode = #tpu.pipeline_mode<synchronous>, transform_indices = @transform_23, window_bounds = array<i64: 32, 3>}, {pipeline_mode = #tpu.pipeline_mode<synchronous>, transform_indices = @transform_24, window_bounds = array<i64: 1, 3>}, {pipeline_mode = #tpu.pipeline_mode<synchronous>, transform_indices = @transform_25, window_bounds = array<i64: 3, 128>}, {pipeline_mode = #tpu.pipeline_mode<synchronous>, transform_indices = @transform_26, window_bounds = array<i64: 128, 96>}, {pipeline_mode = #tpu.pipeline_mode<synchronous>, transform_indices = @transform_27, window_bounds = array<i64: 128, 96>}, {pipeline_mode = #tpu.pipeline_mode<synchronous>, transform_indices = @transform_28, window_bounds = array<i64: 1, 96>}, {pipeline_mode = #tpu.pipeline_mode<synchronous>, transform_indices = @transform_29, window_bounds = array<i64: 96, 6>}, {pipeline_mode = #tpu.pipeline_mode<synchronous>, transform_indices = @transform_30, window_bounds = array<i64: 1, 6>}, {pipeline_mode = #tpu.pipeline_mode<synchronous>, transform_indices = @transform_31, window_bounds = array<i64: 3, 6>}, {pipeline_mode = #tpu.pipeline_mode<synchronous>, transform_indices = @transform_32, window_bounds = array<i64: 6, 2>}, {transform_indices = @transform_33, window_bounds = array<i64: 8, 2>}]} {
    %c0 = arith.constant 0 : index
    %c0_0 = arith.constant 0 : index
    %0 = vector.load %arg1[%c0, %c0_0] : memref<8x4xi32, #tpu.memory_space<vmem>>, vector<8x4xi32>
    %1 = tpu.iota {dimensions = array<i32: 1>} : vector<8x40xi32>
    %cst = arith.constant 0.000000e+00 : f32
    %2 = vector.broadcast %cst : f32 to vector<8x40xf32>
    %3 = vector.extract_strided_slice %0 {offsets = [0, 0], sizes = [8, 1], strides = [1, 1]} : vector<8x4xi32> to vector<8x1xi32>
    %c0_i32 = arith.constant 0 : i32
    %4 = vector.broadcast %c0_i32 : i32 to vector<8x1xi32>
    %5 = arith.addi %3, %4 : vector<8x1xi32>
    %6 = vector.broadcast %5 : vector<8x1xi32> to vector<8x40xi32>
    %7 = arith.cmpi eq, %1, %6 : vector<8x40xi32>
    %8 = arith.extui %7 : vector<8x40xi1> to vector<8x40xi32>
    %9 = arith.sitofp %8 : vector<8x40xi32> to vector<8x40xf32>
    %10 = arith.addf %2, %9 : vector<8x40xf32>
    %11 = vector.extract_strided_slice %0 {offsets = [0, 1], sizes = [8, 1], strides = [1, 1]} : vector<8x4xi32> to vector<8x1xi32>
    %c10_i32 = arith.constant 10 : i32
    %12 = vector.broadcast %c10_i32 : i32 to vector<8x1xi32>
    %13 = arith.addi %11, %12 : vector<8x1xi32>
    %14 = vector.broadcast %13 : vector<8x1xi32> to vector<8x40xi32>
    %15 = arith.cmpi eq, %1, %14 : vector<8x40xi32>
    %16 = arith.extui %15 : vector<8x40xi1> to vector<8x40xi32>
    %17 = arith.sitofp %16 : vector<8x40xi32> to vector<8x40xf32>
    %18 = arith.addf %10, %17 : vector<8x40xf32>
    %19 = vector.extract_strided_slice %0 {offsets = [0, 2], sizes = [8, 1], strides = [1, 1]} : vector<8x4xi32> to vector<8x1xi32>
    %c20_i32 = arith.constant 20 : i32
    %20 = vector.broadcast %c20_i32 : i32 to vector<8x1xi32>
    %21 = arith.addi %19, %20 : vector<8x1xi32>
    %22 = vector.broadcast %21 : vector<8x1xi32> to vector<8x40xi32>
    %23 = arith.cmpi eq, %1, %22 : vector<8x40xi32>
    %24 = arith.extui %23 : vector<8x40xi1> to vector<8x40xi32>
    %25 = arith.sitofp %24 : vector<8x40xi32> to vector<8x40xf32>
    %26 = arith.addf %18, %25 : vector<8x40xf32>
    %27 = vector.extract_strided_slice %0 {offsets = [0, 3], sizes = [8, 1], strides = [1, 1]} : vector<8x4xi32> to vector<8x1xi32>
    %c30_i32 = arith.constant 30 : i32
    %28 = vector.broadcast %c30_i32 : i32 to vector<8x1xi32>
    %29 = arith.addi %27, %28 : vector<8x1xi32>
    %30 = vector.broadcast %29 : vector<8x1xi32> to vector<8x40xi32>
    %31 = arith.cmpi eq, %1, %30 : vector<8x40xi32>
    %32 = arith.extui %31 : vector<8x40xi1> to vector<8x40xi32>
    %33 = arith.sitofp %32 : vector<8x40xi32> to vector<8x40xf32>
    %34 = arith.addf %26, %33 : vector<8x40xf32>
    %c0_1 = arith.constant 0 : index
    %c0_2 = arith.constant 0 : index
    %35 = vector.load %arg2[%c0_1, %c0_2] : memref<40x32xf32, #tpu.memory_space<vmem>>, vector<40x32xf32>
    %cst_3 = arith.constant dense<0.000000e+00> : vector<8x32xf32>
    %36 = tpu.matmul %34, %35, %cst_3 {dimension_numbers = #tpu.dot_dimension_numbers<[1], [0], [0], [1], [0, 0, 1, 1], [], []>} : vector<8x40xf32>, vector<40x32xf32>, vector<8x32xf32> -> vector<8x32xf32>
    %37 = tpu.iota {dimensions = array<i32: 1>} : vector<8x3xi32>
    %38 = vector.extract_strided_slice %0 {offsets = [0, 3], sizes = [8, 1], strides = [1, 1]} : vector<8x4xi32> to vector<8x1xi32>
    %39 = vector.broadcast %38 : vector<8x1xi32> to vector<8x3xi32>
    %40 = arith.cmpi eq, %37, %39 : vector<8x3xi32>
    %41 = arith.extui %40 : vector<8x3xi1> to vector<8x3xi32>
    %42 = arith.sitofp %41 : vector<8x3xi32> to vector<8x3xf32>
    %c0_4 = arith.constant 0 : index
    %c0_5 = arith.constant 0 : index
    %43 = vector.load %arg3[%c0_4, %c0_5] : memref<32x32xf32, #tpu.memory_space<vmem>>, vector<32x32xf32>
    %cst_6 = arith.constant dense<0.000000e+00> : vector<8x32xf32>
    %44 = tpu.matmul %36, %43, %cst_6 {dimension_numbers = #tpu.dot_dimension_numbers<[1], [0], [0], [1], [0, 0, 1, 1], [], []>} : vector<8x32xf32>, vector<32x32xf32>, vector<8x32xf32> -> vector<8x32xf32>
    %c0_7 = arith.constant 0 : index
    %c0_8 = arith.constant 0 : index
    %45 = vector.load %arg4[%c0_7, %c0_8] : memref<1x32xf32, #tpu.memory_space<vmem>>, vector<1x32xf32>
    %46 = vector.broadcast %45 : vector<1x32xf32> to vector<8x32xf32>
    %47 = arith.addf %44, %46 : vector<8x32xf32>
    %cst_9 = arith.constant dense<0.000000e+00> : vector<8xf32>
    %48 = vector.multi_reduction <add>, %47, %cst_9 [1] : vector<8x32xf32> to vector<8xf32>
    %49 = vector.shape_cast %48 : vector<8xf32> to vector<8x1xf32>
    %cst_10 = arith.constant 3.200000e+01 : f32
    %50 = vector.broadcast %cst_10 : f32 to vector<8x1xf32>
    %51 = arith.divf %49, %50 : vector<8x1xf32>
    %52 = vector.broadcast %51 : vector<8x1xf32> to vector<8x32xf32>
    %53 = arith.subf %47, %52 : vector<8x32xf32>
    %54 = arith.mulf %53, %53 : vector<8x32xf32>
    %cst_11 = arith.constant dense<0.000000e+00> : vector<8xf32>
    %55 = vector.multi_reduction <add>, %54, %cst_11 [1] : vector<8x32xf32> to vector<8xf32>
    %56 = vector.shape_cast %55 : vector<8xf32> to vector<8x1xf32>
    %cst_12 = arith.constant 3.200000e+01 : f32
    %57 = vector.broadcast %cst_12 : f32 to vector<8x1xf32>
    %58 = arith.divf %56, %57 : vector<8x1xf32>
    %cst_13 = arith.constant 9.99999974E-6 : f32
    %59 = vector.broadcast %cst_13 : f32 to vector<8x1xf32>
    %60 = arith.addf %58, %59 : vector<8x1xf32>
    %61 = math.rsqrt %60 : vector<8x1xf32>
    %62 = vector.broadcast %61 : vector<8x1xf32> to vector<8x32xf32>
    %63 = arith.mulf %53, %62 : vector<8x32xf32>
    %c0_14 = arith.constant 0 : index
    %c0_15 = arith.constant 0 : index
    %64 = vector.load %arg5[%c0_14, %c0_15] : memref<1x32xf32, #tpu.memory_space<vmem>>, vector<1x32xf32>
    %65 = vector.broadcast %64 : vector<1x32xf32> to vector<8x32xf32>
    %66 = arith.mulf %63, %65 : vector<8x32xf32>
    %c0_16 = arith.constant 0 : index
    %c0_17 = arith.constant 0 : index
    %67 = vector.load %arg6[%c0_16, %c0_17] : memref<1x32xf32, #tpu.memory_space<vmem>>, vector<1x32xf32>
    %68 = vector.broadcast %67 : vector<1x32xf32> to vector<8x32xf32>
    %69 = arith.addf %66, %68 : vector<8x32xf32>
    %cst_18 = arith.constant 0.000000e+00 : f32
    %70 = vector.broadcast %cst_18 : f32 to vector<8x32xf32>
    %71 = arith.maximumf %69, %70 : vector<8x32xf32>
    %c0_19 = arith.constant 0 : index
    %c0_20 = arith.constant 0 : index
    %72 = vector.load %arg7[%c0_19, %c0_20] : memref<32x192xbf16, #tpu.memory_space<vmem>>, vector<32x192xbf16>
    %73 = arith.extf %72 : vector<32x192xbf16> to vector<32x192xf32>
    %cst_21 = arith.constant dense<0.000000e+00> : vector<8x192xf32>
    %74 = tpu.matmul %36, %73, %cst_21 {dimension_numbers = #tpu.dot_dimension_numbers<[1], [0], [0], [1], [0, 0, 1, 1], [], []>} : vector<8x32xf32>, vector<32x192xf32>, vector<8x192xf32> -> vector<8x192xf32>
    %c0_22 = arith.constant 0 : index
    %c0_23 = arith.constant 0 : index
    %75 = vector.load %arg8[%c0_22, %c0_23] : memref<1x192xf32, #tpu.memory_space<vmem>>, vector<1x192xf32>
    %76 = vector.broadcast %75 : vector<1x192xf32> to vector<8x192xf32>
    %77 = arith.addf %74, %76 : vector<8x192xf32>
    %c0_24 = arith.constant 0 : index
    %c0_25 = arith.constant 0 : index
    %78 = vector.load %arg9[%c0_24, %c0_25] : memref<3x192xf32, #tpu.memory_space<vmem>>, vector<3x192xf32>
    %cst_26 = arith.constant dense<0.000000e+00> : vector<8x192xf32>
    %79 = tpu.matmul %42, %78, %cst_26 {dimension_numbers = #tpu.dot_dimension_numbers<[1], [0], [0], [1], [0, 0, 1, 1], [], []>} : vector<8x3xf32>, vector<3x192xf32>, vector<8x192xf32> -> vector<8x192xf32>
    %80 = arith.mulf %77, %79 : vector<8x192xf32>
    %c0_27 = arith.constant 0 : index
    %c0_28 = arith.constant 0 : index
    %81 = vector.load %arg10[%c0_27, %c0_28] : memref<192x32xbf16, #tpu.memory_space<vmem>>, vector<192x32xbf16>
    %82 = arith.extf %81 : vector<192x32xbf16> to vector<192x32xf32>
    %cst_29 = arith.constant dense<0.000000e+00> : vector<8x32xf32>
    %83 = tpu.matmul %80, %82, %cst_29 {dimension_numbers = #tpu.dot_dimension_numbers<[1], [0], [0], [1], [0, 0, 1, 1], [], []>} : vector<8x192xf32>, vector<192x32xf32>, vector<8x32xf32> -> vector<8x32xf32>
    %c0_30 = arith.constant 0 : index
    %c0_31 = arith.constant 0 : index
    %84 = vector.load %arg11[%c0_30, %c0_31] : memref<1x32xf32, #tpu.memory_space<vmem>>, vector<1x32xf32>
    %85 = vector.broadcast %84 : vector<1x32xf32> to vector<8x32xf32>
    %86 = arith.addf %83, %85 : vector<8x32xf32>
    %cst_32 = arith.constant dense<0.000000e+00> : vector<8xf32>
    %87 = vector.multi_reduction <add>, %86, %cst_32 [1] : vector<8x32xf32> to vector<8xf32>
    %88 = vector.shape_cast %87 : vector<8xf32> to vector<8x1xf32>
    %cst_33 = arith.constant 3.200000e+01 : f32
    %89 = vector.broadcast %cst_33 : f32 to vector<8x1xf32>
    %90 = arith.divf %88, %89 : vector<8x1xf32>
    %91 = vector.broadcast %90 : vector<8x1xf32> to vector<8x32xf32>
    %92 = arith.subf %86, %91 : vector<8x32xf32>
    %93 = arith.mulf %92, %92 : vector<8x32xf32>
    %cst_34 = arith.constant dense<0.000000e+00> : vector<8xf32>
    %94 = vector.multi_reduction <add>, %93, %cst_34 [1] : vector<8x32xf32> to vector<8xf32>
    %95 = vector.shape_cast %94 : vector<8xf32> to vector<8x1xf32>
    %cst_35 = arith.constant 3.200000e+01 : f32
    %96 = vector.broadcast %cst_35 : f32 to vector<8x1xf32>
    %97 = arith.divf %95, %96 : vector<8x1xf32>
    %cst_36 = arith.constant 9.99999974E-6 : f32
    %98 = vector.broadcast %cst_36 : f32 to vector<8x1xf32>
    %99 = arith.addf %97, %98 : vector<8x1xf32>
    %100 = math.rsqrt %99 : vector<8x1xf32>
    %101 = vector.broadcast %100 : vector<8x1xf32> to vector<8x32xf32>
    %102 = arith.mulf %92, %101 : vector<8x32xf32>
    %c0_37 = arith.constant 0 : index
    %c0_38 = arith.constant 0 : index
    %103 = vector.load %arg12[%c0_37, %c0_38] : memref<1x32xf32, #tpu.memory_space<vmem>>, vector<1x32xf32>
    %104 = vector.broadcast %103 : vector<1x32xf32> to vector<8x32xf32>
    %105 = arith.mulf %102, %104 : vector<8x32xf32>
    %c0_39 = arith.constant 0 : index
    %c0_40 = arith.constant 0 : index
    %106 = vector.load %arg13[%c0_39, %c0_40] : memref<1x32xf32, #tpu.memory_space<vmem>>, vector<1x32xf32>
    %107 = vector.broadcast %106 : vector<1x32xf32> to vector<8x32xf32>
    %108 = arith.addf %105, %107 : vector<8x32xf32>
    %cst_41 = arith.constant 0.000000e+00 : f32
    %109 = vector.broadcast %cst_41 : f32 to vector<8x32xf32>
    %110 = arith.maximumf %108, %109 : vector<8x32xf32>
    %111 = arith.addf %110, %71 : vector<8x32xf32>
    %c0_42 = arith.constant 0 : index
    %c0_43 = arith.constant 0 : index
    %112 = vector.load %arg14[%c0_42, %c0_43] : memref<32x256xbf16, #tpu.memory_space<vmem>>, vector<32x256xbf16>
    %113 = arith.extf %112 : vector<32x256xbf16> to vector<32x256xf32>
    %cst_44 = arith.constant dense<0.000000e+00> : vector<8x256xf32>
    %114 = tpu.matmul %111, %113, %cst_44 {dimension_numbers = #tpu.dot_dimension_numbers<[1], [0], [0], [1], [0, 0, 1, 1], [], []>} : vector<8x32xf32>, vector<32x256xf32>, vector<8x256xf32> -> vector<8x256xf32>
    %c0_45 = arith.constant 0 : index
    %c0_46 = arith.constant 0 : index
    %115 = vector.load %arg15[%c0_45, %c0_46] : memref<1x256xf32, #tpu.memory_space<vmem>>, vector<1x256xf32>
    %116 = vector.broadcast %115 : vector<1x256xf32> to vector<8x256xf32>
    %117 = arith.addf %114, %116 : vector<8x256xf32>
    %118 = arith.mulf %117, %117 : vector<8x256xf32>
    %119 = tpu.concatenate %117, %118 in 0 : vector<8x256xf32>, vector<8x256xf32> -> vector<16x256xf32>
    %c0_47 = arith.constant 0 : index
    %c0_48 = arith.constant 0 : index
    %120 = vector.load %arg18[%c0_47, %c0_48] : memref<256x256xbf16, #tpu.memory_space<vmem>>, vector<256x256xbf16>
    %121 = arith.extf %120 : vector<256x256xbf16> to vector<256x256xf32>
    %cst_49 = arith.constant dense<0.000000e+00> : vector<16x256xf32>
    %122 = tpu.matmul %119, %121, %cst_49 {dimension_numbers = #tpu.dot_dimension_numbers<[1], [0], [0], [1], [0, 0, 1, 1], [], []>} : vector<16x256xf32>, vector<256x256xf32>, vector<16x256xf32> -> vector<16x256xf32>
    %123 = vector.extract_strided_slice %122 {offsets = [0, 0], sizes = [8, 256], strides = [1, 1]} : vector<16x256xf32> to vector<8x256xf32>
    %124 = vector.extract_strided_slice %122 {offsets = [8, 0], sizes = [8, 256], strides = [1, 1]} : vector<16x256xf32> to vector<8x256xf32>
    %125 = arith.mulf %123, %123 : vector<8x256xf32>
    %126 = arith.subf %124, %125 : vector<8x256xf32>
    %cst_50 = arith.constant 0.000000e+00 : f32
    %127 = vector.broadcast %cst_50 : f32 to vector<8x256xf32>
    %128 = arith.maximumf %126, %127 : vector<8x256xf32>
    %129 = arith.subf %117, %123 : vector<8x256xf32>
    %cst_51 = arith.constant 9.99999974E-6 : f32
    %130 = vector.broadcast %cst_51 : f32 to vector<8x256xf32>
    %131 = arith.addf %128, %130 : vector<8x256xf32>
    %132 = math.rsqrt %131 : vector<8x256xf32>
    %133 = arith.mulf %129, %132 : vector<8x256xf32>
    %c0_52 = arith.constant 0 : index
    %c0_53 = arith.constant 0 : index
    %134 = vector.load %arg16[%c0_52, %c0_53] : memref<1x256xf32, #tpu.memory_space<vmem>>, vector<1x256xf32>
    %135 = vector.broadcast %134 : vector<1x256xf32> to vector<8x256xf32>
    %136 = arith.mulf %133, %135 : vector<8x256xf32>
    %c0_54 = arith.constant 0 : index
    %c0_55 = arith.constant 0 : index
    %137 = vector.load %arg17[%c0_54, %c0_55] : memref<1x256xf32, #tpu.memory_space<vmem>>, vector<1x256xf32>
    %138 = vector.broadcast %137 : vector<1x256xf32> to vector<8x256xf32>
    %139 = arith.addf %136, %138 : vector<8x256xf32>
    %cst_56 = arith.constant 0.000000e+00 : f32
    %140 = vector.broadcast %cst_56 : f32 to vector<8x256xf32>
    %141 = arith.maximumf %139, %140 : vector<8x256xf32>
    %c0_57 = arith.constant 0 : index
    %c0_58 = arith.constant 0 : index
    %142 = vector.load %arg19[%c0_57, %c0_58] : memref<256x128xbf16, #tpu.memory_space<vmem>>, vector<256x128xbf16>
    %143 = arith.extf %142 : vector<256x128xbf16> to vector<256x128xf32>
    %cst_59 = arith.constant dense<0.000000e+00> : vector<8x128xf32>
    %144 = tpu.matmul %141, %143, %cst_59 {dimension_numbers = #tpu.dot_dimension_numbers<[1], [0], [0], [1], [0, 0, 1, 1], [], []>} : vector<8x256xf32>, vector<256x128xf32>, vector<8x128xf32> -> vector<8x128xf32>
    %c0_60 = arith.constant 0 : index
    %c0_61 = arith.constant 0 : index
    %145 = vector.load %arg20[%c0_60, %c0_61] : memref<1x128xf32, #tpu.memory_space<vmem>>, vector<1x128xf32>
    %146 = vector.broadcast %145 : vector<1x128xf32> to vector<8x128xf32>
    %147 = arith.addf %144, %146 : vector<8x128xf32>
    %148 = arith.mulf %147, %147 : vector<8x128xf32>
    %149 = tpu.concatenate %147, %148 in 0 : vector<8x128xf32>, vector<8x128xf32> -> vector<16x128xf32>
    %c0_62 = arith.constant 0 : index
    %c0_63 = arith.constant 0 : index
    %150 = vector.load %arg23[%c0_62, %c0_63] : memref<128x128xbf16, #tpu.memory_space<vmem>>, vector<128x128xbf16>
    %151 = arith.extf %150 : vector<128x128xbf16> to vector<128x128xf32>
    %cst_64 = arith.constant dense<0.000000e+00> : vector<16x128xf32>
    %152 = tpu.matmul %149, %151, %cst_64 {dimension_numbers = #tpu.dot_dimension_numbers<[1], [0], [0], [1], [0, 0, 1, 1], [], []>} : vector<16x128xf32>, vector<128x128xf32>, vector<16x128xf32> -> vector<16x128xf32>
    %153 = vector.extract_strided_slice %152 {offsets = [0, 0], sizes = [8, 128], strides = [1, 1]} : vector<16x128xf32> to vector<8x128xf32>
    %154 = vector.extract_strided_slice %152 {offsets = [8, 0], sizes = [8, 128], strides = [1, 1]} : vector<16x128xf32> to vector<8x128xf32>
    %155 = arith.mulf %153, %153 : vector<8x128xf32>
    %156 = arith.subf %154, %155 : vector<8x128xf32>
    %cst_65 = arith.constant 0.000000e+00 : f32
    %157 = vector.broadcast %cst_65 : f32 to vector<8x128xf32>
    %158 = arith.maximumf %156, %157 : vector<8x128xf32>
    %159 = arith.subf %147, %153 : vector<8x128xf32>
    %cst_66 = arith.constant 9.99999974E-6 : f32
    %160 = vector.broadcast %cst_66 : f32 to vector<8x128xf32>
    %161 = arith.addf %158, %160 : vector<8x128xf32>
    %162 = math.rsqrt %161 : vector<8x128xf32>
    %163 = arith.mulf %159, %162 : vector<8x128xf32>
    %c0_67 = arith.constant 0 : index
    %c0_68 = arith.constant 0 : index
    %164 = vector.load %arg21[%c0_67, %c0_68] : memref<1x128xf32, #tpu.memory_space<vmem>>, vector<1x128xf32>
    %165 = vector.broadcast %164 : vector<1x128xf32> to vector<8x128xf32>
    %166 = arith.mulf %163, %165 : vector<8x128xf32>
    %c0_69 = arith.constant 0 : index
    %c0_70 = arith.constant 0 : index
    %167 = vector.load %arg22[%c0_69, %c0_70] : memref<1x128xf32, #tpu.memory_space<vmem>>, vector<1x128xf32>
    %168 = vector.broadcast %167 : vector<1x128xf32> to vector<8x128xf32>
    %169 = arith.addf %166, %168 : vector<8x128xf32>
    %cst_71 = arith.constant 0.000000e+00 : f32
    %170 = vector.broadcast %cst_71 : f32 to vector<8x128xf32>
    %171 = arith.maximumf %169, %170 : vector<8x128xf32>
    %c0_72 = arith.constant 0 : index
    %c0_73 = arith.constant 0 : index
    %172 = vector.load %arg24[%c0_72, %c0_73] : memref<32x3xf32, #tpu.memory_space<vmem>>, vector<32x3xf32>
    %cst_74 = arith.constant dense<0.000000e+00> : vector<8x3xf32>
    %173 = tpu.matmul %111, %172, %cst_74 {dimension_numbers = #tpu.dot_dimension_numbers<[1], [0], [0], [1], [0, 0, 1, 1], [], []>} : vector<8x32xf32>, vector<32x3xf32>, vector<8x3xf32> -> vector<8x3xf32>
    %c0_75 = arith.constant 0 : index
    %c0_76 = arith.constant 0 : index
    %174 = vector.load %arg25[%c0_75, %c0_76] : memref<1x3xf32, #tpu.memory_space<vmem>>, vector<1x3xf32>
    %175 = vector.broadcast %174 : vector<1x3xf32> to vector<8x3xf32>
    %176 = arith.addf %173, %175 : vector<8x3xf32>
    %cst_77 = arith.constant dense<0xFF800000> : vector<8xf32>
    %177 = vector.multi_reduction <maximumf>, %176, %cst_77 [1] : vector<8x3xf32> to vector<8xf32>
    %178 = vector.shape_cast %177 : vector<8xf32> to vector<8x1xf32>
    %179 = vector.broadcast %178 : vector<8x1xf32> to vector<8x3xf32>
    %180 = arith.subf %176, %179 : vector<8x3xf32>
    %181 = math.exp %180 : vector<8x3xf32>
    %cst_78 = arith.constant dense<0.000000e+00> : vector<8xf32>
    %182 = vector.multi_reduction <add>, %181, %cst_78 [1] : vector<8x3xf32> to vector<8xf32>
    %183 = vector.shape_cast %182 : vector<8xf32> to vector<8x1xf32>
    %184 = vector.broadcast %183 : vector<8x1xf32> to vector<8x3xf32>
    %185 = arith.divf %181, %184 : vector<8x3xf32>
    %c0_79 = arith.constant 0 : index
    %c0_80 = arith.constant 0 : index
    %186 = vector.load %arg26[%c0_79, %c0_80] : memref<3x128xf32, #tpu.memory_space<vmem>>, vector<3x128xf32>
    %cst_81 = arith.constant dense<0.000000e+00> : vector<8x128xf32>
    %187 = tpu.matmul %185, %186, %cst_81 {dimension_numbers = #tpu.dot_dimension_numbers<[1], [0], [0], [1], [0, 0, 1, 1], [], []>} : vector<8x3xf32>, vector<3x128xf32>, vector<8x128xf32> -> vector<8x128xf32>
    %188 = arith.mulf %187, %171 : vector<8x128xf32>
    %c0_82 = arith.constant 0 : index
    %c0_83 = arith.constant 0 : index
    %189 = vector.load %arg27[%c0_82, %c0_83] : memref<128x96xbf16, #tpu.memory_space<vmem>>, vector<128x96xbf16>
    %190 = arith.extf %189 : vector<128x96xbf16> to vector<128x96xf32>
    %cst_84 = arith.constant dense<0.000000e+00> : vector<8x96xf32>
    %191 = tpu.matmul %188, %190, %cst_84 {dimension_numbers = #tpu.dot_dimension_numbers<[1], [0], [0], [1], [0, 0, 1, 1], [], []>} : vector<8x128xf32>, vector<128x96xf32>, vector<8x96xf32> -> vector<8x96xf32>
    %c0_85 = arith.constant 0 : index
    %c0_86 = arith.constant 0 : index
    %192 = vector.load %arg28[%c0_85, %c0_86] : memref<128x96xbf16, #tpu.memory_space<vmem>>, vector<128x96xbf16>
    %193 = arith.extf %192 : vector<128x96xbf16> to vector<128x96xf32>
    %cst_87 = arith.constant dense<0.000000e+00> : vector<8x96xf32>
    %194 = tpu.matmul %171, %193, %cst_87 {dimension_numbers = #tpu.dot_dimension_numbers<[1], [0], [0], [1], [0, 0, 1, 1], [], []>} : vector<8x128xf32>, vector<128x96xf32>, vector<8x96xf32> -> vector<8x96xf32>
    %195 = arith.addf %191, %194 : vector<8x96xf32>
    %c0_88 = arith.constant 0 : index
    %c0_89 = arith.constant 0 : index
    %196 = vector.load %arg29[%c0_88, %c0_89] : memref<1x96xf32, #tpu.memory_space<vmem>>, vector<1x96xf32>
    %197 = vector.broadcast %196 : vector<1x96xf32> to vector<8x96xf32>
    %198 = arith.addf %195, %197 : vector<8x96xf32>
    %cst_90 = arith.constant 0.000000e+00 : f32
    %199 = vector.broadcast %cst_90 : f32 to vector<8x96xf32>
    %200 = arith.maximumf %198, %199 : vector<8x96xf32>
    %c0_91 = arith.constant 0 : index
    %c0_92 = arith.constant 0 : index
    %201 = vector.load %arg30[%c0_91, %c0_92] : memref<96x6xf32, #tpu.memory_space<vmem>>, vector<96x6xf32>
    %cst_93 = arith.constant dense<0.000000e+00> : vector<8x6xf32>
    %202 = tpu.matmul %200, %201, %cst_93 {dimension_numbers = #tpu.dot_dimension_numbers<[1], [0], [0], [1], [0, 0, 1, 1], [], []>} : vector<8x96xf32>, vector<96x6xf32>, vector<8x6xf32> -> vector<8x6xf32>
    %c0_94 = arith.constant 0 : index
    %c0_95 = arith.constant 0 : index
    %203 = vector.load %arg31[%c0_94, %c0_95] : memref<1x6xf32, #tpu.memory_space<vmem>>, vector<1x6xf32>
    %204 = vector.broadcast %203 : vector<1x6xf32> to vector<8x6xf32>
    %205 = arith.addf %202, %204 : vector<8x6xf32>
    %206 = arith.negf %205 : vector<8x6xf32>
    %207 = math.exp %206 : vector<8x6xf32>
    %cst_96 = arith.constant 1.000000e+00 : f32
    %208 = vector.broadcast %cst_96 : f32 to vector<8x6xf32>
    %209 = arith.addf %208, %207 : vector<8x6xf32>
    %210 = arith.divf %208, %209 : vector<8x6xf32>
    %c0_97 = arith.constant 0 : index
    %c0_98 = arith.constant 0 : index
    %211 = vector.load %arg32[%c0_97, %c0_98] : memref<3x6xf32, #tpu.memory_space<vmem>>, vector<3x6xf32>
    %cst_99 = arith.constant dense<0.000000e+00> : vector<8x6xf32>
    %212 = tpu.matmul %42, %211, %cst_99 {dimension_numbers = #tpu.dot_dimension_numbers<[1], [0], [0], [1], [0, 0, 1, 1], [], []>} : vector<8x3xf32>, vector<3x6xf32>, vector<8x6xf32> -> vector<8x6xf32>
    %213 = arith.mulf %210, %212 : vector<8x6xf32>
    %c0_100 = arith.constant 0 : index
    %c0_101 = arith.constant 0 : index
    %214 = vector.load %arg33[%c0_100, %c0_101] : memref<6x2xf32, #tpu.memory_space<vmem>>, vector<6x2xf32>
    %cst_102 = arith.constant dense<0.000000e+00> : vector<8x2xf32>
    %215 = tpu.matmul %213, %214, %cst_102 {dimension_numbers = #tpu.dot_dimension_numbers<[1], [0], [0], [1], [0, 0, 1, 1], [], []>} : vector<8x6xf32>, vector<6x2xf32>, vector<8x2xf32> -> vector<8x2xf32>
    %c0_103 = arith.constant 0 : index
    %c0_104 = arith.constant 0 : index
    %216 = vector.load %arg34[%c0_103, %c0_104] : memref<8x2xf32, #tpu.memory_space<vmem>>, vector<8x2xf32>
    tpu.vector_store %arg34[%c0_103, %c0_104], %215 {strides = array<i32>} : memref<8x2xf32, #tpu.memory_space<vmem>>, vector<8x2xf32>,
    return
  }
  func.func @transform_0(%arg0: i32) -> (i32, i32) {
    %c0_i32 = arith.constant 0 : i32
    %c0_i32_0 = arith.constant 0 : i32
    return %arg0, %c0_i32 : i32, i32
  }
  func.func @transform_1(%arg0: i32) -> (i32, i32) {
    %c0_i32 = arith.constant 0 : i32
    %c0_i32_0 = arith.constant 0 : i32
    %c0_i32_1 = arith.constant 0 : i32
    return %c0_i32, %c0_i32_0 : i32, i32
  }
  func.func @transform_2(%arg0: i32) -> (i32, i32) {
    %c0_i32 = arith.constant 0 : i32
    %c0_i32_0 = arith.constant 0 : i32
    %c0_i32_1 = arith.constant 0 : i32
    return %c0_i32, %c0_i32_0 : i32, i32
  }
  func.func @transform_3(%arg0: i32) -> (i32, i32) {
    %c0_i32 = arith.constant 0 : i32
    %c0_i32_0 = arith.constant 0 : i32
    %c0_i32_1 = arith.constant 0 : i32
    return %c0_i32, %c0_i32_0 : i32, i32
  }
  func.func @transform_4(%arg0: i32) -> (i32, i32) {
    %c0_i32 = arith.constant 0 : i32
    %c0_i32_0 = arith.constant 0 : i32
    %c0_i32_1 = arith.constant 0 : i32
    return %c0_i32, %c0_i32_0 : i32, i32
  }
  func.func @transform_5(%arg0: i32) -> (i32, i32) {
    %c0_i32 = arith.constant 0 : i32
    %c0_i32_0 = arith.constant 0 : i32
    %c0_i32_1 = arith.constant 0 : i32
    return %c0_i32, %c0_i32_0 : i32, i32
  }
  func.func @transform_6(%arg0: i32) -> (i32, i32) {
    %c0_i32 = arith.constant 0 : i32
    %c0_i32_0 = arith.constant 0 : i32
    %c0_i32_1 = arith.constant 0 : i32
    return %c0_i32, %c0_i32_0 : i32, i32
  }
  func.func @transform_7(%arg0: i32) -> (i32, i32) {
    %c0_i32 = arith.constant 0 : i32
    %c0_i32_0 = arith.constant 0 : i32
    %c0_i32_1 = arith.constant 0 : i32
    return %c0_i32, %c0_i32_0 : i32, i32
  }
  func.func @transform_8(%arg0: i32) -> (i32, i32) {
    %c0_i32 = arith.constant 0 : i32
    %c0_i32_0 = arith.constant 0 : i32
    %c0_i32_1 = arith.constant 0 : i32
    return %c0_i32, %c0_i32_0 : i32, i32
  }
  func.func @transform_9(%arg0: i32) -> (i32, i32) {
    %c0_i32 = arith.constant 0 : i32
    %c0_i32_0 = arith.constant 0 : i32
    %c0_i32_1 = arith.constant 0 : i32
    return %c0_i32, %c0_i32_0 : i32, i32
  }
  func.func @transform_10(%arg0: i32) -> (i32, i32) {
    %c0_i32 = arith.constant 0 : i32
    %c0_i32_0 = arith.constant 0 : i32
    %c0_i32_1 = arith.constant 0 : i32
    return %c0_i32, %c0_i32_0 : i32, i32
  }
  func.func @transform_11(%arg0: i32) -> (i32, i32) {
    %c0_i32 = arith.constant 0 : i32
    %c0_i32_0 = arith.constant 0 : i32
    %c0_i32_1 = arith.constant 0 : i32
    return %c0_i32, %c0_i32_0 : i32, i32
  }
  func.func @transform_12(%arg0: i32) -> (i32, i32) {
    %c0_i32 = arith.constant 0 : i32
    %c0_i32_0 = arith.constant 0 : i32
    %c0_i32_1 = arith.constant 0 : i32
    return %c0_i32, %c0_i32_0 : i32, i32
  }
  func.func @transform_13(%arg0: i32) -> (i32, i32) {
    %c0_i32 = arith.constant 0 : i32
    %c0_i32_0 = arith.constant 0 : i32
    %c0_i32_1 = arith.constant 0 : i32
    return %c0_i32, %c0_i32_0 : i32, i32
  }
  func.func @transform_14(%arg0: i32) -> (i32, i32) {
    %c0_i32 = arith.constant 0 : i32
    %c0_i32_0 = arith.constant 0 : i32
    %c0_i32_1 = arith.constant 0 : i32
    return %c0_i32, %c0_i32_0 : i32, i32
  }
  func.func @transform_15(%arg0: i32) -> (i32, i32) {
    %c0_i32 = arith.constant 0 : i32
    %c0_i32_0 = arith.constant 0 : i32
    %c0_i32_1 = arith.constant 0 : i32
    return %c0_i32, %c0_i32_0 : i32, i32
  }
  func.func @transform_16(%arg0: i32) -> (i32, i32) {
    %c0_i32 = arith.constant 0 : i32
    %c0_i32_0 = arith.constant 0 : i32
    %c0_i32_1 = arith.constant 0 : i32
    return %c0_i32, %c0_i32_0 : i32, i32
  }
  func.func @transform_17(%arg0: i32) -> (i32, i32) {
    %c0_i32 = arith.constant 0 : i32
    %c0_i32_0 = arith.constant 0 : i32
    %c0_i32_1 = arith.constant 0 : i32
    return %c0_i32, %c0_i32_0 : i32, i32
  }
  func.func @transform_18(%arg0: i32) -> (i32, i32) {
    %c0_i32 = arith.constant 0 : i32
    %c0_i32_0 = arith.constant 0 : i32
    %c0_i32_1 = arith.constant 0 : i32
    return %c0_i32, %c0_i32_0 : i32, i32
  }
  func.func @transform_19(%arg0: i32) -> (i32, i32) {
    %c0_i32 = arith.constant 0 : i32
    %c0_i32_0 = arith.constant 0 : i32
    %c0_i32_1 = arith.constant 0 : i32
    return %c0_i32, %c0_i32_0 : i32, i32
  }
  func.func @transform_20(%arg0: i32) -> (i32, i32) {
    %c0_i32 = arith.constant 0 : i32
    %c0_i32_0 = arith.constant 0 : i32
    %c0_i32_1 = arith.constant 0 : i32
    return %c0_i32, %c0_i32_0 : i32, i32
  }
  func.func @transform_21(%arg0: i32) -> (i32, i32) {
    %c0_i32 = arith.constant 0 : i32
    %c0_i32_0 = arith.constant 0 : i32
    %c0_i32_1 = arith.constant 0 : i32
    return %c0_i32, %c0_i32_0 : i32, i32
  }
  func.func @transform_22(%arg0: i32) -> (i32, i32) {
    %c0_i32 = arith.constant 0 : i32
    %c0_i32_0 = arith.constant 0 : i32
    %c0_i32_1 = arith.constant 0 : i32
    return %c0_i32, %c0_i32_0 : i32, i32
  }
  func.func @transform_23(%arg0: i32) -> (i32, i32) {
    %c0_i32 = arith.constant 0 : i32
    %c0_i32_0 = arith.constant 0 : i32
    %c0_i32_1 = arith.constant 0 : i32
    return %c0_i32, %c0_i32_0 : i32, i32
  }
  func.func @transform_24(%arg0: i32) -> (i32, i32) {
    %c0_i32 = arith.constant 0 : i32
    %c0_i32_0 = arith.constant 0 : i32
    %c0_i32_1 = arith.constant 0 : i32
    return %c0_i32, %c0_i32_0 : i32, i32
  }
  func.func @transform_25(%arg0: i32) -> (i32, i32) {
    %c0_i32 = arith.constant 0 : i32
    %c0_i32_0 = arith.constant 0 : i32
    %c0_i32_1 = arith.constant 0 : i32
    return %c0_i32, %c0_i32_0 : i32, i32
  }
  func.func @transform_26(%arg0: i32) -> (i32, i32) {
    %c0_i32 = arith.constant 0 : i32
    %c0_i32_0 = arith.constant 0 : i32
    %c0_i32_1 = arith.constant 0 : i32
    return %c0_i32, %c0_i32_0 : i32, i32
  }
  func.func @transform_27(%arg0: i32) -> (i32, i32) {
    %c0_i32 = arith.constant 0 : i32
    %c0_i32_0 = arith.constant 0 : i32
    %c0_i32_1 = arith.constant 0 : i32
    return %c0_i32, %c0_i32_0 : i32, i32
  }
  func.func @transform_28(%arg0: i32) -> (i32, i32) {
    %c0_i32 = arith.constant 0 : i32
    %c0_i32_0 = arith.constant 0 : i32
    %c0_i32_1 = arith.constant 0 : i32
    return %c0_i32, %c0_i32_0 : i32, i32
  }
  func.func @transform_29(%arg0: i32) -> (i32, i32) {
    %c0_i32 = arith.constant 0 : i32
    %c0_i32_0 = arith.constant 0 : i32
    %c0_i32_1 = arith.constant 0 : i32
    return %c0_i32, %c0_i32_0 : i32, i32
  }
  func.func @transform_30(%arg0: i32) -> (i32, i32) {
    %c0_i32 = arith.constant 0 : i32
    %c0_i32_0 = arith.constant 0 : i32
    %c0_i32_1 = arith.constant 0 : i32
    return %c0_i32, %c0_i32_0 : i32, i32
  }
  func.func @transform_31(%arg0: i32) -> (i32, i32) {
    %c0_i32 = arith.constant 0 : i32
    %c0_i32_0 = arith.constant 0 : i32
    %c0_i32_1 = arith.constant 0 : i32
    return %c0_i32, %c0_i32_0 : i32, i32
  }
  func.func @transform_32(%arg0: i32) -> (i32, i32) {
    %c0_i32 = arith.constant 0 : i32
    %c0_i32_0 = arith.constant 0 : i32
    %c0_i32_1 = arith.constant 0 : i32
    return %c0_i32, %c0_i32_0 : i32, i32
  }
  func.func @transform_33(%arg0: i32) -> (i32, i32) {
    %c0_i32 = arith.constant 0 : i32
    %c0_i32_0 = arith.constant 0 : i32
    return %arg0, %c0_i32 : i32, i32
  }
}

</mosaic_0001>

<llo_original>
// kernel: forward.1
$region0: #{forward.1}
  #allocation0 [shape = 'u32[]', space=smem, size = 0x4, offset = 0x4, fixed_abs, tag = 'smem constant byte address 0x4 - core index']
  #allocation1 [shape = 'u32[144,128]{1,0:T(1,128)}', space=vmem, size = 0x12000, scoped, tag = 'internal scratch']
  %s0 = inlined_call_operand.smem [shape: u32[34], index: -1, kind: input, shape index: {}]
  %s1 = sld [smem:[%s0]]
  %s2 = scalar_lea.smem %s0, 1
  %s3 = sld [smem:[%s2]]
  %s4 = scalar_lea.smem %s0, 2
  %s5 = sld [smem:[%s4]]
  %s6 = scalar_lea.smem %s0, 3
  %s7 = sld [smem:[%s6]]
  %s8 = scalar_lea.smem %s0, 4
  %s9 = sld [smem:[%s8]]
  %s10 = scalar_lea.smem %s0, 5
  %s11 = sld [smem:[%s10]]
  %s12 = scalar_lea.smem %s0, 6
  %s13 = sld [smem:[%s12]]
  %s14 = scalar_lea.smem %s0, 7
  %s15 = sld [smem:[%s14]]
  %s16 = scalar_lea.smem %s0, 8
  %s17 = sld [smem:[%s16]]
  %s18 = scalar_lea.smem %s0, 9
  %s19 = sld [smem:[%s18]]
  %s20 = scalar_lea.smem %s0, 10
  %s21 = sld [smem:[%s20]]
  %s22 = scalar_lea.smem %s0, 11
  %s23 = sld [smem:[%s22]]
  %s24 = scalar_lea.smem %s0, 12
  %s25 = sld [smem:[%s24]]
  %s26 = scalar_lea.smem %s0, 13
  %s27 = sld [smem:[%s26]]
  %s28 = scalar_lea.smem %s0, 14
  %s29 = sld [smem:[%s28]]
  %s30 = scalar_lea.smem %s0, 15
  %s31 = sld [smem:[%s30]]
  %s32 = scalar_lea.smem %s0, 16
  %s33 = sld [smem:[%s32]]
  %s34 = scalar_lea.smem %s0, 17
  %s35 = sld [smem:[%s34]]
  %s36 = scalar_lea.smem %s0, 18
  %s37 = sld [smem:[%s36]]
  %s38 = scalar_lea.smem %s0, 19
  %s39 = sld [smem:[%s38]]
  %s40 = scalar_lea.smem %s0, 20
  %s41 = sld [smem:[%s40]]
  %s42 = scalar_lea.smem %s0, 21
  %s43 = sld [smem:[%s42]]
  %s44 = scalar_lea.smem %s0, 22
  %s45 = sld [smem:[%s44]]
  %s46 = scalar_lea.smem %s0, 23
  %s47 = sld [smem:[%s46]]
  %s48 = scalar_lea.smem %s0, 24
  %s49 = sld [smem:[%s48]]
  %s50 = scalar_lea.smem %s0, 25
  %s51 = sld [smem:[%s50]]
  %s52 = scalar_lea.smem %s0, 26
  %s53 = sld [smem:[%s52]]
  %s54 = scalar_lea.smem %s0, 27
  %s55 = sld [smem:[%s54]]
  %s56 = scalar_lea.smem %s0, 28
  %s57 = sld [smem:[%s56]]
  %s58 = scalar_lea.smem %s0, 29
  %s59 = sld [smem:[%s58]]
  %s60 = scalar_lea.smem %s0, 30
  %s61 = sld [smem:[%s60]]
  %s62 = scalar_lea.smem %s0, 31
  %s63 = sld [smem:[%s62]]
  %s64 = scalar_lea.smem %s0, 32
  %s65 = sld [smem:[%s64]]
  %s66 = scalar_lea.smem %s0, 33
  %s67 = sld [smem:[%s66]]
  %s68 = sld [smem:[#allocation0]]
  $region210: #{forward.1} parent=0
    _
  %s70 = ssub.s32 1, %s68
  %s71 = scalar_select 0, %s70, %s68
  $region1: #{forward.1} parent=0
    #allocation2 [shape = 'u8[512]{0}', space=vmem, size = 0x400, scoped, tag = 'input window, operand 3, single buffered']
    #allocation3 [shape = 's32[1]{0}', space=sflag, size = 0x4, scoped, tag = 'scoped memory for forward.1']
    #allocation4 [shape = 'u8[512]{0}', space=vmem, size = 0x400, scoped, tag = 'input window, operand 4, single buffered']
    #allocation5 [shape = 's32[1]{0}', space=sflag, size = 0x4, scoped, tag = 'scoped memory for forward.1']
    #allocation6 [shape = 'u8[512]{0}', space=vmem, size = 0x400, scoped, tag = 'input window, operand 5, single buffered']
    #allocation7 [shape = 'u8[16384]{0}', space=vmem, size = 0x4000, scoped, tag = 'input window, operand 6, single buffered']
    #allocation8 [shape = 's32[1]{0}', space=sflag, size = 0x4, scoped, tag = 'scoped memory for forward.1']
    #allocation9 [shape = 'u8[512]{0}', space=vmem, size = 0x400, scoped, tag = 'input window, operand 10, single buffered']
    #allocation10 [shape = 'u8[512]{0}', space=vmem, size = 0x400, scoped, tag = 'input window, operand 11, single buffered']
    #allocation11 [shape = 's32[1]{0}', space=sflag, size = 0x4, scoped, tag = 'scoped memory for forward.1']
    #allocation12 [shape = 'u8[512]{0}', space=vmem, size = 0x400, scoped, tag = 'input window, operand 12, single buffered']
    #allocation13 [shape = 'u8[16384]{0}', space=vmem, size = 0x4000, scoped, tag = 'input window, operand 13, single buffered']
    #allocation14 [shape = 's32[1]{0}', space=sflag, size = 0x4, scoped, tag = 'scoped memory for forward.1']
    #allocation15 [shape = 'u8[1024]{0}', space=vmem, size = 0x400, scoped, tag = 'input window, operand 14, single buffered']
    #allocation16 [shape = 'u8[1024]{0}', space=vmem, size = 0x400, scoped, tag = 'input window, operand 15, single buffered']
    #allocation17 [shape = 's32[1]{0}', space=sflag, size = 0x4, scoped, tag = 'scoped memory for forward.1']
    #allocation18 [shape = 'u8[1024]{0}', space=vmem, size = 0x400, scoped, tag = 'input window, operand 16, single buffered']
    #allocation19 [shape = 'u8[512]{0}', space=vmem, size = 0x400, scoped, tag = 'input window, operand 19, single buffered']
    #allocation20 [shape = 's32[1]{0}', space=sflag, size = 0x4, scoped, tag = 'scoped memory for forward.1']
    #allocation21 [shape = 'u8[512]{0}', space=vmem, size = 0x400, scoped, tag = 'input window, operand 20, single buffered']
    #allocation22 [shape = 'u8[512]{0}', space=vmem, size = 0x400, scoped, tag = 'input window, operand 21, single buffered']
    #allocation23 [shape = 's32[1]{0}', space=sflag, size = 0x4, scoped, tag = 'scoped memory for forward.1']
    #allocation24 [shape = 'u8[512]{0}', space=vmem, size = 0x400, scoped, tag = 'input window, operand 24, single buffered']
    #allocation25 [shape = 'u8[2048]{0}', space=vmem, size = 0x800, scoped, tag = 'input window, operand 25, single buffered']
    #allocation26 [shape = 's32[1]{0}', space=sflag, size = 0x4, scoped, tag = 'scoped memory for forward.1']
    #allocation27 [shape = 'u8[2048]{0}', space=vmem, size = 0x800, scoped, tag = 'input window, operand 31, single buffered']
    %72 = vsyncpa [#allocation3], 0
    %73 = vsyncpa [#allocation5], 0
    %74 = vsyncpa [#allocation8], 0
    %75 = vsyncpa [#allocation11], 0
    %76 = vsyncpa [#allocation14], 0
    %77 = vsyncpa [#allocation17], 0
    %78 = vsyncpa [#allocation20], 0
    %79 = vsyncpa [#allocation23], 0
    %80 = vsyncpa [#allocation26], 0
    // Predicated region
    $region2: #{forward.1} parent=1 // pred_check
      _
    $region3: #{forward.1} parent=1 // pred_check_branch
      %82 = sbr.rel (0) target = $region5
    $region4: #{forward.1} parent=1 // pred_region
      _
    $region5: #{forward.1} parent=1 // pred_fallthru
      _
    // Predicated region
    $region6: #{forward.1} parent=1 // pred_check
      _
    $region7: #{forward.1} parent=1 // pred_check_branch
      %84 = sbr.rel (0) target = $region9
    $region8: #{forward.1} parent=1 // pred_region
      _
    $region9: #{forward.1} parent=1 // pred_fallthru
      _
    // Predicated region
    $region10: #{forward.1} parent=1 // pred_check
      _
    $region11: #{forward.1} parent=1 // pred_check_branch
      %86 = sbr.rel (0) target = $region13
    $region12: #{forward.1} parent=1 // pred_region
      _
    $region13: #{forward.1} parent=1 // pred_fallthru
      _
    // Predicated region
    $region14: #{forward.1} parent=1 // pred_check
      _
    $region15: #{forward.1} parent=1 // pred_check_branch
      %88 = sbr.rel (0) target = $region17
    $region16: #{forward.1} parent=1 // pred_region
      %s90 = ssub.s32 16, 16
      %91 = vsyncadd [#allocation3], %s90
      %s93 = sshll.u32 [#allocation2], 4
      %s94 = int_to_ptr.vmem [resolvable:$true] %s93
      %96 = dma.hbm_to_vmem [thread:$0]  %s7, 16, %s94, [#allocation3]
    $region17: #{forward.1} parent=1 // pred_fallthru
      _
    // Predicated region
    $region18: #{forward.1} parent=1 // pred_check
      _
    $region19: #{forward.1} parent=1 // pred_check_branch
      %98 = sbr.rel (0) target = $region21
    $region20: #{forward.1} parent=1 // pred_region
      %s100 = ssub.s32 16, 16
      %101 = vsyncadd [#allocation5], %s100
      %s103 = sshll.u32 [#allocation4], 4
      %s104 = int_to_ptr.vmem [resolvable:$true] %s103
      %106 = dma.hbm_to_vmem [thread:$0]  %s9, 16, %s104, [#allocation5]
    $region21: #{forward.1} parent=1 // pred_fallthru
      _
    // Predicated region
    $region22: #{forward.1} parent=1 // pred_check
      _
    $region23: #{forward.1} parent=1 // pred_check_branch
      %108 = sbr.rel (0) target = $region25
    $region24: #{forward.1} parent=1 // pred_region
      %s110 = ssub.s32 16, 16
      %111 = vsyncadd [#allocation5], %s110
      %s113 = sshll.u32 [#allocation6], 4
      %s114 = int_to_ptr.vmem [resolvable:$true] %s113
      %116 = dma.hbm_to_vmem [thread:$0]  %s11, 16, %s114, [#allocation5]
    $region25: #{forward.1} parent=1 // pred_fallthru
      _
    // Predicated region
    $region26: #{forward.1} parent=1 // pred_check
      _
    $region27: #{forward.1} parent=1 // pred_check_branch
      %118 = sbr.rel (0) target = $region29
    $region28: #{forward.1} parent=1 // pred_region
      %s120 = ssub.s32 512, 512
      %121 = vsyncadd [#allocation8], %s120
      %s122 = sshll.u32 [#allocation7], 4
      %s123 = int_to_ptr.vmem [resolvable:$true] %s122
      %128 = dma.hbm_to_vmem [thread:$0]  %s13, 512, %s123, [#allocation8], 128, 128, 8
    $region29: #{forward.1} parent=1 // pred_fallthru
      _
    // Predicated region
    $region30: #{forward.1} parent=1 // pred_check
      _
    $region31: #{forward.1} parent=1 // pred_check_branch
      %130 = sbr.rel (0) target = $region33
    $region32: #{forward.1} parent=1 // pred_region
      _
    $region33: #{forward.1} parent=1 // pred_fallthru
      _
    // Predicated region
    $region34: #{forward.1} parent=1 // pred_check
      _
    $region35: #{forward.1} parent=1 // pred_check_branch
      %132 = sbr.rel (0) target = $region37
    $region36: #{forward.1} parent=1 // pred_region
      _
    $region37: #{forward.1} parent=1 // pred_fallthru
      _
    // Predicated region
    $region38: #{forward.1} parent=1 // pred_check
      _
    $region39: #{forward.1} parent=1 // pred_check_branch
      %134 = sbr.rel (0) target = $region41
    $region40: #{forward.1} parent=1 // pred_region
      _
    $region41: #{forward.1} parent=1 // pred_fallthru
      _
    // Predicated region
    $region42: #{forward.1} parent=1 // pred_check
      _
    $region43: #{forward.1} parent=1 // pred_check_branch
      %136 = sbr.rel (0) target = $region45
    $region44: #{forward.1} parent=1 // pred_region
      %s138 = ssub.s32 16, 16
      %139 = vsyncadd [#allocation8], %s138
      %s141 = sshll.u32 [#allocation9], 4
      %s142 = int_to_ptr.vmem [resolvable:$true] %s141
      %144 = dma.hbm_to_vmem [thread:$0]  %s21, 16, %s142, [#allocation8]
    $region45: #{forward.1} parent=1 // pred_fallthru
      _
    // Predicated region
    $region46: #{forward.1} parent=1 // pred_check
      _
    $region47: #{forward.1} parent=1 // pred_check_branch
      %146 = sbr.rel (0) target = $region49
    $region48: #{forward.1} parent=1 // pred_region
      %s148 = ssub.s32 16, 16
      %149 = vsyncadd [#allocation11], %s148
      %s151 = sshll.u32 [#allocation10], 4
      %s152 = int_to_ptr.vmem [resolvable:$true] %s151
      %154 = dma.hbm_to_vmem [thread:$0]  %s23, 16, %s152, [#allocation11]
    $region49: #{forward.1} parent=1 // pred_fallthru
      _
    // Predicated region
    $region50: #{forward.1} parent=1 // pred_check
      _
    $region51: #{forward.1} parent=1 // pred_check_branch
      %156 = sbr.rel (0) target = $region53
    $region52: #{forward.1} parent=1 // pred_region
      %s158 = ssub.s32 16, 16
      %159 = vsyncadd [#allocation11], %s158
      %s161 = sshll.u32 [#allocation12], 4
      %s162 = int_to_ptr.vmem [resolvable:$true] %s161
      %164 = dma.hbm_to_vmem [thread:$0]  %s25, 16, %s162, [#allocation11]
    $region53: #{forward.1} parent=1 // pred_fallthru
      _
    // Predicated region
    $region54: #{forward.1} parent=1 // pred_check
      _
    $region55: #{forward.1} parent=1 // pred_check_branch
      %166 = sbr.rel (0) target = $region57
    $region56: #{forward.1} parent=1 // pred_region
      %s168 = ssub.s32 512, 512
      %169 = vsyncadd [#allocation14], %s168
      %s170 = sshll.u32 [#allocation13], 4
      %s171 = int_to_ptr.vmem [resolvable:$true] %s170
      %176 = dma.hbm_to_vmem [thread:$0]  %s27, 512, %s171, [#allocation14], 128, 128, 8
    $region57: #{forward.1} parent=1 // pred_fallthru
      _
    // Predicated region
    $region58: #{forward.1} parent=1 // pred_check
      _
    $region59: #{forward.1} parent=1 // pred_check_branch
      %178 = sbr.rel (0) target = $region61
    $region60: #{forward.1} parent=1 // pred_region
      %s180 = ssub.s32 32, 32
      %181 = vsyncadd [#allocation14], %s180
      %s183 = sshll.u32 [#allocation15], 4
      %s184 = int_to_ptr.vmem [resolvable:$true] %s183
      %186 = dma.hbm_to_vmem [thread:$0]  %s29, 32, %s184, [#allocation14]
    $region61: #{forward.1} parent=1 // pred_fallthru
      _
    // Predicated region
    $region62: #{forward.1} parent=1 // pred_check
      _
    $region63: #{forward.1} parent=1 // pred_check_branch
      %188 = sbr.rel (0) target = $region65
    $region64: #{forward.1} parent=1 // pred_region
      %s190 = ssub.s32 32, 32
      %191 = vsyncadd [#allocation17], %s190
      %s193 = sshll.u32 [#allocation16], 4
      %s194 = int_to_ptr.vmem [resolvable:$true] %s193
      %196 = dma.hbm_to_vmem [thread:$0]  %s31, 32, %s194, [#allocation17]
    $region65: #{forward.1} parent=1 // pred_fallthru
      _
    // Predicated region
    $region66: #{forward.1} parent=1 // pred_check
      _
    $region67: #{forward.1} parent=1 // pred_check_branch
      %198 = sbr.rel (0) target = $region69
    $region68: #{forward.1} parent=1 // pred_region
      %s200 = ssub.s32 32, 32
      %201 = vsyncadd [#allocation17], %s200
      %s203 = sshll.u32 [#allocation18], 4
      %s204 = int_to_ptr.vmem [resolvable:$true] %s203
      %206 = dma.hbm_to_vmem [thread:$0]  %s33, 32, %s204, [#allocation17]
    $region69: #{forward.1} parent=1 // pred_fallthru
      _
    // Predicated region
    $region70: #{forward.1} parent=1 // pred_check
      _
    $region71: #{forward.1} parent=1 // pred_check_branch
      %208 = sbr.rel (0) target = $region73
    $region72: #{forward.1} parent=1 // pred_region
      _
    $region73: #{forward.1} parent=1 // pred_fallthru
      _
    // Predicated region
    $region74: #{forward.1} parent=1 // pred_check
      _
    $region75: #{forward.1} parent=1 // pred_check_branch
      %210 = sbr.rel (0) target = $region77
    $region76: #{forward.1} parent=1 // pred_region
      _
    $region77: #{forward.1} parent=1 // pred_fallthru
      _
    // Predicated region
    $region78: #{forward.1} parent=1 // pred_check
      _
    $region79: #{forward.1} parent=1 // pred_check_branch
      %212 = sbr.rel (0) target = $region81
    $region80: #{forward.1} parent=1 // pred_region
      %s214 = ssub.s32 16, 16
      %215 = vsyncadd [#allocation20], %s214
      %s217 = sshll.u32 [#allocation19], 4
      %s218 = int_to_ptr.vmem [resolvable:$true] %s217
      %220 = dma.hbm_to_vmem [thread:$0]  %s39, 16, %s218, [#allocation20]
    $region81: #{forward.1} parent=1 // pred_fallthru
      _
    // Predicated region
    $region82: #{forward.1} parent=1 // pred_check
      _
    $region83: #{forward.1} parent=1 // pred_check_branch
      %222 = sbr.rel (0) target = $region85
    $region84: #{forward.1} parent=1 // pred_region
      %s224 = ssub.s32 16, 16
      %225 = vsyncadd [#allocation20], %s224
      %s227 = sshll.u32 [#allocation21], 4
      %s228 = int_to_ptr.vmem [resolvable:$true] %s227
      %230 = dma.hbm_to_vmem [thread:$0]  %s41, 16, %s228, [#allocation20]
    $region85: #{forward.1} parent=1 // pred_fallthru
      _
    // Predicated region
    $region86: #{forward.1} parent=1 // pred_check
      _
    $region87: #{forward.1} parent=1 // pred_check_branch
      %232 = sbr.rel (0) target = $region89
    $region88: #{forward.1} parent=1 // pred_region
      %s234 = ssub.s32 16, 16
      %235 = vsyncadd [#allocation23], %s234
      %s237 = sshll.u32 [#allocation22], 4
      %s238 = int_to_ptr.vmem [resolvable:$true] %s237
      %240 = dma.hbm_to_vmem [thread:$0]  %s43, 16, %s238, [#allocation23]
    $region89: #{forward.1} parent=1 // pred_fallthru
      _
    // Predicated region
    $region90: #{forward.1} parent=1 // pred_check
      _
    $region91: #{forward.1} parent=1 // pred_check_branch
      %242 = sbr.rel (0) target = $region93
    $region92: #{forward.1} parent=1 // pred_region
      _
    $region93: #{forward.1} parent=1 // pred_fallthru
      _
    // Predicated region
    $region94: #{forward.1} parent=1 // pred_check
      _
    $region95: #{forward.1} parent=1 // pred_check_branch
      %244 = sbr.rel (0) target = $region97
    $region96: #{forward.1} parent=1 // pred_region
      _
    $region97: #{forward.1} parent=1 // pred_fallthru
      _
    // Predicated region
    $region98: #{forward.1} parent=1 // pred_check
      _
    $region99: #{forward.1} parent=1 // pred_check_branch
      %246 = sbr.rel (0) target = $region101
    $region100: #{forward.1} parent=1 // pred_region
      %s248 = ssub.s32 16, 16
      %249 = vsyncadd [#allocation23], %s248
      %s251 = sshll.u32 [#allocation24], 4
      %s252 = int_to_ptr.vmem [resolvable:$true] %s251
      %254 = dma.hbm_to_vmem [thread:$0]  %s49, 16, %s252, [#allocation23]
    $region101: #{forward.1} parent=1 // pred_fallthru
      _
    // Predicated region
    $region102: #{forward.1} parent=1 // pred_check
      _
    $region103: #{forward.1} parent=1 // pred_check_branch
      %256 = sbr.rel (0) target = $region105
    $region104: #{forward.1} parent=1 // pred_region
      %s258 = ssub.s32 64, 64
      %259 = vsyncadd [#allocation26], %s258
      %s261 = sshll.u32 [#allocation25], 4
      %s262 = int_to_ptr.vmem [resolvable:$true] %s261
      %264 = dma.hbm_to_vmem [thread:$0]  %s51, 64, %s262, [#allocation26]
    $region105: #{forward.1} parent=1 // pred_fallthru
      _
    // Predicated region
    $region106: #{forward.1} parent=1 // pred_check
      _
    $region107: #{forward.1} parent=1 // pred_check_branch
      %266 = sbr.rel (0) target = $region109
    $region108: #{forward.1} parent=1 // pred_region
      _
    $region109: #{forward.1} parent=1 // pred_fallthru
      _
    // Predicated region
    $region110: #{forward.1} parent=1 // pred_check
      _
    $region111: #{forward.1} parent=1 // pred_check_branch
      %268 = sbr.rel (0) target = $region113
    $region112: #{forward.1} parent=1 // pred_region
      _
    $region113: #{forward.1} parent=1 // pred_fallthru
      _
    // Predicated region
    $region114: #{forward.1} parent=1 // pred_check
      _
    $region115: #{forward.1} parent=1 // pred_check_branch
      %270 = sbr.rel (0) target = $region117
    $region116: #{forward.1} parent=1 // pred_region
      _
    $region117: #{forward.1} parent=1 // pred_fallthru
      _
    // Predicated region
    $region118: #{forward.1} parent=1 // pred_check
      _
    $region119: #{forward.1} parent=1 // pred_check_branch
      %272 = sbr.rel (0) target = $region121
    $region120: #{forward.1} parent=1 // pred_region
      _
    $region121: #{forward.1} parent=1 // pred_fallthru
      _
    // Predicated region
    $region122: #{forward.1} parent=1 // pred_check
      _
    $region123: #{forward.1} parent=1 // pred_check_branch
      %274 = sbr.rel (0) target = $region125
    $region124: #{forward.1} parent=1 // pred_region
      _
    $region125: #{forward.1} parent=1 // pred_fallthru
      _
    // Predicated region
    $region126: #{forward.1} parent=1 // pred_check
      _
    $region127: #{forward.1} parent=1 // pred_check_branch
      %276 = sbr.rel (0) target = $region129
    $region128: #{forward.1} parent=1 // pred_region
      %s278 = ssub.s32 64, 64
      %279 = vsyncadd [#allocation26], %s278
      %s281 = sshll.u32 [#allocation27], 4
      %s282 = int_to_ptr.vmem [resolvable:$true] %s281
      %284 = dma.hbm_to_vmem [thread:$0]  %s63, 64, %s282, [#allocation26]
    $region129: #{forward.1} parent=1 // pred_fallthru
      _
    // Predicated region
    $region130: #{forward.1} parent=1 // pred_check
      _
    $region131: #{forward.1} parent=1 // pred_check_branch
      %286 = sbr.rel (0) target = $region133
    $region132: #{forward.1} parent=1 // pred_region
      _
    $region133: #{forward.1} parent=1 // pred_fallthru
      _
    // Predicated region
    $region134: #{forward.1} parent=1 // pred_check
      _
    $region135: #{forward.1} parent=1 // pred_check_branch
      %288 = sbr.rel (0) target = $region137
    $region136: #{forward.1} parent=1 // pred_region
      %289 = dma.done [#allocation3], 16
    $region137: #{forward.1} parent=1 // pred_fallthru
      _
    // Predicated region
    $region138: #{forward.1} parent=1 // pred_check
      _
    $region139: #{forward.1} parent=1 // pred_check_branch
      %291 = sbr.rel (0) target = $region141
    $region140: #{forward.1} parent=1 // pred_region
      %292 = dma.done [#allocation5], 16
    $region141: #{forward.1} parent=1 // pred_fallthru
      _
    // Predicated region
    $region142: #{forward.1} parent=1 // pred_check
      _
    $region143: #{forward.1} parent=1 // pred_check_branch
      %294 = sbr.rel (0) target = $region145
    $region144: #{forward.1} parent=1 // pred_region
      %295 = dma.done [#allocation5], 16
    $region145: #{forward.1} parent=1 // pred_fallthru
      _
    // Predicated region
    $region146: #{forward.1} parent=1 // pred_check
      _
    $region147: #{forward.1} parent=1 // pred_check_branch
      %297 = sbr.rel (0) target = $region149
    $region148: #{forward.1} parent=1 // pred_region
      %298 = dma.done [#allocation8], 512
    $region149: #{forward.1} parent=1 // pred_fallthru
      _
    // Predicated region
    $region150: #{forward.1} parent=1 // pred_check
      _
    $region151: #{forward.1} parent=1 // pred_check_branch
      %300 = sbr.rel (0) target = $region153
    $region152: #{forward.1} parent=1 // pred_region
      %301 = dma.done [#allocation8], 16
    $region153: #{forward.1} parent=1 // pred_fallthru
      _
    // Predicated region
    $region154: #{forward.1} parent=1 // pred_check
      _
    $region155: #{forward.1} parent=1 // pred_check_branch
      %303 = sbr.rel (0) target = $region157
    $region156: #{forward.1} parent=1 // pred_region
      %304 = dma.done [#allocation11], 16
    $region157: #{forward.1} parent=1 // pred_fallthru
      _
    // Predicated region
    $region158: #{forward.1} parent=1 // pred_check
      _
    $region159: #{forward.1} parent=1 // pred_check_branch
      %306 = sbr.rel (0) target = $region161
    $region160: #{forward.1} parent=1 // pred_region
      %307 = dma.done [#allocation11], 16
    $region161: #{forward.1} parent=1 // pred_fallthru
      _
    // Predicated region
    $region162: #{forward.1} parent=1 // pred_check
      _
    $region163: #{forward.1} parent=1 // pred_check_branch
      %309 = sbr.rel (0) target = $region165
    $region164: #{forward.1} parent=1 // pred_region
      %310 = dma.done [#allocation14], 512
    $region165: #{forward.1} parent=1 // pred_fallthru
      _
    // Predicated region
    $region166: #{forward.1} parent=1 // pred_check
      _
    $region167: #{forward.1} parent=1 // pred_check_branch
      %312 = sbr.rel (0) target = $region169
    $region168: #{forward.1} parent=1 // pred_region
      %313 = dma.done [#allocation14], 32
    $region169: #{forward.1} parent=1 // pred_fallthru
      _
    // Predicated region
    $region170: #{forward.1} parent=1 // pred_check
      _
    $region171: #{forward.1} parent=1 // pred_check_branch
      %315 = sbr.rel (0) target = $region173
    $region172: #{forward.1} parent=1 // pred_region
      %316 = dma.done [#allocation17], 32
    $region173: #{forward.1} parent=1 // pred_fallthru
      _
    // Predicated region
    $region174: #{forward.1} parent=1 // pred_check
      _
    $region175: #{forward.1} parent=1 // pred_check_branch
      %318 = sbr.rel (0) target = $region177
    $region176: #{forward.1} parent=1 // pred_region
      %319 = dma.done [#allocation17], 32
    $region177: #{forward.1} parent=1 // pred_fallthru
      _
    // Predicated region
    $region178: #{forward.1} parent=1 // pred_check
      _
    $region179: #{forward.1} parent=1 // pred_check_branch
      %321 = sbr.rel (0) target = $region181
    $region180: #{forward.1} parent=1 // pred_region
      %322 = dma.done [#allocation20], 16
    $region181: #{forward.1} parent=1 // pred_fallthru
      _
    // Predicated region
    $region182: #{forward.1} parent=1 // pred_check
      _
    $region183: #{forward.1} parent=1 // pred_check_branch
      %324 = sbr.rel (0) target = $region185
    $region184: #{forward.1} parent=1 // pred_region
      %325 = dma.done [#allocation20], 16
    $region185: #{forward.1} parent=1 // pred_fallthru
      _
    // Predicated region
    $region186: #{forward.1} parent=1 // pred_check
      _
    $region187: #{forward.1} parent=1 // pred_check_branch
      %327 = sbr.rel (0) target = $region189
    $region188: #{forward.1} parent=1 // pred_region
      %328 = dma.done [#allocation23], 16
    $region189: #{forward.1} parent=1 // pred_fallthru
      _
    // Predicated region
    $region190: #{forward.1} parent=1 // pred_check
      _
    $region191: #{forward.1} parent=1 // pred_check_branch
      %330 = sbr.rel (0) target = $region193
    $region192: #{forward.1} parent=1 // pred_region
      %331 = dma.done [#allocation23], 16
    $region193: #{forward.1} parent=1 // pred_fallthru
      _
    // Predicated region
    $region194: #{forward.1} parent=1 // pred_check
      _
    $region195: #{forward.1} parent=1 // pred_check_branch
      %333 = sbr.rel (0) target = $region197
    $region196: #{forward.1} parent=1 // pred_region
      %334 = dma.done [#allocation26], 64
    $region197: #{forward.1} parent=1 // pred_fallthru
      _
    // Predicated region
    $region198: #{forward.1} parent=1 // pred_check
      _
    $region199: #{forward.1} parent=1 // pred_check_branch
      %336 = sbr.rel (0) target = $region201
    $region200: #{forward.1} parent=1 // pred_region
      %337 = dma.done [#allocation26], 64
    $region201: #{forward.1} parent=1 // pred_fallthru
      _
    %v338 = vld [vmem:[%s1] sm:$0xff]
    %v339 = vlaneseq
    %v340 = vand.u32 %v339, 127
    %341 = vset.pattern.permute.xlu0 0
    %342 = vperm.xlu0 %341, %v338
    %v343 = vpop.permute.xlu0 %342
    %vm344 = vcmp.eq.s32.totalorder %v340, %v343
    %v345 = vsel %vm344, 1, 0
    %v346 = vcvt.s32.f32 %v345
    %v347 = vadd.f32 %v346, 0.0
    %v348 = vadd.s32 %v338, 10
    %349 = vset.pattern.permute.xlu0 1
    %350 = vperm.xlu0 %349, %v348
    %v351 = vpop.permute.xlu0 %350
    %vm352 = vcmp.eq.s32.totalorder %v340, %v351
    %v353 = vsel %vm352, 1, 0
    %v354 = vcvt.s32.f32 %v353
    %v355 = vadd.f32 %v347, %v354
    %v356 = vadd.s32 %v338, 20
    %357 = vset.pattern.permute.xlu0 2
    %358 = vperm.xlu0 %357, %v356
    %v359 = vpop.permute.xlu0 %358
    %vm360 = vcmp.eq.s32.totalorder %v340, %v359
    %v361 = vsel %vm360, 1, 0
    %v362 = vcvt.s32.f32 %v361
    %v363 = vadd.f32 %v355, %v362
    %v364 = vadd.s32 %v338, 30
    %365 = vset.pattern.permute.xlu0 3
    %366 = vperm.xlu0 %365, %v364
    %v367 = vpop.permute.xlu0 %366
    %vm368 = vcmp.eq.s32.totalorder %v340, %v367
    %v369 = vsel %vm368, 1, 0
    %v370 = vcvt.s32.f32 %v369
    %v371 = vadd.f32 %v363, %v370
    %v372 = vld [vmem:[%s3] sm:$0xff]
    %v373 = vld [vmem:[%s3 + $0x8] sm:$0xff]
    %v374 = vld [vmem:[%s3 + $0x10] sm:$0xff]
    %v375 = vld [vmem:[%s3 + $0x18] sm:$0xff]
    %v376 = vld [vmem:[%s3 + $0x20] sm:$0xff]
    %vm377 = vcmask 326656
    %v379 = vsel %vm377, %v371, 0
    %381 = vmatprep.subr.mxu0 0.0
    %382 = vmatpush1.msra.mxu0 0.0
    %383 = vmatprep.subr.mxu0 0.0
    %384 = vmatpush1.msra.mxu0 0.0
    %385 = vmatprep.subr.mxu0 0.0
    %386 = vmatpush1.msra.mxu0 0.0
    %387 = vmatprep.subr.mxu0 0.0
    %388 = vmatpush1.msra.mxu0 0.0
    %389 = vmatprep.subr.mxu0 0.0
    %390 = vmatpush1.msra.mxu0 0.0
    %391 = vmatprep.subr.mxu0 0.0
    %392 = vmatpush1.msra.mxu0 0.0
    %393 = vmatprep.subr.mxu0 0.0
    %394 = vmatpush1.msra.mxu0 0.0
    %395 = vmatprep.subr.mxu0 0.0
    %396 = vmatpush1.msra.mxu0 0.0
    %397 = vmatprep.subr.mxu0 0.0
    %398 = vmatpush1.msra.mxu0 0.0
    %399 = vmatprep.subr.mxu0 0.0
    %400 = vmatpush1.msra.mxu0 0.0
    %401 = vmatprep.subr.mxu0 0.0
    %402 = vmatpush1.msra.mxu0 0.0
    %403 = vmatprep.subr.mxu0 0.0
    %404 = vmatpush1.msra.mxu0 %v376
    %405 = vmatprep.subr.mxu0 0.0
    %406 = vmatpush1.msra.mxu0 %v375
    %407 = vmatprep.subr.mxu0 0.0
    %408 = vmatpush1.msra.mxu0 %v374
    %409 = vmatprep.subr.mxu0 0.0
    %410 = vmatpush1.msra.mxu0 %v373
    %411 = vmatprep.subr.mxu0 0.0
    %412 = vmatpush1.msra.mxu0 %v372
    %413 = vmatprep.subr.mxu0 0.0
    %414 = vmatpush2.msra.mxu0 0.0
    %415 = vmatprep.subr.mxu0 0.0
    %416 = vmatpush2.msra.mxu0 0.0
    %417 = vmatprep.subr.mxu0 0.0
    %418 = vmatpush2.msra.mxu0 0.0
    %419 = vmatprep.subr.mxu0 0.0
    %420 = vmatpush2.msra.mxu0 0.0
    %421 = vmatprep.subr.mxu0 0.0
    %422 = vmatpush2.msra.mxu0 0.0
    %423 = vmatprep.subr.mxu0 0.0
    %424 = vmatpush2.msra.mxu0 0.0
    %425 = vmatprep.subr.mxu0 0.0
    %426 = vmatpush2.msra.mxu0 0.0
    %427 = vmatprep.subr.mxu0 0.0
    %428 = vmatpush2.msra.mxu0 0.0
    %429 = vmatprep.subr.mxu0 0.0
    %430 = vmatpush2.msra.mxu0 0.0
    %431 = vmatprep.subr.mxu0 0.0
    %432 = vmatpush2.msra.mxu0 0.0
    %433 = vmatprep.subr.mxu0 0.0
    %434 = vmatpush2.msra.mxu0 0.0
    %435 = vmatprep.subr.mxu0 0.0
    %436 = vmatpush2.msra.mxu0 0.0
    %437 = vmatprep.subr.mxu0 0.0
    %438 = vmatpush2.msra.mxu0 0.0
    %439 = vmatprep.subr.mxu0 0.0
    %440 = vmatpush2.msra.mxu0 0.0
    %441 = vmatprep.subr.mxu0 0.0
    %442 = vmatpush2.msra.mxu0 0.0
    %443 = vmatprep.subr.mxu0 0.0
    %444 = vmatpush2.msra.mxu0 0.0
    %445 = vmatprep.mubr.f32.mxu0 0.0
    %446 = vmatmul.mubr.f32.gmra.mxu0 %v379
    %v447 = vpop.f32.mrf.mxu0
    %v448 = vadd.f32 0.0, %v447
    %v449 = vpop.f32.mrf.mxu0
    %450 = vdwg.mxu0
    %451 = vset.pattern.permute.xlu0 3
    %452 = vperm.xlu0 %451, %v338
    %v453 = vpop.permute.xlu0 %452
    %vm454 = vcmp.eq.s32.totalorder %v340, %v453
    %v455 = vsel %vm454, 1, 0
    %v456 = vcvt.s32.f32 %v455
    %v457 = vld [vmem:[%s5] sm:$0xff]
    %v458 = vld [vmem:[%s5 + $0x8] sm:$0xff]
    %v459 = vld [vmem:[%s5 + $0x10] sm:$0xff]
    %v460 = vld [vmem:[%s5 + $0x18] sm:$0xff]
    %v461 = vld [vmem:[#allocation2] sm:$0x1]
    %v463 = vlaneseq
    %v464 = vshrl.u32 %v463, 7
    %v465 = vsub.s32 0, %v464
    %v466 = vrot.slane %v461, %v465
    %vm468 = vcmask 261120
    %v470 = vsel %vm468, %v448, 0
    %472 = vmatprep.subr.mxu0 0.0
    %473 = vmatpush1.msra.mxu0 0.0
    %474 = vmatprep.subr.mxu0 0.0
    %475 = vmatpush1.msra.mxu0 0.0
    %476 = vmatprep.subr.mxu0 0.0
    %477 = vmatpush1.msra.mxu0 0.0
    %478 = vmatprep.subr.mxu0 0.0
    %479 = vmatpush1.msra.mxu0 0.0
    %480 = vmatprep.subr.mxu0 0.0
    %481 = vmatpush1.msra.mxu0 0.0
    %482 = vmatprep.subr.mxu0 0.0
    %483 = vmatpush1.msra.mxu0 0.0
    %484 = vmatprep.subr.mxu0 0.0
    %485 = vmatpush1.msra.mxu0 0.0
    %486 = vmatprep.subr.mxu0 0.0
    %487 = vmatpush1.msra.mxu0 0.0
    %488 = vmatprep.subr.mxu0 0.0
    %489 = vmatpush1.msra.mxu0 0.0
    %490 = vmatprep.subr.mxu0 0.0
    %491 = vmatpush1.msra.mxu0 0.0
    %492 = vmatprep.subr.mxu0 0.0
    %493 = vmatpush1.msra.mxu0 0.0
    %494 = vmatprep.subr.mxu0 0.0
    %495 = vmatpush1.msra.mxu0 0.0
    %496 = vmatprep.subr.mxu0 0.0
    %497 = vmatpush1.msra.mxu0 %v460
    %498 = vmatprep.subr.mxu0 0.0
    %499 = vmatpush1.msra.mxu0 %v459
    %500 = vmatprep.subr.mxu0 0.0
    %501 = vmatpush1.msra.mxu0 %v458
    %502 = vmatprep.subr.mxu0 0.0
    %503 = vmatpush1.msra.mxu0 %v457
    %504 = vmatprep.subr.mxu0 0.0
    %505 = vmatpush2.msra.mxu0 0.0
    %506 = vmatprep.subr.mxu0 0.0
    %507 = vmatpush2.msra.mxu0 0.0
    %508 = vmatprep.subr.mxu0 0.0
    %509 = vmatpush2.msra.mxu0 0.0
    %510 = vmatprep.subr.mxu0 0.0
    %511 = vmatpush2.msra.mxu0 0.0
    %512 = vmatprep.subr.mxu0 0.0
    %513 = vmatpush2.msra.mxu0 0.0
    %514 = vmatprep.subr.mxu0 0.0
    %515 = vmatpush2.msra.mxu0 0.0
    %516 = vmatprep.subr.mxu0 0.0
    %517 = vmatpush2.msra.mxu0 0.0
    %518 = vmatprep.subr.mxu0 0.0
    %519 = vmatpush2.msra.mxu0 0.0
    %520 = vmatprep.subr.mxu0 0.0
    %521 = vmatpush2.msra.mxu0 0.0
    %522 = vmatprep.subr.mxu0 0.0
    %523 = vmatpush2.msra.mxu0 0.0
    %524 = vmatprep.subr.mxu0 0.0
    %525 = vmatpush2.msra.mxu0 0.0
    %526 = vmatprep.subr.mxu0 0.0
    %527 = vmatpush2.msra.mxu0 0.0
    %528 = vmatprep.subr.mxu0 0.0
    %529 = vmatpush2.msra.mxu0 0.0
    %530 = vmatprep.subr.mxu0 0.0
    %531 = vmatpush2.msra.mxu0 0.0
    %532 = vmatprep.subr.mxu0 0.0
    %533 = vmatpush2.msra.mxu0 0.0
    %534 = vmatprep.subr.mxu0 0.0
    %535 = vmatpush2.msra.mxu0 0.0
    %536 = vmatprep.mubr.f32.mxu0 0.0
    %537 = vmatmul.mubr.f32.gmra.mxu0 %v470
    %v538 = vpop.f32.mrf.mxu0
    %v539 = vadd.f32 %v466, %v538
    %v540 = vpop.f32.mrf.mxu0
    %541 = vdwg.mxu0
    %v542 = vsel %vm468, %v539, 0.0
    %543 = vadd.xlane.f32.xlu0 %v542
    %v544 = vpop.xlane.xlu0 %543
    %v545 = vrcp.pop 32.0
    %v546 = vmul.f32 %v544, %v545
    %v547 = vsub.f32 %v539, %v546
    %v548 = vmul.f32 %v547, %v547
    %v549 = vsel %vm468, %v548, 0.0
    %550 = vadd.xlane.f32.xlu0 %v549
    %v551 = vpop.xlane.xlu0 %550
    %v552 = vmul.f32 %v551, %v545
    %v553 = vadd.f32 %v552, 1e-05
    %v554 = vrsqrt.pop %v553
    %v555 = vmul.f32 %v547, %v554
    %v556 = vld [vmem:[#allocation4] sm:$0x1]
    %v558 = vlaneseq
    %v559 = vshrl.u32 %v558, 7
    %v560 = vsub.s32 0, %v559
    %v561 = vrot.slane %v556, %v560
    %v563 = vmul.f32 %v555, %v561
    %v564 = vld [vmem:[#allocation6] sm:$0x1]
    %v566 = vlaneseq
    %v567 = vshrl.u32 %v566, 7
    %v568 = vsub.s32 0, %v567
    %v569 = vrot.slane %v564, %v568
    %v571 = vadd.f32 %v563, %v569
    %v572 = vmax.f32 %v571, 0.0
    %v573 = vld [vmem:[#allocation7] sm:$0xff]
    %v574 = vld [vmem:[#allocation7 + $0x8] sm:$0xff]
    %v575 = vld [vmem:[#allocation7 + $0x10] sm:$0xff]
    %v576 = vld [vmem:[#allocation7 + $0x18] sm:$0xff]
    %v577 = vunpack.c.l.bf16 %v573
    %v578 = vunpack.c.h.bf16 %v573
    %v579 = vunpack.c.l.bf16 %v574
    %v580 = vunpack.c.h.bf16 %v574
    %v581 = vunpack.c.l.bf16 %v575
    %v582 = vunpack.c.h.bf16 %v575
    %v583 = vunpack.c.l.bf16 %v576
    %v584 = vunpack.c.h.bf16 %v576
    %v585 = vld [vmem:[%s15] sm:$0x3]
    %v587 = vlaneseq
    %v588 = vshrl.u32 %v587, 7
    %v589 = vsub.s32 0, %v588
    %v590 = vrot.slane %v585, %v589
    %v591 = vlaneseq
    %v592 = vshrl.u32 %v591, 7
    %v593 = vsub.s32 1, %v592
    %v594 = vrot.slane %v585, %v593
    %597 = vmatprep.subr.mxu0 0.0
    %598 = vmatpush1.msra.mxu0 0.0
    %599 = vmatprep.subr.mxu0 0.0
    %600 = vmatpush1.msra.mxu0 0.0
    %601 = vmatprep.subr.mxu0 0.0
    %602 = vmatpush1.msra.mxu0 0.0
    %603 = vmatprep.subr.mxu0 0.0
    %604 = vmatpush1.msra.mxu0 0.0
    %605 = vmatprep.subr.mxu0 0.0
    %606 = vmatpush1.msra.mxu0 0.0
    %607 = vmatprep.subr.mxu0 0.0
    %608 = vmatpush1.msra.mxu0 0.0
    %609 = vmatprep.subr.mxu0 0.0
    %610 = vmatpush1.msra.mxu0 0.0
    %611 = vmatprep.subr.mxu0 0.0
    %612 = vmatpush1.msra.mxu0 0.0
    %613 = vmatprep.subr.mxu0 0.0
    %614 = vmatpush1.msra.mxu0 0.0
    %615 = vmatprep.subr.mxu0 0.0
    %616 = vmatpush1.msra.mxu0 0.0
    %617 = vmatprep.subr.mxu0 0.0
    %618 = vmatpush1.msra.mxu0 0.0
    %619 = vmatprep.subr.mxu0 0.0
    %620 = vmatpush1.msra.mxu0 0.0
    %621 = vmatprep.subr.mxu0 %v584
    %622 = vmatpush1.msra.mxu0 %v583
    %623 = vmatprep.subr.mxu0 %v582
    %624 = vmatpush1.msra.mxu0 %v581
    %625 = vmatprep.subr.mxu0 %v580
    %626 = vmatpush1.msra.mxu0 %v579
    %627 = vmatprep.subr.mxu0 %v578
    %628 = vmatpush1.msra.mxu0 %v577
    %629 = vmatprep.subr.mxu0 0.0
    %630 = vmatpush2.msra.mxu0 0.0
    %631 = vmatprep.subr.mxu0 0.0
    %632 = vmatpush2.msra.mxu0 0.0
    %633 = vmatprep.subr.mxu0 0.0
    %634 = vmatpush2.msra.mxu0 0.0
    %635 = vmatprep.subr.mxu0 0.0
    %636 = vmatpush2.msra.mxu0 0.0
    %637 = vmatprep.subr.mxu0 0.0
    %638 = vmatpush2.msra.mxu0 0.0
    %639 = vmatprep.subr.mxu0 0.0
    %640 = vmatpush2.msra.mxu0 0.0
    %641 = vmatprep.subr.mxu0 0.0
    %642 = vmatpush2.msra.mxu0 0.0
    %643 = vmatprep.subr.mxu0 0.0
    %644 = vmatpush2.msra.mxu0 0.0
    %645 = vmatprep.subr.mxu0 0.0
    %646 = vmatpush2.msra.mxu0 0.0
    %647 = vmatprep.subr.mxu0 0.0
    %648 = vmatpush2.msra.mxu0 0.0
    %649 = vmatprep.subr.mxu0 0.0
    %650 = vmatpush2.msra.mxu0 0.0
    %651 = vmatprep.subr.mxu0 0.0
    %652 = vmatpush2.msra.mxu0 0.0
    %653 = vmatprep.subr.mxu0 0.0
    %654 = vmatpush2.msra.mxu0 0.0
    %655 = vmatprep.subr.mxu0 0.0
    %656 = vmatpush2.msra.mxu0 0.0
    %657 = vmatprep.subr.mxu0 0.0
    %658 = vmatpush2.msra.mxu0 0.0
    %659 = vmatprep.subr.mxu0 0.0
    %660 = vmatpush2.msra.mxu0 0.0
    %661 = vmatprep.mubr.f32.mxu0 0.0
    %662 = vmatmul.mubr.f32.gmra.mxu0 %v470
    %v663 = vpop.f32.mrf.mxu0
    %v664 = vadd.f32 %v590, %v663
    %v665 = vpop.f32.mrf.mxu0
    %v666 = vadd.f32 %v594, %v665
    %667 = vdwg.mxu0
    %v668 = vld [vmem:[%s17] sm:$0x77]
    %v670 = vcombine.high %v668, %v668
    %vm671 = vcmask 23552
    %v673 = vsel %vm671, %v456, 0
    %vm675 = vcmask 1042432
    %v676 = vsel %vm675, %v668, 0
    %v678 = vsel %vm675, %v670, 0
    %680 = vmatprep.subr.mxu0 0.0
    %681 = vmatpush1.msra.mxu0 0.0
    %682 = vmatprep.subr.mxu0 0.0
    %683 = vmatpush1.msra.mxu0 0.0
    %684 = vmatprep.subr.mxu0 0.0
    %685 = vmatpush1.msra.mxu0 0.0
    %686 = vmatprep.subr.mxu0 0.0
    %687 = vmatpush1.msra.mxu0 0.0
    %688 = vmatprep.subr.mxu0 0.0
    %689 = vmatpush1.msra.mxu0 0.0
    %690 = vmatprep.subr.mxu0 0.0
    %691 = vmatpush1.msra.mxu0 0.0
    %692 = vmatprep.subr.mxu0 0.0
    %693 = vmatpush1.msra.mxu0 0.0
    %694 = vmatprep.subr.mxu0 0.0
    %695 = vmatpush1.msra.mxu0 0.0
    %696 = vmatprep.subr.mxu0 0.0
    %697 = vmatpush1.msra.mxu0 0.0
    %698 = vmatprep.subr.mxu0 0.0
    %699 = vmatpush1.msra.mxu0 0.0
    %700 = vmatprep.subr.mxu0 0.0
    %701 = vmatpush1.msra.mxu0 0.0
    %702 = vmatprep.subr.mxu0 0.0
    %703 = vmatpush1.msra.mxu0 0.0
    %704 = vmatprep.subr.mxu0 0.0
    %705 = vmatpush1.msra.mxu0 0.0
    %706 = vmatprep.subr.mxu0 0.0
    %707 = vmatpush1.msra.mxu0 0.0
    %708 = vmatprep.subr.mxu0 0.0
    %709 = vmatpush1.msra.mxu0 0.0
    %710 = vmatprep.subr.mxu0 %v678
    %711 = vmatpush1.msra.mxu0 %v676
    %712 = vmatprep.subr.mxu0 0.0
    %713 = vmatpush2.msra.mxu0 0.0
    %714 = vmatprep.subr.mxu0 0.0
    %715 = vmatpush2.msra.mxu0 0.0
    %716 = vmatprep.subr.mxu0 0.0
    %717 = vmatpush2.msra.mxu0 0.0
    %718 = vmatprep.subr.mxu0 0.0
    %719 = vmatpush2.msra.mxu0 0.0
    %720 = vmatprep.subr.mxu0 0.0
    %721 = vmatpush2.msra.mxu0 0.0
    %722 = vmatprep.subr.mxu0 0.0
    %723 = vmatpush2.msra.mxu0 0.0
    %724 = vmatprep.subr.mxu0 0.0
    %725 = vmatpush2.msra.mxu0 0.0
    %726 = vmatprep.subr.mxu0 0.0
    %727 = vmatpush2.msra.mxu0 0.0
    %728 = vmatprep.subr.mxu0 0.0
    %729 = vmatpush2.msra.mxu0 0.0
    %730 = vmatprep.subr.mxu0 0.0
    %731 = vmatpush2.msra.mxu0 0.0
    %732 = vmatprep.subr.mxu0 0.0
    %733 = vmatpush2.msra.mxu0 0.0
    %734 = vmatprep.subr.mxu0 0.0
    %735 = vmatpush2.msra.mxu0 0.0
    %736 = vmatprep.subr.mxu0 0.0
    %737 = vmatpush2.msra.mxu0 0.0
    %738 = vmatprep.subr.mxu0 0.0
    %739 = vmatpush2.msra.mxu0 0.0
    %740 = vmatprep.subr.mxu0 0.0
    %741 = vmatpush2.msra.mxu0 0.0
    %742 = vmatprep.subr.mxu0 0.0
    %743 = vmatpush2.msra.mxu0 0.0
    %744 = vmatprep.mubr.f32.mxu0 0.0
    %745 = vmatmul.mubr.f32.gmra.mxu0 %v673
    %v746 = vpop.f32.mrf.mxu0
    %v747 = vadd.f32 0.0, %v746
    %v748 = vpop.f32.mrf.mxu0
    %v749 = vadd.f32 0.0, %v748
    %750 = vdwg.mxu0
    %v751 = vmul.f32 %v664, %v747
    %v752 = vmul.f32 %v666, %v749
    %v753 = vld [vmem:[%s19] sm:$0xf]
    %v754 = vld [vmem:[%s19 + $0x4] sm:$0xf]
    %v755 = vld [vmem:[%s19 + $0x8] sm:$0xf]
    %v756 = vld [vmem:[%s19 + $0xc] sm:$0xf]
    %v757 = vld [vmem:[%s19 + $0x10] sm:$0xf]
    %v758 = vld [vmem:[%s19 + $0x14] sm:$0xf]
    %v759 = vld [vmem:[%s19 + $0x18] sm:$0xf]
    %v760 = vld [vmem:[%s19 + $0x1c] sm:$0xf]
    %v761 = vld [vmem:[%s19 + $0x20] sm:$0xf]
    %v762 = vld [vmem:[%s19 + $0x24] sm:$0xf]
    %v763 = vld [vmem:[%s19 + $0x28] sm:$0xf]
    %v764 = vld [vmem:[%s19 + $0x2c] sm:$0xf]
    %v765 = vld [vmem:[%s19 + $0x30] sm:$0xf]
    %v766 = vld [vmem:[%s19 + $0x34] sm:$0xf]
    %v767 = vld [vmem:[%s19 + $0x38] sm:$0xf]
    %v768 = vld [vmem:[%s19 + $0x3c] sm:$0xf]
    %v769 = vld [vmem:[%s19 + $0x40] sm:$0xf]
    %v770 = vld [vmem:[%s19 + $0x44] sm:$0xf]
    %v771 = vld [vmem:[%s19 + $0x48] sm:$0xf]
    %v772 = vld [vmem:[%s19 + $0x4c] sm:$0xf]
    %v773 = vld [vmem:[%s19 + $0x50] sm:$0xf]
    %v774 = vld [vmem:[%s19 + $0x54] sm:$0xf]
    %v775 = vld [vmem:[%s19 + $0x58] sm:$0xf]
    %v776 = vld [vmem:[%s19 + $0x5c] sm:$0xf]
    %v777 = vunpack.c.l.bf16 %v753
    %v778 = vunpack.c.l.bf16 %v754
    %v779 = vunpack.c.l.bf16 %v755
    %v780 = vunpack.c.l.bf16 %v756
    %v781 = vunpack.c.l.bf16 %v757
    %v782 = vunpack.c.l.bf16 %v758
    %v783 = vunpack.c.l.bf16 %v759
    %v784 = vunpack.c.l.bf16 %v760
    %v785 = vunpack.c.l.bf16 %v761
    %v786 = vunpack.c.l.bf16 %v762
    %v787 = vunpack.c.l.bf16 %v763
    %v788 = vunpack.c.l.bf16 %v764
    %v789 = vunpack.c.l.bf16 %v765
    %v790 = vunpack.c.l.bf16 %v766
    %v791 = vunpack.c.l.bf16 %v767
    %v792 = vunpack.c.l.bf16 %v768
    %v793 = vunpack.c.l.bf16 %v769
    %v794 = vunpack.c.l.bf16 %v770
    %v795 = vunpack.c.l.bf16 %v771
    %v796 = vunpack.c.l.bf16 %v772
    %v797 = vunpack.c.l.bf16 %v773
    %v798 = vunpack.c.l.bf16 %v774
    %v799 = vunpack.c.l.bf16 %v775
    %v800 = vunpack.c.l.bf16 %v776
    %v801 = vld [vmem:[#allocation9] sm:$0x1]
    %v803 = vlaneseq
    %v804 = vshrl.u32 %v803, 7
    %v805 = vsub.s32 0, %v804
    %v806 = vrot.slane %v801, %v805
    %vm808 = vcmask 523264
    %v810 = vsel %vm808, %v752, 0
    %812 = vmatprep.subr.mxu0 0.0
    %813 = vmatpush1.msra.mxu0 %v792
    %814 = vmatprep.subr.mxu0 0.0
    %815 = vmatpush1.msra.mxu0 %v791
    %816 = vmatprep.subr.mxu0 0.0
    %817 = vmatpush1.msra.mxu0 %v790
    %818 = vmatprep.subr.mxu0 0.0
    %819 = vmatpush1.msra.mxu0 %v789
    %820 = vmatprep.subr.mxu0 0.0
    %821 = vmatpush1.msra.mxu0 %v788
    %822 = vmatprep.subr.mxu0 0.0
    %823 = vmatpush1.msra.mxu0 %v787
    %824 = vmatprep.subr.mxu0 0.0
    %825 = vmatpush1.msra.mxu0 %v786
    %826 = vmatprep.subr.mxu0 0.0
    %827 = vmatpush1.msra.mxu0 %v785
    %828 = vmatprep.subr.mxu0 0.0
    %829 = vmatpush1.msra.mxu0 %v784
    %830 = vmatprep.subr.mxu0 0.0
    %831 = vmatpush1.msra.mxu0 %v783
    %832 = vmatprep.subr.mxu0 0.0
    %833 = vmatpush1.msra.mxu0 %v782
    %834 = vmatprep.subr.mxu0 0.0
    %835 = vmatpush1.msra.mxu0 %v781
    %836 = vmatprep.subr.mxu0 0.0
    %837 = vmatpush1.msra.mxu0 %v780
    %838 = vmatprep.subr.mxu0 0.0
    %839 = vmatpush1.msra.mxu0 %v779
    %840 = vmatprep.subr.mxu0 0.0
    %841 = vmatpush1.msra.mxu0 %v778
    %842 = vmatprep.subr.mxu0 0.0
    %843 = vmatpush1.msra.mxu0 %v777
    %844 = vmatprep.subr.mxu0 0.0
    %845 = vmatpush2.msra.mxu0 0.0
    %846 = vmatprep.subr.mxu0 0.0
    %847 = vmatpush2.msra.mxu0 0.0
    %848 = vmatprep.subr.mxu0 0.0
    %849 = vmatpush2.msra.mxu0 0.0
    %850 = vmatprep.subr.mxu0 0.0
    %851 = vmatpush2.msra.mxu0 0.0
    %852 = vmatprep.subr.mxu0 0.0
    %853 = vmatpush2.msra.mxu0 0.0
    %854 = vmatprep.subr.mxu0 0.0
    %855 = vmatpush2.msra.mxu0 0.0
    %856 = vmatprep.subr.mxu0 0.0
    %857 = vmatpush2.msra.mxu0 0.0
    %858 = vmatprep.subr.mxu0 0.0
    %859 = vmatpush2.msra.mxu0 0.0
    %860 = vmatprep.subr.mxu0 0.0
    %861 = vmatpush2.msra.mxu0 %v800
    %862 = vmatprep.subr.mxu0 0.0
    %863 = vmatpush2.msra.mxu0 %v799
    %864 = vmatprep.subr.mxu0 0.0
    %865 = vmatpush2.msra.mxu0 %v798
    %866 = vmatprep.subr.mxu0 0.0
    %867 = vmatpush2.msra.mxu0 %v797
    %868 = vmatprep.subr.mxu0 0.0
    %869 = vmatpush2.msra.mxu0 %v796
    %870 = vmatprep.subr.mxu0 0.0
    %871 = vmatpush2.msra.mxu0 %v795
    %872 = vmatprep.subr.mxu0 0.0
    %873 = vmatpush2.msra.mxu0 %v794
    %874 = vmatprep.subr.mxu0 0.0
    %875 = vmatpush2.msra.mxu0 %v793
    %876 = vmatprep.mubr.f32.mxu0 %v810
    %877 = vmatmul.mubr.f32.gmra.mxu0 %v751
    %v878 = vpop.f32.mrf.mxu0
    %v879 = vadd.f32 %v806, %v878
    %v880 = vpop.f32.mrf.mxu0
    %881 = vdwg.mxu0
    %v882 = vsel %vm468, %v879, 0.0
    %883 = vadd.xlane.f32.xlu0 %v882
    %v884 = vpop.xlane.xlu0 %883
    %v885 = vmul.f32 %v884, %v545
    %v886 = vsub.f32 %v879, %v885
    %v887 = vmul.f32 %v886, %v886
    %v888 = vsel %vm468, %v887, 0.0
    %889 = vadd.xlane.f32.xlu0 %v888
    %v890 = vpop.xlane.xlu0 %889
    %v891 = vmul.f32 %v890, %v545
    %v892 = vadd.f32 %v891, 1e-05
    %v893 = vrsqrt.pop %v892
    %v894 = vmul.f32 %v886, %v893
    %v895 = vld [vmem:[#allocation10] sm:$0x1]
    %v897 = vlaneseq
    %v898 = vshrl.u32 %v897, 7
    %v899 = vsub.s32 0, %v898
    %v900 = vrot.slane %v895, %v899
    %v902 = vmul.f32 %v894, %v900
    %v903 = vld [vmem:[#allocation12] sm:$0x1]
    %v905 = vlaneseq
    %v906 = vshrl.u32 %v905, 7
    %v907 = vsub.s32 0, %v906
    %v908 = vrot.slane %v903, %v907
    %v910 = vadd.f32 %v902, %v908
    %v911 = vmax.f32 %v910, 0.0
    %v912 = vadd.f32 %v911, %v572
    %v913 = vld [vmem:[#allocation13] sm:$0xff]
    %v914 = vld [vmem:[#allocation13 + $0x8] sm:$0xff]
    %v915 = vld [vmem:[#allocation13 + $0x10] sm:$0xff]
    %v916 = vld [vmem:[#allocation13 + $0x18] sm:$0xff]
    %v917 = vunpack.c.l.bf16 %v913
    %v918 = vunpack.c.h.bf16 %v913
    %v919 = vunpack.c.l.bf16 %v914
    %v920 = vunpack.c.h.bf16 %v914
    %v921 = vunpack.c.l.bf16 %v915
    %v922 = vunpack.c.h.bf16 %v915
    %v923 = vunpack.c.l.bf16 %v916
    %v924 = vunpack.c.h.bf16 %v916
    %v925 = vld [vmem:[#allocation15] sm:$0x3]
    %v927 = vlaneseq
    %v928 = vshrl.u32 %v927, 7
    %v929 = vsub.s32 0, %v928
    %v930 = vrot.slane %v925, %v929
    %v931 = vlaneseq
    %v932 = vshrl.u32 %v931, 7
    %v933 = vsub.s32 1, %v932
    %v934 = vrot.slane %v925, %v933
    %v938 = vsel %vm468, %v912, 0
    %940 = vmatprep.subr.mxu0 0.0
    %941 = vmatpush1.msra.mxu0 0.0
    %942 = vmatprep.subr.mxu0 0.0
    %943 = vmatpush1.msra.mxu0 0.0
    %944 = vmatprep.subr.mxu0 0.0
    %945 = vmatpush1.msra.mxu0 0.0
    %946 = vmatprep.subr.mxu0 0.0
    %947 = vmatpush1.msra.mxu0 0.0
    %948 = vmatprep.subr.mxu0 0.0
    %949 = vmatpush1.msra.mxu0 0.0
    %950 = vmatprep.subr.mxu0 0.0
    %951 = vmatpush1.msra.mxu0 0.0
    %952 = vmatprep.subr.mxu0 0.0
    %953 = vmatpush1.msra.mxu0 0.0
    %954 = vmatprep.subr.mxu0 0.0
    %955 = vmatpush1.msra.mxu0 0.0
    %956 = vmatprep.subr.mxu0 0.0
    %957 = vmatpush1.msra.mxu0 0.0
    %958 = vmatprep.subr.mxu0 0.0
    %959 = vmatpush1.msra.mxu0 0.0
    %960 = vmatprep.subr.mxu0 0.0
    %961 = vmatpush1.msra.mxu0 0.0
    %962 = vmatprep.subr.mxu0 0.0
    %963 = vmatpush1.msra.mxu0 0.0
    %964 = vmatprep.subr.mxu0 %v924
    %965 = vmatpush1.msra.mxu0 %v923
    %966 = vmatprep.subr.mxu0 %v922
    %967 = vmatpush1.msra.mxu0 %v921
    %968 = vmatprep.subr.mxu0 %v920
    %969 = vmatpush1.msra.mxu0 %v919
    %970 = vmatprep.subr.mxu0 %v918
    %971 = vmatpush1.msra.mxu0 %v917
    %972 = vmatprep.subr.mxu0 0.0
    %973 = vmatpush2.msra.mxu0 0.0
    %974 = vmatprep.subr.mxu0 0.0
    %975 = vmatpush2.msra.mxu0 0.0
    %976 = vmatprep.subr.mxu0 0.0
    %977 = vmatpush2.msra.mxu0 0.0
    %978 = vmatprep.subr.mxu0 0.0
    %979 = vmatpush2.msra.mxu0 0.0
    %980 = vmatprep.subr.mxu0 0.0
    %981 = vmatpush2.msra.mxu0 0.0
    %982 = vmatprep.subr.mxu0 0.0
    %983 = vmatpush2.msra.mxu0 0.0
    %984 = vmatprep.subr.mxu0 0.0
    %985 = vmatpush2.msra.mxu0 0.0
    %986 = vmatprep.subr.mxu0 0.0
    %987 = vmatpush2.msra.mxu0 0.0
    %988 = vmatprep.subr.mxu0 0.0
    %989 = vmatpush2.msra.mxu0 0.0
    %990 = vmatprep.subr.mxu0 0.0
    %991 = vmatpush2.msra.mxu0 0.0
    %992 = vmatprep.subr.mxu0 0.0
    %993 = vmatpush2.msra.mxu0 0.0
    %994 = vmatprep.subr.mxu0 0.0
    %995 = vmatpush2.msra.mxu0 0.0
    %996 = vmatprep.subr.mxu0 0.0
    %997 = vmatpush2.msra.mxu0 0.0
    %998 = vmatprep.subr.mxu0 0.0
    %999 = vmatpush2.msra.mxu0 0.0
    %1000 = vmatprep.subr.mxu0 0.0
    %1001 = vmatpush2.msra.mxu0 0.0
    %1002 = vmatprep.subr.mxu0 0.0
    %1003 = vmatpush2.msra.mxu0 0.0
    %1004 = vmatprep.mubr.f32.mxu0 0.0
    %1005 = vmatmul.mubr.f32.gmra.mxu0 %v938
    %v1006 = vpop.f32.mrf.mxu0
    %v1007 = vadd.f32 %v930, %v1006
    %v1008 = vpop.f32.mrf.mxu0
    %v1009 = vadd.f32 %v934, %v1008
    %1010 = vdwg.mxu0
    %v1011 = vmul.f32 %v1007, %v1007
    %v1012 = vmul.f32 %v1009, %v1009
    %v1013 = vld [vmem:[%s35] sm:$0xff]
    %v1014 = vld [vmem:[%s35 + $0x8] sm:$0xff]
    %v1015 = vld [vmem:[%s35 + $0x10] sm:$0xff]
    %v1016 = vld [vmem:[%s35 + $0x18] sm:$0xff]
    %v1017 = vld [vmem:[%s35 + $0x20] sm:$0xff]
    %v1018 = vld [vmem:[%s35 + $0x28] sm:$0xff]
    %v1019 = vld [vmem:[%s35 + $0x30] sm:$0xff]
    %v1020 = vld [vmem:[%s35 + $0x38] sm:$0xff]
    %v1021 = vld [vmem:[%s35 + $0x40] sm:$0xff]
    %v1022 = vld [vmem:[%s35 + $0x48] sm:$0xff]
    %v1023 = vld [vmem:[%s35 + $0x50] sm:$0xff]
    %v1024 = vld [vmem:[%s35 + $0x58] sm:$0xff]
    %v1025 = vld [vmem:[%s35 + $0x60] sm:$0xff]
    %v1026 = vld [vmem:[%s35 + $0x68] sm:$0xff]
    %v1027 = vld [vmem:[%s35 + $0x70] sm:$0xff]
    %v1028 = vld [vmem:[%s35 + $0x78] sm:$0xff]
    %v1029 = vld [vmem:[%s35 + $0x80] sm:$0xff]
    %v1030 = vld [vmem:[%s35 + $0x88] sm:$0xff]
    %v1031 = vld [vmem:[%s35 + $0x90] sm:$0xff]
    %v1032 = vld [vmem:[%s35 + $0x98] sm:$0xff]
    %v1033 = vld [vmem:[%s35 + $0xa0] sm:$0xff]
    %v1034 = vld [vmem:[%s35 + $0xa8] sm:$0xff]
    %v1035 = vld [vmem:[%s35 + $0xb0] sm:$0xff]
    %v1036 = vld [vmem:[%s35 + $0xb8] sm:$0xff]
    %v1037 = vld [vmem:[%s35 + $0xc0] sm:$0xff]
    %v1038 = vld [vmem:[%s35 + $0xc8] sm:$0xff]
    %v1039 = vld [vmem:[%s35 + $0xd0] sm:$0xff]
    %v1040 = vld [vmem:[%s35 + $0xd8] sm:$0xff]
    %v1041 = vld [vmem:[%s35 + $0xe0] sm:$0xff]
    %v1042 = vld [vmem:[%s35 + $0xe8] sm:$0xff]
    %v1043 = vld [vmem:[%s35 + $0xf0] sm:$0xff]
    %v1044 = vld [vmem:[%s35 + $0xf8] sm:$0xff]
    %v1045 = vunpack.c.l.bf16 %v1013
    %v1046 = vunpack.c.h.bf16 %v1013
    %v1047 = vunpack.c.l.bf16 %v1014
    %v1048 = vunpack.c.h.bf16 %v1014
    %v1049 = vunpack.c.l.bf16 %v1015
    %v1050 = vunpack.c.h.bf16 %v1015
    %v1051 = vunpack.c.l.bf16 %v1016
    %v1052 = vunpack.c.h.bf16 %v1016
    %v1053 = vunpack.c.l.bf16 %v1017
    %v1054 = vunpack.c.h.bf16 %v1017
    %v1055 = vunpack.c.l.bf16 %v1018
    %v1056 = vunpack.c.h.bf16 %v1018
    %v1057 = vunpack.c.l.bf16 %v1019
    %v1058 = vunpack.c.h.bf16 %v1019
    %v1059 = vunpack.c.l.bf16 %v1020
    %v1060 = vunpack.c.h.bf16 %v1020
    %v1061 = vunpack.c.l.bf16 %v1021
    %v1062 = vunpack.c.h.bf16 %v1021
    %v1063 = vunpack.c.l.bf16 %v1022
    %v1064 = vunpack.c.h.bf16 %v1022
    %v1065 = vunpack.c.l.bf16 %v1023
    %v1066 = vunpack.c.h.bf16 %v1023
    %v1067 = vunpack.c.l.bf16 %v1024
    %v1068 = vunpack.c.h.bf16 %v1024
    %v1069 = vunpack.c.l.bf16 %v1025
    %v1070 = vunpack.c.h.bf16 %v1025
    %v1071 = vunpack.c.l.bf16 %v1026
    %v1072 = vunpack.c.h.bf16 %v1026
    %v1073 = vunpack.c.l.bf16 %v1027
    %v1074 = vunpack.c.h.bf16 %v1027
    %v1075 = vunpack.c.l.bf16 %v1028
    %v1076 = vunpack.c.h.bf16 %v1028
    %v1077 = vunpack.c.l.bf16 %v1029
    %v1078 = vunpack.c.h.bf16 %v1029
    %v1079 = vunpack.c.l.bf16 %v1030
    %v1080 = vunpack.c.h.bf16 %v1030
    %v1081 = vunpack.c.l.bf16 %v1031
    %v1082 = vunpack.c.h.bf16 %v1031
    %v1083 = vunpack.c.l.bf16 %v1032
    %v1084 = vunpack.c.h.bf16 %v1032
    %v1085 = vunpack.c.l.bf16 %v1033
    %v1086 = vunpack.c.h.bf16 %v1033
    %v1087 = vunpack.c.l.bf16 %v1034
    %v1088 = vunpack.c.h.bf16 %v1034
    %v1089 = vunpack.c.l.bf16 %v1035
    %v1090 = vunpack.c.h.bf16 %v1035
    %v1091 = vunpack.c.l.bf16 %v1036
    %v1092 = vunpack.c.h.bf16 %v1036
    %v1093 = vunpack.c.l.bf16 %v1037
    %v1094 = vunpack.c.h.bf16 %v1037
    %v1095 = vunpack.c.l.bf16 %v1038
    %v1096 = vunpack.c.h.bf16 %v1038
    %v1097 = vunpack.c.l.bf16 %v1039
    %v1098 = vunpack.c.h.bf16 %v1039
    %v1099 = vunpack.c.l.bf16 %v1040
    %v1100 = vunpack.c.h.bf16 %v1040
    %v1101 = vunpack.c.l.bf16 %v1041
    %v1102 = vunpack.c.h.bf16 %v1041
    %v1103 = vunpack.c.l.bf16 %v1042
    %v1104 = vunpack.c.h.bf16 %v1042
    %v1105 = vunpack.c.l.bf16 %v1043
    %v1106 = vunpack.c.h.bf16 %v1043
    %v1107 = vunpack.c.l.bf16 %v1044
    %v1108 = vunpack.c.h.bf16 %v1044
    %1109 = vmatprep.subr.mxu0 %v1076
    %1110 = vmatpush1.msra.mxu0 %v1075
    %1111 = vmatprep.subr.mxu0 %v1074
    %1112 = vmatpush1.msra.mxu0 %v1073
    %1113 = vmatprep.subr.mxu0 %v1072
    %1114 = vmatpush1.msra.mxu0 %v1071
    %1115 = vmatprep.subr.mxu0 %v1070
    %1116 = vmatpush1.msra.mxu0 %v1069
    %1117 = vmatprep.subr.mxu0 %v1068
    %1118 = vmatpush1.msra.mxu0 %v1067
    %1119 = vmatprep.subr.mxu0 %v1066
    %1120 = vmatpush1.msra.mxu0 %v1065
    %1121 = vmatprep.subr.mxu0 %v1064
    %1122 = vmatpush1.msra.mxu0 %v1063
    %1123 = vmatprep.subr.mxu0 %v1062
    %1124 = vmatpush1.msra.mxu0 %v1061
    %1125 = vmatprep.subr.mxu0 %v1060
    %1126 = vmatpush1.msra.mxu0 %v1059
    %1127 = vmatprep.subr.mxu0 %v1058
    %1128 = vmatpush1.msra.mxu0 %v1057
    %1129 = vmatprep.subr.mxu0 %v1056
    %1130 = vmatpush1.msra.mxu0 %v1055
    %1131 = vmatprep.subr.mxu0 %v1054
    %1132 = vmatpush1.msra.mxu0 %v1053
    %1133 = vmatprep.subr.mxu0 %v1052
    %1134 = vmatpush1.msra.mxu0 %v1051
    %1135 = vmatprep.subr.mxu0 %v1050
    %1136 = vmatpush1.msra.mxu0 %v1049
    %1137 = vmatprep.subr.mxu0 %v1048
    %1138 = vmatpush1.msra.mxu0 %v1047
    %1139 = vmatprep.subr.mxu0 %v1046
    %1140 = vmatpush1.msra.mxu0 %v1045
    %1141 = vmatprep.subr.mxu0 %v1108
    %1142 = vmatpush2.msra.mxu0 %v1107
    %1143 = vmatprep.subr.mxu0 %v1106
    %1144 = vmatpush2.msra.mxu0 %v1105
    %1145 = vmatprep.subr.mxu0 %v1104
    %1146 = vmatpush2.msra.mxu0 %v1103
    %1147 = vmatprep.subr.mxu0 %v1102
    %1148 = vmatpush2.msra.mxu0 %v1101
    %1149 = vmatprep.subr.mxu0 %v1100
    %1150 = vmatpush2.msra.mxu0 %v1099
    %1151 = vmatprep.subr.mxu0 %v1098
    %1152 = vmatpush2.msra.mxu0 %v1097
    %1153 = vmatprep.subr.mxu0 %v1096
    %1154 = vmatpush2.msra.mxu0 %v1095
    %1155 = vmatprep.subr.mxu0 %v1094
    %1156 = vmatpush2.msra.mxu0 %v1093
    %1157 = vmatprep.subr.mxu0 %v1092
    %1158 = vmatpush2.msra.mxu0 %v1091
    %1159 = vmatprep.subr.mxu0 %v1090
    %1160 = vmatpush2.msra.mxu0 %v1089
    %1161 = vmatprep.subr.mxu0 %v1088
    %1162 = vmatpush2.msra.mxu0 %v1087
    %1163 = vmatprep.subr.mxu0 %v1086
    %1164 = vmatpush2.msra.mxu0 %v1085
    %1165 = vmatprep.subr.mxu0 %v1084
    %1166 = vmatpush2.msra.mxu0 %v1083
    %1167 = vmatprep.subr.mxu0 %v1082
    %1168 = vmatpush2.msra.mxu0 %v1081
    %1169 = vmatprep.subr.mxu0 %v1080
    %1170 = vmatpush2.msra.mxu0 %v1079
    %1171 = vmatprep.subr.mxu0 %v1078
    %1172 = vmatpush2.msra.mxu0 %v1077
    %1173 = vmatprep.mubr.f32.mxu0 %v1009
    %1174 = vmatmul.mubr.f32.gmra.mxu0 %v1007
    %v1175 = vpop.f32.mrf.mxu0
    %v1176 = vadd.f32 0.0, %v1175
    %v1177 = vpop.f32.mrf.mxu0
    %v1178 = vadd.f32 0.0, %v1177
    %1179 = vmatprep.mubr.f32.mxu0 %v1012
    %1180 = vmatmul.mubr.f32.gmra.mxu0 %v1011
    %v1181 = vpop.f32.mrf.mxu0
    %v1182 = vadd.f32 0.0, %v1181
    %v1183 = vpop.f32.mrf.mxu0
    %v1184 = vadd.f32 0.0, %v1183
    %1185 = vdwg.mxu0
    %v1186 = vmul.f32 %v1176, %v1176
    %v1187 = vmul.f32 %v1178, %v1178
    %v1188 = vsub.f32 %v1182, %v1186
    %v1189 = vsub.f32 %v1184, %v1187
    %v1190 = vmax.f32 %v1188, 0.0
    %v1191 = vmax.f32 %v1189, 0.0
    %v1192 = vsub.f32 %v1007, %v1176
    %v1193 = vsub.f32 %v1009, %v1178
    %v1194 = vadd.f32 %v1190, 1e-05
    %v1195 = vadd.f32 %v1191, 1e-05
    %v1196 = vrsqrt.pop %v1194
    %v1197 = vrsqrt.pop %v1195
    %v1198 = vmul.f32 %v1192, %v1196
    %v1199 = vmul.f32 %v1193, %v1197
    %v1200 = vld [vmem:[#allocation16] sm:$0x3]
    %v1202 = vlaneseq
    %v1203 = vshrl.u32 %v1202, 7
    %v1204 = vsub.s32 0, %v1203
    %v1205 = vrot.slane %v1200, %v1204
    %v1206 = vlaneseq
    %v1207 = vshrl.u32 %v1206, 7
    %v1208 = vsub.s32 1, %v1207
    %v1209 = vrot.slane %v1200, %v1208
    %v1212 = vmul.f32 %v1198, %v1205
    %v1213 = vmul.f32 %v1199, %v1209
    %v1214 = vld [vmem:[#allocation18] sm:$0x3]
    %v1216 = vlaneseq
    %v1217 = vshrl.u32 %v1216, 7
    %v1218 = vsub.s32 0, %v1217
    %v1219 = vrot.slane %v1214, %v1218
    %v1220 = vlaneseq
    %v1221 = vshrl.u32 %v1220, 7
    %v1222 = vsub.s32 1, %v1221
    %v1223 = vrot.slane %v1214, %v1222
    %v1226 = vadd.f32 %v1212, %v1219
    %v1227 = vadd.f32 %v1213, %v1223
    %v1228 = vmax.f32 %v1226, 0.0
    %v1229 = vmax.f32 %v1227, 0.0
    %v1230 = vld [vmem:[%s37] sm:$0xf]
    %v1231 = vld [vmem:[%s37 + $0x4] sm:$0xf]
    %v1232 = vld [vmem:[%s37 + $0x8] sm:$0xf]
    %v1233 = vld [vmem:[%s37 + $0xc] sm:$0xf]
    %v1234 = vld [vmem:[%s37 + $0x10] sm:$0xf]
    %v1235 = vld [vmem:[%s37 + $0x14] sm:$0xf]
    %v1236 = vld [vmem:[%s37 + $0x18] sm:$0xf]
    %v1237 = vld [vmem:[%s37 + $0x1c] sm:$0xf]
    %v1238 = vld [vmem:[%s37 + $0x20] sm:$0xf]
    %v1239 = vld [vmem:[%s37 + $0x24] sm:$0xf]
    %v1240 = vld [vmem:[%s37 + $0x28] sm:$0xf]
    %v1241 = vld [vmem:[%s37 + $0x2c] sm:$0xf]
    %v1242 = vld [vmem:[%s37 + $0x30] sm:$0xf]
    %v1243 = vld [vmem:[%s37 + $0x34] sm:$0xf]
    %v1244 = vld [vmem:[%s37 + $0x38] sm:$0xf]
    %v1245 = vld [vmem:[%s37 + $0x3c] sm:$0xf]
    %v1246 = vld [vmem:[%s37 + $0x40] sm:$0xf]
    %v1247 = vld [vmem:[%s37 + $0x44] sm:$0xf]
    %v1248 = vld [vmem:[%s37 + $0x48] sm:$0xf]
    %v1249 = vld [vmem:[%s37 + $0x4c] sm:$0xf]
    %v1250 = vld [vmem:[%s37 + $0x50] sm:$0xf]
    %v1251 = vld [vmem:[%s37 + $0x54] sm:$0xf]
    %v1252 = vld [vmem:[%s37 + $0x58] sm:$0xf]
    %v1253 = vld [vmem:[%s37 + $0x5c] sm:$0xf]
    %v1254 = vld [vmem:[%s37 + $0x60] sm:$0xf]
    %v1255 = vld [vmem:[%s37 + $0x64] sm:$0xf]
    %v1256 = vld [vmem:[%s37 + $0x68] sm:$0xf]
    %v1257 = vld [vmem:[%s37 + $0x6c] sm:$0xf]
    %v1258 = vld [vmem:[%s37 + $0x70] sm:$0xf]
    %v1259 = vld [vmem:[%s37 + $0x74] sm:$0xf]
    %v1260 = vld [vmem:[%s37 + $0x78] sm:$0xf]
    %v1261 = vld [vmem:[%s37 + $0x7c] sm:$0xf]
    %v1262 = vunpack.c.l.bf16 %v1230
    %v1263 = vunpack.c.l.bf16 %v1231
    %v1264 = vunpack.c.l.bf16 %v1232
    %v1265 = vunpack.c.l.bf16 %v1233
    %v1266 = vunpack.c.l.bf16 %v1234
    %v1267 = vunpack.c.l.bf16 %v1235
    %v1268 = vunpack.c.l.bf16 %v1236
    %v1269 = vunpack.c.l.bf16 %v1237
    %v1270 = vunpack.c.l.bf16 %v1238
    %v1271 = vunpack.c.l.bf16 %v1239
    %v1272 = vunpack.c.l.bf16 %v1240
    %v1273 = vunpack.c.l.bf16 %v1241
    %v1274 = vunpack.c.l.bf16 %v1242
    %v1275 = vunpack.c.l.bf16 %v1243
    %v1276 = vunpack.c.l.bf16 %v1244
    %v1277 = vunpack.c.l.bf16 %v1245
    %v1278 = vunpack.c.l.bf16 %v1246
    %v1279 = vunpack.c.l.bf16 %v1247
    %v1280 = vunpack.c.l.bf16 %v1248
    %v1281 = vunpack.c.l.bf16 %v1249
    %v1282 = vunpack.c.l.bf16 %v1250
    %v1283 = vunpack.c.l.bf16 %v1251
    %v1284 = vunpack.c.l.bf16 %v1252
    %v1285 = vunpack.c.l.bf16 %v1253
    %v1286 = vunpack.c.l.bf16 %v1254
    %v1287 = vunpack.c.l.bf16 %v1255
    %v1288 = vunpack.c.l.bf16 %v1256
    %v1289 = vunpack.c.l.bf16 %v1257
    %v1290 = vunpack.c.l.bf16 %v1258
    %v1291 = vunpack.c.l.bf16 %v1259
    %v1292 = vunpack.c.l.bf16 %v1260
    %v1293 = vunpack.c.l.bf16 %v1261
    %v1294 = vld [vmem:[#allocation19] sm:$0x1]
    %v1296 = vlaneseq
    %v1297 = vshrl.u32 %v1296, 7
    %v1298 = vsub.s32 0, %v1297
    %v1299 = vrot.slane %v1294, %v1298
    %1301 = vmatprep.subr.mxu0 0.0
    %1302 = vmatpush1.msra.mxu0 %v1277
    %1303 = vmatprep.subr.mxu0 0.0
    %1304 = vmatpush1.msra.mxu0 %v1276
    %1305 = vmatprep.subr.mxu0 0.0
    %1306 = vmatpush1.msra.mxu0 %v1275
    %1307 = vmatprep.subr.mxu0 0.0
    %1308 = vmatpush1.msra.mxu0 %v1274
    %1309 = vmatprep.subr.mxu0 0.0
    %1310 = vmatpush1.msra.mxu0 %v1273
    %1311 = vmatprep.subr.mxu0 0.0
    %1312 = vmatpush1.msra.mxu0 %v1272
    %1313 = vmatprep.subr.mxu0 0.0
    %1314 = vmatpush1.msra.mxu0 %v1271
    %1315 = vmatprep.subr.mxu0 0.0
    %1316 = vmatpush1.msra.mxu0 %v1270
    %1317 = vmatprep.subr.mxu0 0.0
    %1318 = vmatpush1.msra.mxu0 %v1269
    %1319 = vmatprep.subr.mxu0 0.0
    %1320 = vmatpush1.msra.mxu0 %v1268
    %1321 = vmatprep.subr.mxu0 0.0
    %1322 = vmatpush1.msra.mxu0 %v1267
    %1323 = vmatprep.subr.mxu0 0.0
    %1324 = vmatpush1.msra.mxu0 %v1266
    %1325 = vmatprep.subr.mxu0 0.0
    %1326 = vmatpush1.msra.mxu0 %v1265
    %1327 = vmatprep.subr.mxu0 0.0
    %1328 = vmatpush1.msra.mxu0 %v1264
    %1329 = vmatprep.subr.mxu0 0.0
    %1330 = vmatpush1.msra.mxu0 %v1263
    %1331 = vmatprep.subr.mxu0 0.0
    %1332 = vmatpush1.msra.mxu0 %v1262
    %1333 = vmatprep.subr.mxu0 0.0
    %1334 = vmatpush2.msra.mxu0 %v1293
    %1335 = vmatprep.subr.mxu0 0.0
    %1336 = vmatpush2.msra.mxu0 %v1292
    %1337 = vmatprep.subr.mxu0 0.0
    %1338 = vmatpush2.msra.mxu0 %v1291
    %1339 = vmatprep.subr.mxu0 0.0
    %1340 = vmatpush2.msra.mxu0 %v1290
    %1341 = vmatprep.subr.mxu0 0.0
    %1342 = vmatpush2.msra.mxu0 %v1289
    %1343 = vmatprep.subr.mxu0 0.0
    %1344 = vmatpush2.msra.mxu0 %v1288
    %1345 = vmatprep.subr.mxu0 0.0
    %1346 = vmatpush2.msra.mxu0 %v1287
    %1347 = vmatprep.subr.mxu0 0.0
    %1348 = vmatpush2.msra.mxu0 %v1286
    %1349 = vmatprep.subr.mxu0 0.0
    %1350 = vmatpush2.msra.mxu0 %v1285
    %1351 = vmatprep.subr.mxu0 0.0
    %1352 = vmatpush2.msra.mxu0 %v1284
    %1353 = vmatprep.subr.mxu0 0.0
    %1354 = vmatpush2.msra.mxu0 %v1283
    %1355 = vmatprep.subr.mxu0 0.0
    %1356 = vmatpush2.msra.mxu0 %v1282
    %1357 = vmatprep.subr.mxu0 0.0
    %1358 = vmatpush2.msra.mxu0 %v1281
    %1359 = vmatprep.subr.mxu0 0.0
    %1360 = vmatpush2.msra.mxu0 %v1280
    %1361 = vmatprep.subr.mxu0 0.0
    %1362 = vmatpush2.msra.mxu0 %v1279
    %1363 = vmatprep.subr.mxu0 0.0
    %1364 = vmatpush2.msra.mxu0 %v1278
    %1365 = vmatprep.mubr.f32.mxu0 %v1229
    %1366 = vmatmul.mubr.f32.gmra.mxu0 %v1228
    %v1367 = vpop.f32.mrf.mxu0
    %v1368 = vadd.f32 %v1299, %v1367
    %v1369 = vpop.f32.mrf.mxu0
    %1370 = vdwg.mxu0
    %v1371 = vmul.f32 %v1368, %v1368
    %v1372 = vld [vmem:[%s45] sm:$0xf]
    %v1373 = vld [vmem:[%s45 + $0x4] sm:$0xf]
    %v1374 = vld [vmem:[%s45 + $0x8] sm:$0xf]
    %v1375 = vld [vmem:[%s45 + $0xc] sm:$0xf]
    %v1376 = vld [vmem:[%s45 + $0x10] sm:$0xf]
    %v1377 = vld [vmem:[%s45 + $0x14] sm:$0xf]
    %v1378 = vld [vmem:[%s45 + $0x18] sm:$0xf]
    %v1379 = vld [vmem:[%s45 + $0x1c] sm:$0xf]
    %v1380 = vld [vmem:[%s45 + $0x20] sm:$0xf]
    %v1381 = vld [vmem:[%s45 + $0x24] sm:$0xf]
    %v1382 = vld [vmem:[%s45 + $0x28] sm:$0xf]
    %v1383 = vld [vmem:[%s45 + $0x2c] sm:$0xf]
    %v1384 = vld [vmem:[%s45 + $0x30] sm:$0xf]
    %v1385 = vld [vmem:[%s45 + $0x34] sm:$0xf]
    %v1386 = vld [vmem:[%s45 + $0x38] sm:$0xf]
    %v1387 = vld [vmem:[%s45 + $0x3c] sm:$0xf]
    %v1388 = vunpack.c.l.bf16 %v1372
    %v1389 = vunpack.c.l.bf16 %v1373
    %v1390 = vunpack.c.l.bf16 %v1374
    %v1391 = vunpack.c.l.bf16 %v1375
    %v1392 = vunpack.c.l.bf16 %v1376
    %v1393 = vunpack.c.l.bf16 %v1377
    %v1394 = vunpack.c.l.bf16 %v1378
    %v1395 = vunpack.c.l.bf16 %v1379
    %v1396 = vunpack.c.l.bf16 %v1380
    %v1397 = vunpack.c.l.bf16 %v1381
    %v1398 = vunpack.c.l.bf16 %v1382
    %v1399 = vunpack.c.l.bf16 %v1383
    %v1400 = vunpack.c.l.bf16 %v1384
    %v1401 = vunpack.c.l.bf16 %v1385
    %v1402 = vunpack.c.l.bf16 %v1386
    %v1403 = vunpack.c.l.bf16 %v1387
    %1404 = vmatprep.subr.mxu0 0.0
    %1405 = vmatpush1.msra.mxu0 %v1403
    %1406 = vmatprep.subr.mxu0 0.0
    %1407 = vmatpush1.msra.mxu0 %v1402
    %1408 = vmatprep.subr.mxu0 0.0
    %1409 = vmatpush1.msra.mxu0 %v1401
    %1410 = vmatprep.subr.mxu0 0.0
    %1411 = vmatpush1.msra.mxu0 %v1400
    %1412 = vmatprep.subr.mxu0 0.0
    %1413 = vmatpush1.msra.mxu0 %v1399
    %1414 = vmatprep.subr.mxu0 0.0
    %1415 = vmatpush1.msra.mxu0 %v1398
    %1416 = vmatprep.subr.mxu0 0.0
    %1417 = vmatpush1.msra.mxu0 %v1397
    %1418 = vmatprep.subr.mxu0 0.0
    %1419 = vmatpush1.msra.mxu0 %v1396
    %1420 = vmatprep.subr.mxu0 0.0
    %1421 = vmatpush1.msra.mxu0 %v1395
    %1422 = vmatprep.subr.mxu0 0.0
    %1423 = vmatpush1.msra.mxu0 %v1394
    %1424 = vmatprep.subr.mxu0 0.0
    %1425 = vmatpush1.msra.mxu0 %v1393
    %1426 = vmatprep.subr.mxu0 0.0
    %1427 = vmatpush1.msra.mxu0 %v1392
    %1428 = vmatprep.subr.mxu0 0.0
    %1429 = vmatpush1.msra.mxu0 %v1391
    %1430 = vmatprep.subr.mxu0 0.0
    %1431 = vmatpush1.msra.mxu0 %v1390
    %1432 = vmatprep.subr.mxu0 0.0
    %1433 = vmatpush1.msra.mxu0 %v1389
    %1434 = vmatprep.subr.mxu0 0.0
    %1435 = vmatpush1.msra.mxu0 %v1388
    %1436 = vmatprep.subr.mxu0 0.0
    %1437 = vmatpush2.msra.mxu0 0.0
    %1438 = vmatprep.subr.mxu0 0.0
    %1439 = vmatpush2.msra.mxu0 0.0
    %1440 = vmatprep.subr.mxu0 0.0
    %1441 = vmatpush2.msra.mxu0 0.0
    %1442 = vmatprep.subr.mxu0 0.0
    %1443 = vmatpush2.msra.mxu0 0.0
    %1444 = vmatprep.subr.mxu0 0.0
    %1445 = vmatpush2.msra.mxu0 0.0
    %1446 = vmatprep.subr.mxu0 0.0
    %1447 = vmatpush2.msra.mxu0 0.0
    %1448 = vmatprep.subr.mxu0 0.0
    %1449 = vmatpush2.msra.mxu0 0.0
    %1450 = vmatprep.subr.mxu0 0.0
    %1451 = vmatpush2.msra.mxu0 0.0
    %1452 = vmatprep.subr.mxu0 0.0
    %1453 = vmatpush2.msra.mxu0 0.0
    %1454 = vmatprep.subr.mxu0 0.0
    %1455 = vmatpush2.msra.mxu0 0.0
    %1456 = vmatprep.subr.mxu0 0.0
    %1457 = vmatpush2.msra.mxu0 0.0
    %1458 = vmatprep.subr.mxu0 0.0
    %1459 = vmatpush2.msra.mxu0 0.0
    %1460 = vmatprep.subr.mxu0 0.0
    %1461 = vmatpush2.msra.mxu0 0.0
    %1462 = vmatprep.subr.mxu0 0.0
    %1463 = vmatpush2.msra.mxu0 0.0
    %1464 = vmatprep.subr.mxu0 0.0
    %1465 = vmatpush2.msra.mxu0 0.0
    %1466 = vmatprep.subr.mxu0 0.0
    %1467 = vmatpush2.msra.mxu0 0.0
    %1468 = vmatprep.mubr.f32.mxu0 0.0
    %1469 = vmatmul.mubr.f32.gmra.mxu0 %v1368
    %v1470 = vpop.f32.mrf.mxu0
    %v1471 = vadd.f32 0.0, %v1470
    %v1472 = vpop.f32.mrf.mxu0
    %1473 = vmatprep.mubr.f32.mxu0 0.0
    %1474 = vmatmul.mubr.f32.gmra.mxu0 %v1371
    %v1475 = vpop.f32.mrf.mxu0
    %v1476 = vadd.f32 0.0, %v1475
    %v1477 = vpop.f32.mrf.mxu0
    %1478 = vdwg.mxu0
    %v1479 = vmul.f32 %v1471, %v1471
    %v1480 = vsub.f32 %v1476, %v1479
    %v1481 = vmax.f32 %v1480, 0.0
    %v1482 = vsub.f32 %v1368, %v1471
    %v1483 = vadd.f32 %v1481, 1e-05
    %v1484 = vrsqrt.pop %v1483
    %v1485 = vmul.f32 %v1482, %v1484
    %v1486 = vld [vmem:[#allocation21] sm:$0x1]
    %v1488 = vlaneseq
    %v1489 = vshrl.u32 %v1488, 7
    %v1490 = vsub.s32 0, %v1489
    %v1491 = vrot.slane %v1486, %v1490
    %v1493 = vmul.f32 %v1485, %v1491
    %v1494 = vld [vmem:[#allocation22] sm:$0x1]
    %v1496 = vlaneseq
    %v1497 = vshrl.u32 %v1496, 7
    %v1498 = vsub.s32 0, %v1497
    %v1499 = vrot.slane %v1494, %v1498
    %v1501 = vadd.f32 %v1493, %v1499
    %v1502 = vmax.f32 %v1501, 0.0
    %v1503 = vld [vmem:[%s47] sm:$0xff]
    %v1504 = vld [vmem:[%s47 + $0x8] sm:$0xff]
    %v1505 = vld [vmem:[%s47 + $0x10] sm:$0xff]
    %v1506 = vld [vmem:[%s47 + $0x18] sm:$0xff]
    %v1507 = vld [vmem:[#allocation24] sm:$0x1]
    %v1509 = vlaneseq
    %v1510 = vshrl.u32 %v1509, 7
    %v1511 = vsub.s32 0, %v1510
    %v1512 = vrot.slane %v1507, %v1511
    %1514 = vmatprep.subr.mxu0 0.0
    %1515 = vmatpush1.msra.mxu0 0.0
    %1516 = vmatprep.subr.mxu0 0.0
    %1517 = vmatpush1.msra.mxu0 0.0
    %1518 = vmatprep.subr.mxu0 0.0
    %1519 = vmatpush1.msra.mxu0 0.0
    %1520 = vmatprep.subr.mxu0 0.0
    %1521 = vmatpush1.msra.mxu0 0.0
    %1522 = vmatprep.subr.mxu0 0.0
    %1523 = vmatpush1.msra.mxu0 0.0
    %1524 = vmatprep.subr.mxu0 0.0
    %1525 = vmatpush1.msra.mxu0 0.0
    %1526 = vmatprep.subr.mxu0 0.0
    %1527 = vmatpush1.msra.mxu0 0.0
    %1528 = vmatprep.subr.mxu0 0.0
    %1529 = vmatpush1.msra.mxu0 0.0
    %1530 = vmatprep.subr.mxu0 0.0
    %1531 = vmatpush1.msra.mxu0 0.0
    %1532 = vmatprep.subr.mxu0 0.0
    %1533 = vmatpush1.msra.mxu0 0.0
    %1534 = vmatprep.subr.mxu0 0.0
    %1535 = vmatpush1.msra.mxu0 0.0
    %1536 = vmatprep.subr.mxu0 0.0
    %1537 = vmatpush1.msra.mxu0 0.0
    %1538 = vmatprep.subr.mxu0 0.0
    %1539 = vmatpush1.msra.mxu0 %v1506
    %1540 = vmatprep.subr.mxu0 0.0
    %1541 = vmatpush1.msra.mxu0 %v1505
    %1542 = vmatprep.subr.mxu0 0.0
    %1543 = vmatpush1.msra.mxu0 %v1504
    %1544 = vmatprep.subr.mxu0 0.0
    %1545 = vmatpush1.msra.mxu0 %v1503
    %1546 = vmatprep.subr.mxu0 0.0
    %1547 = vmatpush2.msra.mxu0 0.0
    %1548 = vmatprep.subr.mxu0 0.0
    %1549 = vmatpush2.msra.mxu0 0.0
    %1550 = vmatprep.subr.mxu0 0.0
    %1551 = vmatpush2.msra.mxu0 0.0
    %1552 = vmatprep.subr.mxu0 0.0
    %1553 = vmatpush2.msra.mxu0 0.0
    %1554 = vmatprep.subr.mxu0 0.0
    %1555 = vmatpush2.msra.mxu0 0.0
    %1556 = vmatprep.subr.mxu0 0.0
    %1557 = vmatpush2.msra.mxu0 0.0
    %1558 = vmatprep.subr.mxu0 0.0
    %1559 = vmatpush2.msra.mxu0 0.0
    %1560 = vmatprep.subr.mxu0 0.0
    %1561 = vmatpush2.msra.mxu0 0.0
    %1562 = vmatprep.subr.mxu0 0.0
    %1563 = vmatpush2.msra.mxu0 0.0
    %1564 = vmatprep.subr.mxu0 0.0
    %1565 = vmatpush2.msra.mxu0 0.0
    %1566 = vmatprep.subr.mxu0 0.0
    %1567 = vmatpush2.msra.mxu0 0.0
    %1568 = vmatprep.subr.mxu0 0.0
    %1569 = vmatpush2.msra.mxu0 0.0
    %1570 = vmatprep.subr.mxu0 0.0
    %1571 = vmatpush2.msra.mxu0 0.0
    %1572 = vmatprep.subr.mxu0 0.0
    %1573 = vmatpush2.msra.mxu0 0.0
    %1574 = vmatprep.subr.mxu0 0.0
    %1575 = vmatpush2.msra.mxu0 0.0
    %1576 = vmatprep.subr.mxu0 0.0
    %1577 = vmatpush2.msra.mxu0 0.0
    %1578 = vmatprep.mubr.f32.mxu0 0.0
    %1579 = vmatmul.mubr.f32.gmra.mxu0 %v938
    %v1580 = vpop.f32.mrf.mxu0
    %v1581 = vadd.f32 %v1512, %v1580
    %v1582 = vpop.f32.mrf.mxu0
    %1583 = vdwg.mxu0
    %v1584 = vsel %vm671, %v1581, -inf
    %1585 = vmax.xlane.f32.xlu0 %v1584
    %v1586 = vpop.xlane.xlu0 %1585
    %v1587 = vsub.f32 %v1581, %v1586
    %v1588 = vmul.f32 %v1587, 1.442695
    %v1589 = vpow.pop %v1588
    %v1590 = vsel %vm671, %v1589, 0.0
    %1591 = vadd.xlane.f32.xlu0 %v1590
    %v1592 = vpop.xlane.xlu0 %1591
    %v1593 = vrcp.pop %v1592
    %v1594 = vmul.f32 %v1589, %v1593
    %v1595 = vld [vmem:[#allocation25] sm:$0x7]
    %v1597 = vsel %vm671, %v1594, 0
    %v1600 = vsel %vm675, %v1595, 0
    %1602 = vmatprep.subr.mxu0 0.0
    %1603 = vmatpush1.msra.mxu0 0.0
    %1604 = vmatprep.subr.mxu0 0.0
    %1605 = vmatpush1.msra.mxu0 0.0
    %1606 = vmatprep.subr.mxu0 0.0
    %1607 = vmatpush1.msra.mxu0 0.0
    %1608 = vmatprep.subr.mxu0 0.0
    %1609 = vmatpush1.msra.mxu0 0.0
    %1610 = vmatprep.subr.mxu0 0.0
    %1611 = vmatpush1.msra.mxu0 0.0
    %1612 = vmatprep.subr.mxu0 0.0
    %1613 = vmatpush1.msra.mxu0 0.0
    %1614 = vmatprep.subr.mxu0 0.0
    %1615 = vmatpush1.msra.mxu0 0.0
    %1616 = vmatprep.subr.mxu0 0.0
    %1617 = vmatpush1.msra.mxu0 0.0
    %1618 = vmatprep.subr.mxu0 0.0
    %1619 = vmatpush1.msra.mxu0 0.0
    %1620 = vmatprep.subr.mxu0 0.0
    %1621 = vmatpush1.msra.mxu0 0.0
    %1622 = vmatprep.subr.mxu0 0.0
    %1623 = vmatpush1.msra.mxu0 0.0
    %1624 = vmatprep.subr.mxu0 0.0
    %1625 = vmatpush1.msra.mxu0 0.0
    %1626 = vmatprep.subr.mxu0 0.0
    %1627 = vmatpush1.msra.mxu0 0.0
    %1628 = vmatprep.subr.mxu0 0.0
    %1629 = vmatpush1.msra.mxu0 0.0
    %1630 = vmatprep.subr.mxu0 0.0
    %1631 = vmatpush1.msra.mxu0 0.0
    %1632 = vmatprep.subr.mxu0 0.0
    %1633 = vmatpush1.msra.mxu0 %v1600
    %1634 = vmatprep.subr.mxu0 0.0
    %1635 = vmatpush2.msra.mxu0 0.0
    %1636 = vmatprep.subr.mxu0 0.0
    %1637 = vmatpush2.msra.mxu0 0.0
    %1638 = vmatprep.subr.mxu0 0.0
    %1639 = vmatpush2.msra.mxu0 0.0
    %1640 = vmatprep.subr.mxu0 0.0
    %1641 = vmatpush2.msra.mxu0 0.0
    %1642 = vmatprep.subr.mxu0 0.0
    %1643 = vmatpush2.msra.mxu0 0.0
    %1644 = vmatprep.subr.mxu0 0.0
    %1645 = vmatpush2.msra.mxu0 0.0
    %1646 = vmatprep.subr.mxu0 0.0
    %1647 = vmatpush2.msra.mxu0 0.0
    %1648 = vmatprep.subr.mxu0 0.0
    %1649 = vmatpush2.msra.mxu0 0.0
    %1650 = vmatprep.subr.mxu0 0.0
    %1651 = vmatpush2.msra.mxu0 0.0
    %1652 = vmatprep.subr.mxu0 0.0
    %1653 = vmatpush2.msra.mxu0 0.0
    %1654 = vmatprep.subr.mxu0 0.0
    %1655 = vmatpush2.msra.mxu0 0.0
    %1656 = vmatprep.subr.mxu0 0.0
    %1657 = vmatpush2.msra.mxu0 0.0
    %1658 = vmatprep.subr.mxu0 0.0
    %1659 = vmatpush2.msra.mxu0 0.0
    %1660 = vmatprep.subr.mxu0 0.0
    %1661 = vmatpush2.msra.mxu0 0.0
    %1662 = vmatprep.subr.mxu0 0.0
    %1663 = vmatpush2.msra.mxu0 0.0
    %1664 = vmatprep.subr.mxu0 0.0
    %1665 = vmatpush2.msra.mxu0 0.0
    %1666 = vmatprep.mubr.f32.mxu0 0.0
    %1667 = vmatmul.mubr.f32.gmra.mxu0 %v1597
    %v1668 = vpop.f32.mrf.mxu0
    %v1669 = vadd.f32 0.0, %v1668
    %v1670 = vpop.f32.mrf.mxu0
    %1671 = vdwg.mxu0
    %v1672 = vmul.f32 %v1669, %v1502
    %v1673 = vld [vmem:[%s53] sm:$0xf]
    %v1674 = vld [vmem:[%s53 + $0x4] sm:$0xf]
    %v1675 = vld [vmem:[%s53 + $0x8] sm:$0xf]
    %v1676 = vld [vmem:[%s53 + $0xc] sm:$0xf]
    %v1677 = vld [vmem:[%s53 + $0x10] sm:$0xf]
    %v1678 = vld [vmem:[%s53 + $0x14] sm:$0xf]
    %v1679 = vld [vmem:[%s53 + $0x18] sm:$0xf]
    %v1680 = vld [vmem:[%s53 + $0x1c] sm:$0xf]
    %v1681 = vld [vmem:[%s53 + $0x20] sm:$0xf]
    %v1682 = vld [vmem:[%s53 + $0x24] sm:$0xf]
    %v1683 = vld [vmem:[%s53 + $0x28] sm:$0xf]
    %v1684 = vld [vmem:[%s53 + $0x2c] sm:$0xf]
    %v1685 = vld [vmem:[%s53 + $0x30] sm:$0xf]
    %v1686 = vld [vmem:[%s53 + $0x34] sm:$0xf]
    %v1687 = vld [vmem:[%s53 + $0x38] sm:$0xf]
    %v1688 = vld [vmem:[%s53 + $0x3c] sm:$0xf]
    %v1689 = vunpack.c.l.bf16 %v1673
    %v1690 = vunpack.c.l.bf16 %v1674
    %v1691 = vunpack.c.l.bf16 %v1675
    %v1692 = vunpack.c.l.bf16 %v1676
    %v1693 = vunpack.c.l.bf16 %v1677
    %v1694 = vunpack.c.l.bf16 %v1678
    %v1695 = vunpack.c.l.bf16 %v1679
    %v1696 = vunpack.c.l.bf16 %v1680
    %v1697 = vunpack.c.l.bf16 %v1681
    %v1698 = vunpack.c.l.bf16 %v1682
    %v1699 = vunpack.c.l.bf16 %v1683
    %v1700 = vunpack.c.l.bf16 %v1684
    %v1701 = vunpack.c.l.bf16 %v1685
    %v1702 = vunpack.c.l.bf16 %v1686
    %v1703 = vunpack.c.l.bf16 %v1687
    %v1704 = vunpack.c.l.bf16 %v1688
    %v1705 = vld [vmem:[%s55] sm:$0xf]
    %v1706 = vld [vmem:[%s55 + $0x4] sm:$0xf]
    %v1707 = vld [vmem:[%s55 + $0x8] sm:$0xf]
    %v1708 = vld [vmem:[%s55 + $0xc] sm:$0xf]
    %v1709 = vld [vmem:[%s55 + $0x10] sm:$0xf]
    %v1710 = vld [vmem:[%s55 + $0x14] sm:$0xf]
    %v1711 = vld [vmem:[%s55 + $0x18] sm:$0xf]
    %v1712 = vld [vmem:[%s55 + $0x1c] sm:$0xf]
    %v1713 = vld [vmem:[%s55 + $0x20] sm:$0xf]
    %v1714 = vld [vmem:[%s55 + $0x24] sm:$0xf]
    %v1715 = vld [vmem:[%s55 + $0x28] sm:$0xf]
    %v1716 = vld [vmem:[%s55 + $0x2c] sm:$0xf]
    %v1717 = vld [vmem:[%s55 + $0x30] sm:$0xf]
    %v1718 = vld [vmem:[%s55 + $0x34] sm:$0xf]
    %v1719 = vld [vmem:[%s55 + $0x38] sm:$0xf]
    %v1720 = vld [vmem:[%s55 + $0x3c] sm:$0xf]
    %v1721 = vunpack.c.l.bf16 %v1705
    %v1722 = vunpack.c.l.bf16 %v1706
    %v1723 = vunpack.c.l.bf16 %v1707
    %v1724 = vunpack.c.l.bf16 %v1708
    %v1725 = vunpack.c.l.bf16 %v1709
    %v1726 = vunpack.c.l.bf16 %v1710
    %v1727 = vunpack.c.l.bf16 %v1711
    %v1728 = vunpack.c.l.bf16 %v1712
    %v1729 = vunpack.c.l.bf16 %v1713
    %v1730 = vunpack.c.l.bf16 %v1714
    %v1731 = vunpack.c.l.bf16 %v1715
    %v1732 = vunpack.c.l.bf16 %v1716
    %v1733 = vunpack.c.l.bf16 %v1717
    %v1734 = vunpack.c.l.bf16 %v1718
    %v1735 = vunpack.c.l.bf16 %v1719
    %v1736 = vunpack.c.l.bf16 %v1720
    %1737 = vmatprep.subr.mxu0 0.0
    %1738 = vmatpush1.msra.mxu0 %v1736
    %1739 = vmatprep.subr.mxu0 0.0
    %1740 = vmatpush1.msra.mxu0 %v1735
    %1741 = vmatprep.subr.mxu0 0.0
    %1742 = vmatpush1.msra.mxu0 %v1734
    %1743 = vmatprep.subr.mxu0 0.0
    %1744 = vmatpush1.msra.mxu0 %v1733
    %1745 = vmatprep.subr.mxu0 0.0
    %1746 = vmatpush1.msra.mxu0 %v1732
    %1747 = vmatprep.subr.mxu0 0.0
    %1748 = vmatpush1.msra.mxu0 %v1731
    %1749 = vmatprep.subr.mxu0 0.0
    %1750 = vmatpush1.msra.mxu0 %v1730
    %1751 = vmatprep.subr.mxu0 0.0
    %1752 = vmatpush1.msra.mxu0 %v1729
    %1753 = vmatprep.subr.mxu0 0.0
    %1754 = vmatpush1.msra.mxu0 %v1728
    %1755 = vmatprep.subr.mxu0 0.0
    %1756 = vmatpush1.msra.mxu0 %v1727
    %1757 = vmatprep.subr.mxu0 0.0
    %1758 = vmatpush1.msra.mxu0 %v1726
    %1759 = vmatprep.subr.mxu0 0.0
    %1760 = vmatpush1.msra.mxu0 %v1725
    %1761 = vmatprep.subr.mxu0 0.0
    %1762 = vmatpush1.msra.mxu0 %v1724
    %1763 = vmatprep.subr.mxu0 0.0
    %1764 = vmatpush1.msra.mxu0 %v1723
    %1765 = vmatprep.subr.mxu0 0.0
    %1766 = vmatpush1.msra.mxu0 %v1722
    %1767 = vmatprep.subr.mxu0 0.0
    %1768 = vmatpush1.msra.mxu0 %v1721
    %1769 = vmatprep.subr.mxu0 0.0
    %1770 = vmatpush2.msra.mxu0 0.0
    %1771 = vmatprep.subr.mxu0 0.0
    %1772 = vmatpush2.msra.mxu0 0.0
    %1773 = vmatprep.subr.mxu0 0.0
    %1774 = vmatpush2.msra.mxu0 0.0
    %1775 = vmatprep.subr.mxu0 0.0
    %1776 = vmatpush2.msra.mxu0 0.0
    %1777 = vmatprep.subr.mxu0 0.0
    %1778 = vmatpush2.msra.mxu0 0.0
    %1779 = vmatprep.subr.mxu0 0.0
    %1780 = vmatpush2.msra.mxu0 0.0
    %1781 = vmatprep.subr.mxu0 0.0
    %1782 = vmatpush2.msra.mxu0 0.0
    %1783 = vmatprep.subr.mxu0 0.0
    %1784 = vmatpush2.msra.mxu0 0.0
    %1785 = vmatprep.subr.mxu0 0.0
    %1786 = vmatpush2.msra.mxu0 0.0
    %1787 = vmatprep.subr.mxu0 0.0
    %1788 = vmatpush2.msra.mxu0 0.0
    %1789 = vmatprep.subr.mxu0 0.0
    %1790 = vmatpush2.msra.mxu0 0.0
    %1791 = vmatprep.subr.mxu0 0.0
    %1792 = vmatpush2.msra.mxu0 0.0
    %1793 = vmatprep.subr.mxu0 0.0
    %1794 = vmatpush2.msra.mxu0 0.0
    %1795 = vmatprep.subr.mxu0 0.0
    %1796 = vmatpush2.msra.mxu0 0.0
    %1797 = vmatprep.subr.mxu0 0.0
    %1798 = vmatpush2.msra.mxu0 0.0
    %1799 = vmatprep.subr.mxu0 0.0
    %1800 = vmatpush2.msra.mxu0 0.0
    %1801 = vmatprep.mubr.f32.mxu0 0.0
    %1802 = vmatmul.mubr.f32.gmra.mxu0 %v1502
    %v1803 = vpop.f32.mrf.mxu0
    %v1804 = vadd.f32 0.0, %v1803
    %v1805 = vpop.f32.mrf.mxu0
    %1806 = vdwg.mxu0
    %1807 = vmatprep.subr.mxu0 0.0
    %1808 = vmatpush1.msra.mxu0 %v1704
    %1809 = vmatprep.subr.mxu0 0.0
    %1810 = vmatpush1.msra.mxu0 %v1703
    %1811 = vmatprep.subr.mxu0 0.0
    %1812 = vmatpush1.msra.mxu0 %v1702
    %1813 = vmatprep.subr.mxu0 0.0
    %1814 = vmatpush1.msra.mxu0 %v1701
    %1815 = vmatprep.subr.mxu0 0.0
    %1816 = vmatpush1.msra.mxu0 %v1700
    %1817 = vmatprep.subr.mxu0 0.0
    %1818 = vmatpush1.msra.mxu0 %v1699
    %1819 = vmatprep.subr.mxu0 0.0
    %1820 = vmatpush1.msra.mxu0 %v1698
    %1821 = vmatprep.subr.mxu0 0.0
    %1822 = vmatpush1.msra.mxu0 %v1697
    %1823 = vmatprep.subr.mxu0 0.0
    %1824 = vmatpush1.msra.mxu0 %v1696
    %1825 = vmatprep.subr.mxu0 0.0
    %1826 = vmatpush1.msra.mxu0 %v1695
    %1827 = vmatprep.subr.mxu0 0.0
    %1828 = vmatpush1.msra.mxu0 %v1694
    %1829 = vmatprep.subr.mxu0 0.0
    %1830 = vmatpush1.msra.mxu0 %v1693
    %1831 = vmatprep.subr.mxu0 0.0
    %1832 = vmatpush1.msra.mxu0 %v1692
    %1833 = vmatprep.subr.mxu0 0.0
    %1834 = vmatpush1.msra.mxu0 %v1691
    %1835 = vmatprep.subr.mxu0 0.0
    %1836 = vmatpush1.msra.mxu0 %v1690
    %1837 = vmatprep.subr.mxu0 0.0
    %1838 = vmatpush1.msra.mxu0 %v1689
    %1839 = vmatprep.subr.mxu0 0.0
    %1840 = vmatpush2.msra.mxu0 0.0
    %1841 = vmatprep.subr.mxu0 0.0
    %1842 = vmatpush2.msra.mxu0 0.0
    %1843 = vmatprep.subr.mxu0 0.0
    %1844 = vmatpush2.msra.mxu0 0.0
    %1845 = vmatprep.subr.mxu0 0.0
    %1846 = vmatpush2.msra.mxu0 0.0
    %1847 = vmatprep.subr.mxu0 0.0
    %1848 = vmatpush2.msra.mxu0 0.0
    %1849 = vmatprep.subr.mxu0 0.0
    %1850 = vmatpush2.msra.mxu0 0.0
    %1851 = vmatprep.subr.mxu0 0.0
    %1852 = vmatpush2.msra.mxu0 0.0
    %1853 = vmatprep.subr.mxu0 0.0
    %1854 = vmatpush2.msra.mxu0 0.0
    %1855 = vmatprep.subr.mxu0 0.0
    %1856 = vmatpush2.msra.mxu0 0.0
    %1857 = vmatprep.subr.mxu0 0.0
    %1858 = vmatpush2.msra.mxu0 0.0
    %1859 = vmatprep.subr.mxu0 0.0
    %1860 = vmatpush2.msra.mxu0 0.0
    %1861 = vmatprep.subr.mxu0 0.0
    %1862 = vmatpush2.msra.mxu0 0.0
    %1863 = vmatprep.subr.mxu0 0.0
    %1864 = vmatpush2.msra.mxu0 0.0
    %1865 = vmatprep.subr.mxu0 0.0
    %1866 = vmatpush2.msra.mxu0 0.0
    %1867 = vmatprep.subr.mxu0 0.0
    %1868 = vmatpush2.msra.mxu0 0.0
    %1869 = vmatprep.subr.mxu0 0.0
    %1870 = vmatpush2.msra.mxu0 0.0
    %1871 = vmatprep.mubr.f32.mxu0 0.0
    %1872 = vmatmul.mubr.f32.gmra.mxu0 %v1672
    %v1873 = vpop.f32.mrf.mxu0
    %v1874 = vadd.f32 %v1804, %v1873
    %v1875 = vpop.f32.mrf.mxu0
    %1876 = vdwg.mxu0
    %v1877 = vld [vmem:[%s57] sm:$0x1]
    %v1879 = vlaneseq
    %v1880 = vshrl.u32 %v1879, 7
    %v1881 = vsub.s32 0, %v1880
    %v1882 = vrot.slane %v1877, %v1881
    %v1884 = vadd.f32 %v1874, %v1882
    %v1885 = vmax.f32 %v1884, 0.0
    %v1886 = vld [vmem:[%s59] sm:$0xff]
    %v1887 = vld [vmem:[%s59 + $0x8] sm:$0xff]
    %v1888 = vld [vmem:[%s59 + $0x10] sm:$0xff]
    %v1889 = vld [vmem:[%s59 + $0x18] sm:$0xff]
    %v1890 = vld [vmem:[%s59 + $0x20] sm:$0xff]
    %v1891 = vld [vmem:[%s59 + $0x28] sm:$0xff]
    %v1892 = vld [vmem:[%s59 + $0x30] sm:$0xff]
    %v1893 = vld [vmem:[%s59 + $0x38] sm:$0xff]
    %v1894 = vld [vmem:[%s59 + $0x40] sm:$0xff]
    %v1895 = vld [vmem:[%s59 + $0x48] sm:$0xff]
    %v1896 = vld [vmem:[%s59 + $0x50] sm:$0xff]
    %v1897 = vld [vmem:[%s59 + $0x58] sm:$0xff]
    %v1898 = vld [vmem:[%s61] sm:$0x1]
    %v1900 = vlaneseq
    %v1901 = vshrl.u32 %v1900, 7
    %v1902 = vsub.s32 0, %v1901
    %v1903 = vrot.slane %v1898, %v1902
    %vm1905 = vcmask 785408
    %v1907 = vsel %vm1905, %v1885, 0
    %1909 = vmatprep.subr.mxu0 0.0
    %1910 = vmatpush1.msra.mxu0 0.0
    %1911 = vmatprep.subr.mxu0 0.0
    %1912 = vmatpush1.msra.mxu0 0.0
    %1913 = vmatprep.subr.mxu0 0.0
    %1914 = vmatpush1.msra.mxu0 0.0
    %1915 = vmatprep.subr.mxu0 0.0
    %1916 = vmatpush1.msra.mxu0 0.0
    %1917 = vmatprep.subr.mxu0 0.0
    %1918 = vmatpush1.msra.mxu0 %v1897
    %1919 = vmatprep.subr.mxu0 0.0
    %1920 = vmatpush1.msra.mxu0 %v1896
    %1921 = vmatprep.subr.mxu0 0.0
    %1922 = vmatpush1.msra.mxu0 %v1895
    %1923 = vmatprep.subr.mxu0 0.0
    %1924 = vmatpush1.msra.mxu0 %v1894
    %1925 = vmatprep.subr.mxu0 0.0
    %1926 = vmatpush1.msra.mxu0 %v1893
    %1927 = vmatprep.subr.mxu0 0.0
    %1928 = vmatpush1.msra.mxu0 %v1892
    %1929 = vmatprep.subr.mxu0 0.0
    %1930 = vmatpush1.msra.mxu0 %v1891
    %1931 = vmatprep.subr.mxu0 0.0
    %1932 = vmatpush1.msra.mxu0 %v1890
    %1933 = vmatprep.subr.mxu0 0.0
    %1934 = vmatpush1.msra.mxu0 %v1889
    %1935 = vmatprep.subr.mxu0 0.0
    %1936 = vmatpush1.msra.mxu0 %v1888
    %1937 = vmatprep.subr.mxu0 0.0
    %1938 = vmatpush1.msra.mxu0 %v1887
    %1939 = vmatprep.subr.mxu0 0.0
    %1940 = vmatpush1.msra.mxu0 %v1886
    %1941 = vmatprep.subr.mxu0 0.0
    %1942 = vmatpush2.msra.mxu0 0.0
    %1943 = vmatprep.subr.mxu0 0.0
    %1944 = vmatpush2.msra.mxu0 0.0
    %1945 = vmatprep.subr.mxu0 0.0
    %1946 = vmatpush2.msra.mxu0 0.0
    %1947 = vmatprep.subr.mxu0 0.0
    %1948 = vmatpush2.msra.mxu0 0.0
    %1949 = vmatprep.subr.mxu0 0.0
    %1950 = vmatpush2.msra.mxu0 0.0
    %1951 = vmatprep.subr.mxu0 0.0
    %1952 = vmatpush2.msra.mxu0 0.0
    %1953 = vmatprep.subr.mxu0 0.0
    %1954 = vmatpush2.msra.mxu0 0.0
    %1955 = vmatprep.subr.mxu0 0.0
    %1956 = vmatpush2.msra.mxu0 0.0
    %1957 = vmatprep.subr.mxu0 0.0
    %1958 = vmatpush2.msra.mxu0 0.0
    %1959 = vmatprep.subr.mxu0 0.0
    %1960 = vmatpush2.msra.mxu0 0.0
    %1961 = vmatprep.subr.mxu0 0.0
    %1962 = vmatpush2.msra.mxu0 0.0
    %1963 = vmatprep.subr.mxu0 0.0
    %1964 = vmatpush2.msra.mxu0 0.0
    %1965 = vmatprep.subr.mxu0 0.0
    %1966 = vmatpush2.msra.mxu0 0.0
    %1967 = vmatprep.subr.mxu0 0.0
    %1968 = vmatpush2.msra.mxu0 0.0
    %1969 = vmatprep.subr.mxu0 0.0
    %1970 = vmatpush2.msra.mxu0 0.0
    %1971 = vmatprep.subr.mxu0 0.0
    %1972 = vmatpush2.msra.mxu0 0.0
    %1973 = vmatprep.mubr.f32.mxu0 0.0
    %1974 = vmatmul.mubr.f32.gmra.mxu0 %v1907
    %v1975 = vpop.f32.mrf.mxu0
    %v1976 = vadd.f32 %v1903, %v1975
    %v1977 = vpop.f32.mrf.mxu0
    %1978 = vdwg.mxu0
    %v1979 = vxor.u32 %v1976, 2147483648
    %v1980 = vmul.f32 %v1979, 1.442695
    %v1981 = vpow.pop %v1980
    %v1982 = vadd.f32 %v1981, 1.0
    %v1983 = vrcp.pop %v1982
    %v1984 = vmul.f32 1.0, %v1983
    %v1985 = vld [vmem:[#allocation27] sm:$0x7]
    %v1987 = vsel %vm675, %v1985, 0
    %1989 = vmatprep.subr.mxu0 0.0
    %1990 = vmatpush1.msra.mxu0 0.0
    %1991 = vmatprep.subr.mxu0 0.0
    %1992 = vmatpush1.msra.mxu0 0.0
    %1993 = vmatprep.subr.mxu0 0.0
    %1994 = vmatpush1.msra.mxu0 0.0
    %1995 = vmatprep.subr.mxu0 0.0
    %1996 = vmatpush1.msra.mxu0 0.0
    %1997 = vmatprep.subr.mxu0 0.0
    %1998 = vmatpush1.msra.mxu0 0.0
    %1999 = vmatprep.subr.mxu0 0.0
    %2000 = vmatpush1.msra.mxu0 0.0
    %2001 = vmatprep.subr.mxu0 0.0
    %2002 = vmatpush1.msra.mxu0 0.0
    %2003 = vmatprep.subr.mxu0 0.0
    %2004 = vmatpush1.msra.mxu0 0.0
    %2005 = vmatprep.subr.mxu0 0.0
    %2006 = vmatpush1.msra.mxu0 0.0
    %2007 = vmatprep.subr.mxu0 0.0
    %2008 = vmatpush1.msra.mxu0 0.0
    %2009 = vmatprep.subr.mxu0 0.0
    %2010 = vmatpush1.msra.mxu0 0.0
    %2011 = vmatprep.subr.mxu0 0.0
    %2012 = vmatpush1.msra.mxu0 0.0
    %2013 = vmatprep.subr.mxu0 0.0
    %2014 = vmatpush1.msra.mxu0 0.0
    %2015 = vmatprep.subr.mxu0 0.0
    %2016 = vmatpush1.msra.mxu0 0.0
    %2017 = vmatprep.subr.mxu0 0.0
    %2018 = vmatpush1.msra.mxu0 0.0
    %2019 = vmatprep.subr.mxu0 0.0
    %2020 = vmatpush1.msra.mxu0 %v1987
    %2021 = vmatprep.subr.mxu0 0.0
    %2022 = vmatpush2.msra.mxu0 0.0
    %2023 = vmatprep.subr.mxu0 0.0
    %2024 = vmatpush2.msra.mxu0 0.0
    %2025 = vmatprep.subr.mxu0 0.0
    %2026 = vmatpush2.msra.mxu0 0.0
    %2027 = vmatprep.subr.mxu0 0.0
    %2028 = vmatpush2.msra.mxu0 0.0
    %2029 = vmatprep.subr.mxu0 0.0
    %2030 = vmatpush2.msra.mxu0 0.0
    %2031 = vmatprep.subr.mxu0 0.0
    %2032 = vmatpush2.msra.mxu0 0.0
    %2033 = vmatprep.subr.mxu0 0.0
    %2034 = vmatpush2.msra.mxu0 0.0
    %2035 = vmatprep.subr.mxu0 0.0
    %2036 = vmatpush2.msra.mxu0 0.0
    %2037 = vmatprep.subr.mxu0 0.0
    %2038 = vmatpush2.msra.mxu0 0.0
    %2039 = vmatprep.subr.mxu0 0.0
    %2040 = vmatpush2.msra.mxu0 0.0
    %2041 = vmatprep.subr.mxu0 0.0
    %2042 = vmatpush2.msra.mxu0 0.0
    %2043 = vmatprep.subr.mxu0 0.0
    %2044 = vmatpush2.msra.mxu0 0.0
    %2045 = vmatprep.subr.mxu0 0.0
    %2046 = vmatpush2.msra.mxu0 0.0
    %2047 = vmatprep.subr.mxu0 0.0
    %2048 = vmatpush2.msra.mxu0 0.0
    %2049 = vmatprep.subr.mxu0 0.0
    %2050 = vmatpush2.msra.mxu0 0.0
    %2051 = vmatprep.subr.mxu0 0.0
    %2052 = vmatpush2.msra.mxu0 0.0
    %2053 = vmatprep.mubr.f32.mxu0 0.0
    %2054 = vmatmul.mubr.f32.gmra.mxu0 %v673
    %v2055 = vpop.f32.mrf.mxu0
    %v2056 = vadd.f32 0.0, %v2055
    %v2057 = vpop.f32.mrf.mxu0
    %2058 = vdwg.mxu0
    %v2059 = vmul.f32 %v1984, %v2056
    %v2060 = vld [vmem:[%s65] sm:$0x3f]
    %vm2061 = vcmask 48128
    %v2063 = vsel %vm2061, %v2059, 0
    %vm2065 = vcmask 1045504
    %v2067 = vsel %vm2065, %v2060, 0
    %2069 = vmatprep.subr.mxu0 0.0
    %2070 = vmatpush1.msra.mxu0 0.0
    %2071 = vmatprep.subr.mxu0 0.0
    %2072 = vmatpush1.msra.mxu0 0.0
    %2073 = vmatprep.subr.mxu0 0.0
    %2074 = vmatpush1.msra.mxu0 0.0
    %2075 = vmatprep.subr.mxu0 0.0
    %2076 = vmatpush1.msra.mxu0 0.0
    %2077 = vmatprep.subr.mxu0 0.0
    %2078 = vmatpush1.msra.mxu0 0.0
    %2079 = vmatprep.subr.mxu0 0.0
    %2080 = vmatpush1.msra.mxu0 0.0
    %2081 = vmatprep.subr.mxu0 0.0
    %2082 = vmatpush1.msra.mxu0 0.0
    %2083 = vmatprep.subr.mxu0 0.0
    %2084 = vmatpush1.msra.mxu0 0.0
    %2085 = vmatprep.subr.mxu0 0.0
    %2086 = vmatpush1.msra.mxu0 0.0
    %2087 = vmatprep.subr.mxu0 0.0
    %2088 = vmatpush1.msra.mxu0 0.0
    %2089 = vmatprep.subr.mxu0 0.0
    %2090 = vmatpush1.msra.mxu0 0.0
    %2091 = vmatprep.subr.mxu0 0.0
    %2092 = vmatpush1.msra.mxu0 0.0
    %2093 = vmatprep.subr.mxu0 0.0
    %2094 = vmatpush1.msra.mxu0 0.0
    %2095 = vmatprep.subr.mxu0 0.0
    %2096 = vmatpush1.msra.mxu0 0.0
    %2097 = vmatprep.subr.mxu0 0.0
    %2098 = vmatpush1.msra.mxu0 0.0
    %2099 = vmatprep.subr.mxu0 0.0
    %2100 = vmatpush1.msra.mxu0 %v2067
    %2101 = vmatprep.subr.mxu0 0.0
    %2102 = vmatpush2.msra.mxu0 0.0
    %2103 = vmatprep.subr.mxu0 0.0
    %2104 = vmatpush2.msra.mxu0 0.0
    %2105 = vmatprep.subr.mxu0 0.0
    %2106 = vmatpush2.msra.mxu0 0.0
    %2107 = vmatprep.subr.mxu0 0.0
    %2108 = vmatpush2.msra.mxu0 0.0
    %2109 = vmatprep.subr.mxu0 0.0
    %2110 = vmatpush2.msra.mxu0 0.0
    %2111 = vmatprep.subr.mxu0 0.0
    %2112 = vmatpush2.msra.mxu0 0.0
    %2113 = vmatprep.subr.mxu0 0.0
    %2114 = vmatpush2.msra.mxu0 0.0
    %2115 = vmatprep.subr.mxu0 0.0
    %2116 = vmatpush2.msra.mxu0 0.0
    %2117 = vmatprep.subr.mxu0 0.0
    %2118 = vmatpush2.msra.mxu0 0.0
    %2119 = vmatprep.subr.mxu0 0.0
    %2120 = vmatpush2.msra.mxu0 0.0
    %2121 = vmatprep.subr.mxu0 0.0
    %2122 = vmatpush2.msra.mxu0 0.0
    %2123 = vmatprep.subr.mxu0 0.0
    %2124 = vmatpush2.msra.mxu0 0.0
    %2125 = vmatprep.subr.mxu0 0.0
    %2126 = vmatpush2.msra.mxu0 0.0
    %2127 = vmatprep.subr.mxu0 0.0
    %2128 = vmatpush2.msra.mxu0 0.0
    %2129 = vmatprep.subr.mxu0 0.0
    %2130 = vmatpush2.msra.mxu0 0.0
    %2131 = vmatprep.subr.mxu0 0.0
    %2132 = vmatpush2.msra.mxu0 0.0
    %2133 = vmatprep.mubr.f32.mxu0 0.0
    %2134 = vmatmul.mubr.f32.gmra.mxu0 %v2063
    %v2135 = vpop.f32.mrf.mxu0
    %v2136 = vadd.f32 0.0, %v2135
    %v2137 = vpop.f32.mrf.mxu0
    %2138 = vdwg.mxu0
    %vm2139 = vcmask 15360
    %2140 = vst.msk [vmem:[%s67] sm:$0xff] %vm2139, %v2136
    // Predicated region
    $region202: #{forward.1} parent=1 // pred_check
      _
    $region203: #{forward.1} parent=1 // pred_check_branch
      %2142 = sbr.rel (0) target = $region205
    $region204: #{forward.1} parent=1 // pred_region
      _
    $region205: #{forward.1} parent=1 // pred_fallthru
      _
    // Predicated region
    $region206: #{forward.1} parent=1 // pred_check
      _
    $region207: #{forward.1} parent=1 // pred_check_branch
      %2144 = sbr.rel (0) target = $region209
    $region208: #{forward.1} parent=1 // pred_region
      _
    $region209: #{forward.1} parent=1 // pred_fallthru
      _
    %2145 = vsyncpa [#allocation3], 1
    %2146 = vsyncpa [#allocation5], 1
    %2147 = vsyncpa [#allocation8], 1
    %2148 = vsyncpa [#allocation11], 1
    %2149 = vsyncpa [#allocation14], 1
    %2150 = vsyncpa [#allocation17], 1
    %2151 = vsyncpa [#allocation20], 1
    %2152 = vsyncpa [#allocation23], 1
    %2153 = vsyncpa [#allocation26], 1

</llo_original>
